<compile_context>
chip_gen: v7x
topology: tpu7x:2x2x1
jax: 0.10.0
libtpu: 0.0.40
codegen_flags: <defaults>
</compile_context>

<pallas_src>
import functools
import math

import jax
import jax.numpy as jnp
from jax.experimental import pallas as pl
from jax.experimental.pallas import tpu as pltpu


# ----------------------------------------------------------------------------
# Fused kernel: patch-embed -> depth x (Attn + MLP reversible layer) -> head
# ----------------------------------------------------------------------------
def _layernorm(x, gamma, beta, eps):
    mu = jnp.mean(x, axis=-1, keepdims=True)
    var = jnp.mean((x - mu) ** 2, axis=-1, keepdims=True)
    return (x - mu) * jax.lax.rsqrt(var + eps) * gamma + beta


def fused_vit_kernel(
    # inputs
    patches_ref, pos_ref, wp_ref, bp_ref,
    wqkv_ref, bqkv_ref, wo_ref, lnv_ref, w1_ref, b1_ref, w2_ref,
    hln_ref, wh_ref, bh_ref,
    # outputs
    out_ref,
    # scratch (residual stream, resident in VMEM across the layer axis)
    x1_s, x2_s,
    *, num_heads, exact_softmax=False,
):
    l = pl.program_id(1)
    bt, n, d = x1_s.shape
    hd = d // num_heads

    # ---- layer 0: patch embedding (stride==kernel conv as a matmul) + pos ----
    @pl.when(l == 0)
    def _init():
        p2 = patches_ref[...].reshape(bt * n, -1)               # [Bt*N, K] bf16
        tok = jnp.dot(p2, wp_ref[...], preferred_element_type=jnp.float32)
        tok = tok.reshape(bt, n, d) + bp_ref[...] + pos_ref[...]  # f32 [Bt,N,D]
        # x = cat([tok, tok], -1).chunk(2) -> X1 == X2 == tok
        x1_s[...] = tok
        x2_s[...] = tok

    x1 = x1_s[...]                                              # [Bt, N, D] f32
    x2 = x2_s[...]

    ln = lnv_ref[0]                                             # [6, D] f32
    f_g, f_b = ln[0:1], ln[1:2]
    g_g, g_b = ln[2:3], ln[3:4]
    bo, b2 = ln[4:5], ln[5:6]

    # ------------------ F: Y1 = X1 + MHA(LN_1e-6(X2)) ------------------
    xn = _layernorm(x2, f_g, f_b, 1e-6)                         # [Bt, N, D] f32
    xn2 = xn.reshape(bt * n, d).astype(jnp.bfloat16)            # one bf16 cast
    # Fused QKV projection: one lane-dense K=D matmul (scale folded into Q).
    qkv = jnp.dot(xn2, wqkv_ref[0],
                  preferred_element_type=jnp.float32) + bqkv_ref[0]  # [Bt*N, 3D]

    # Per-head scores / PV (inherently per-head); static unrolled loop, no
    # [H, N, D] broadcast, no head-major transpose.
    o_heads = []
    for h in range(num_heads):
        q_h = qkv[:, h * hd:(h + 1) * hd].astype(jnp.bfloat16).reshape(bt, n, hd)
        k_h = qkv[:, d + h * hd:d + (h + 1) * hd].astype(jnp.bfloat16).reshape(bt, n, hd)
        v_h = qkv[:, 2 * d + h * hd:2 * d + (h + 1) * hd].astype(jnp.bfloat16).reshape(bt, n, hd)

        s = jnp.einsum("bnf,bmf->bnm", q_h, k_h,
                       preferred_element_type=jnp.float32)      # [Bt, N, N] f32
        s = s - jnp.max(s, axis=-1, keepdims=True)
        p = jnp.exp(s)
        den = jnp.sum(p, axis=-1, keepdims=True)
        if exact_softmax:
            p = p / den
        else:
            p = p * pl.reciprocal(den, approx=True)             # EUP slot
        o_heads.append(jnp.einsum("bnm,bmf->bnf", p.astype(jnp.bfloat16), v_h,
                                  preferred_element_type=jnp.float32))

    # concat heads back on the lane axis -> single K=D output projection
    o = jnp.concatenate(o_heads, axis=-1)                       # [Bt, N, D] f32
    attn = jnp.dot(o.reshape(bt * n, d).astype(jnp.bfloat16), wo_ref[0],
                   preferred_element_type=jnp.float32) + bo     # [Bt*N, D] f32
    y1 = x1 + attn.reshape(bt, n, d)

    # ------------------ G: Y2 = X2 + MLP(LN_1e-5(Y1)) ------------------
    yn = _layernorm(y1, g_g, g_b, 1e-5).reshape(bt * n, d).astype(jnp.bfloat16)
    h1 = jnp.dot(yn, w1_ref[0], preferred_element_type=jnp.float32) + b1_ref[0]
    # exact GELU (nn.GELU default): 0.5 * x * (1 + erf(x / sqrt(2)))
    # (on v5e, if VALU-bound, swap for the tanh approximation — changes numerics)
    h1 = 0.5 * h1 * (1.0 + jax.lax.erf(h1 * (1.0 / math.sqrt(2.0))))
    h2 = jnp.dot(h1.astype(jnp.bfloat16), w2_ref[0],
                 preferred_element_type=jnp.float32) + b2
    y2 = x2 + h2.reshape(bt, n, d)

    x1_s[...] = y1
    x2_s[...] = y2

    # ---- last layer: mean over sequence, LayerNorm(2D), Linear(2D -> C) ----
    @pl.when(l == pl.num_programs(1) - 1)
    def _head():
        m = jnp.concatenate([jnp.mean(y1, axis=1), jnp.mean(y2, axis=1)],
                            axis=-1)                            # [Bt, 2D]
        mn = _layernorm(m, hln_ref[0:1], hln_ref[1:2], 1e-5)
        logits = (jnp.dot(mn.astype(jnp.bfloat16), wh_ref[...],
                          preferred_element_type=jnp.float32) + bh_ref[...])
        out_ref[:, 0, :] = logits                               # [Bt, C]


# ----------------------------------------------------------------------------
# Parameter init (PyTorch-module shapes) and kernel-layout preparation
# ----------------------------------------------------------------------------
def init_params(key, embed_dim, depth, patch_size, num_patches, num_classes):
    d = embed_dim
    keys = iter(jax.random.split(key, 4 + 8 * depth))

    def nrm(k, shape):
        return 0.02 * jax.random.normal(k, shape, jnp.float32)

    params = {
        # Conv2d(3, D, kernel=patch, stride=patch): weight [D,3,ph,pw], bias [D]
        "patch_w": nrm(next(keys), (d, 3, patch_size[0], patch_size[1])),
        "patch_b": nrm(next(keys), (d,)),
        # nn.Parameter(torch.zeros(1, num_patches, D))
        "pos": jnp.zeros((1, num_patches, d), jnp.float32),
        "layers": [],
    }
    for _ in range(depth):
        params["layers"].append({
            # AttentionSubBlock: LN(eps=1e-6) + nn.MultiheadAttention
            "f_ln_g": jnp.ones((d,), jnp.float32),
            "f_ln_b": jnp.zeros((d,), jnp.float32),
            "in_proj_w": nrm(next(keys), (3 * d, d)),
            "in_proj_b": nrm(next(keys), (3 * d,)),
            "out_w": nrm(next(keys), (d, d)),
            "out_b": nrm(next(keys), (d,)),
            # MLPSubblock: LN(eps=1e-5) + Linear(D,4D) + GELU + Linear(4D,D)
            "g_ln_g": jnp.ones((d,), jnp.float32),
            "g_ln_b": jnp.zeros((d,), jnp.float32),
            "w1": nrm(next(keys), (4 * d, d)),
            "b1": nrm(next(keys), (4 * d,)),
            "w2": nrm(next(keys), (d, 4 * d)),
            "b2": nrm(next(keys), (d,)),
        })
    params["head"] = {  # LayerNorm(2D) + Linear(2D, num_classes)
        "ln_g": jnp.ones((2 * d,), jnp.float32),
        "ln_b": jnp.zeros((2 * d,), jnp.float32),
        "w": nrm(next(keys), (num_classes, 2 * d)),
        "b": nrm(next(keys), (num_classes,)),
    }
    return params


def prepare_kernel_params(params, n_head):
    """Stack per-layer weights along a leading `depth` axis:
       * fused QKV weight [depth, D, 3D] bf16 (1/sqrt(hd) folded into Q third)
         and fused QKV bias [depth, 1, 3D] f32,
       * out-proj / MLP weights transposed and cast to bf16,
       * small per-layer vectors packed into one lane-dense [depth, 6, D]:
           rows = (f_ln_g, f_ln_b, g_ln_g, g_ln_b, out_b, mlp_b2)."""
    d = params["pos"].shape[-1]
    hd = d // n_head
    scale = 1.0 / math.sqrt(hd)

    wqkv, bqkv, wo, lnv, w1, b1, w2 = [], [], [], [], [], [], []
    for lyr in params["layers"]:
        ipw, ipb = lyr["in_proj_w"], lyr["in_proj_b"]        # [3D, D], [3D]
        wq = ipw[:d].T * scale                               # scale folded
        wk = ipw[d:2 * d].T
        wv = ipw[2 * d:].T
        wqkv.append(jnp.concatenate([wq, wk, wv], axis=1))   # [D, 3D]
        bqkv.append(jnp.concatenate([ipb[:d] * scale, ipb[d:2 * d], ipb[2 * d:]]
                                    ).reshape(1, 3 * d))
        wo.append(lyr["out_w"].T)                            # [D, D]
        lnv.append(jnp.stack([lyr["f_ln_g"], lyr["f_ln_b"],
                              lyr["g_ln_g"], lyr["g_ln_b"],
                              lyr["out_b"], lyr["b2"]], axis=0))   # [6, D]
        w1.append(lyr["w1"].T)                               # [D, 4D]
        b1.append(lyr["b1"].reshape(1, 4 * d))
        w2.append(lyr["w2"].T)                               # [4D, D]

    kp = {
        "wqkv": jnp.stack(wqkv).astype(jnp.bfloat16),        # [depth, D, 3D]
        "bqkv": jnp.stack(bqkv).astype(jnp.float32),         # [depth, 1, 3D]
        "wo":   jnp.stack(wo).astype(jnp.bfloat16),          # [depth, D, D]
        "lnv":  jnp.stack(lnv).astype(jnp.float32),          # [depth, 6, D]
        "w1":   jnp.stack(w1).astype(jnp.bfloat16),          # [depth, D, 4D]
        "b1":   jnp.stack(b1).astype(jnp.float32),           # [depth, 1, 4D]
        "w2":   jnp.stack(w2).astype(jnp.bfloat16),          # [depth, 4D, D]
    }
    kp["pos"] = params["pos"].astype(jnp.float32)                       # [1,N,D]
    kp["wp"] = params["patch_w"].reshape(d, -1).T.astype(jnp.bfloat16)  # [K, D]
    kp["bp"] = params["patch_b"].reshape(1, d).astype(jnp.float32)
    kp["hln"] = jnp.stack([params["head"]["ln_g"],
                           params["head"]["ln_b"]]).astype(jnp.float32)  # [2,2D]
    kp["wh"] = params["head"]["w"].T.astype(jnp.bfloat16)                # [2D,C]
    kp["bh"] = params["head"]["b"].reshape(1, -1).astype(jnp.float32)
    return kp


# ----------------------------------------------------------------------------
# Full forward: single fused pallas_call over grid (batch blocks, depth)
# ----------------------------------------------------------------------------
def ivt_forward(x, params, *, embed_dim, n_head, patch_size, num_classes,
                batch_block=None, vmem_limit_bytes=64 * 1024 * 1024):
    b, c, ih, iw = x.shape
    ph, pw = patch_size
    hp, wp = ih // ph, iw // pw
    n = hp * wp
    d = embed_dim
    kdim = c * ph * pw
    depth = len(params["layers"])

    # Batch blocking: Bt images per grid step (weights streamed once per Bt).
    # At ViT-B scale keep Bt <= 2 on v7x (64 MiB/TC), larger on v5e/v6e.
    if batch_block is None:
        batch_block = min(b, 4)
        while b % batch_block:
            batch_block -= 1
    bt = batch_block
    assert b % bt == 0, (b, bt)

    # patchify: stride==kernel conv == per-patch linear projection
    patches = (x.reshape(b, c, hp, ph, wp, pw)
               .transpose(0, 2, 4, 1, 3, 5)
               .reshape(b, n, kdim)).astype(jnp.bfloat16)

    kp = prepare_kernel_params(params, n_head)
    kern = functools.partial(fused_vit_kernel, num_heads=n_head)

    b_map = lambda bi, l: (bi, 0, 0)       # per-batch-block (DMA'd once per bi)
    l_map = lambda bi, l: (l, 0, 0)        # per-layer stacked weights
    c_map2 = lambda bi, l: (0, 0)          # constants
    c_map3 = lambda bi, l: (0, 0, 0)

    out = pl.pallas_call(
        kern,
        out_shape=jax.ShapeDtypeStruct((b, 1, num_classes), jnp.float32),
        grid=(b // bt, depth),
        in_specs=[
            pl.BlockSpec((bt, n, kdim), b_map),           # patches
            pl.BlockSpec((1, n, d), c_map3),              # pos embedding
            pl.BlockSpec((kdim, d), c_map2),              # patch proj weight
            pl.BlockSpec((1, d), c_map2),                 # patch proj bias
            pl.BlockSpec((1, d, 3 * d), l_map),           # fused QKV weight
            pl.BlockSpec((1, 1, 3 * d), l_map),           # fused QKV bias
            pl.BlockSpec((1, d, d), l_map),               # attn out proj
            pl.BlockSpec((1, 6, d), l_map),               # packed LN/bias vecs
            pl.BlockSpec((1, d, 4 * d), l_map),           # mlp w1
            pl.BlockSpec((1, 1, 4 * d), l_map),           # mlp b1
            pl.BlockSpec((1, 4 * d, d), l_map),           # mlp w2
            pl.BlockSpec((2, 2 * d), c_map2),             # head LN gamma/beta
            pl.BlockSpec((2 * d, num_classes), c_map2),   # head weight
            pl.BlockSpec((1, num_classes), c_map2),       # head bias
        ],
        out_specs=pl.BlockSpec((bt, 1, num_classes), b_map),
        scratch_shapes=[pltpu.VMEM((bt, n, d), jnp.float32),   # X1 residual
                        pltpu.VMEM((bt, n, d), jnp.float32)],  # X2 residual
        compiler_params=pltpu.CompilerParams(
            dimension_semantics=("parallel", "arbitrary"),
            vmem_limit_bytes=vmem_limit_bytes),
    )(patches, kp["pos"], kp["wp"], kp["bp"],
      kp["wqkv"], kp["bqkv"], kp["wo"], kp["lnv"],
      kp["w1"], kp["b1"], kp["w2"],
      kp["hln"], kp["wh"], kp["bh"])

    return out[:, 0, :]


# ----------------------------------------------------------------------------
if __name__ == "__main__":
    embed_dim = 32
    n_head = 4
    depth = 2
    patch_size = (2, 2)
    image_size = (8, 8)
    num_classes = 10
    batch = 2
    num_patches = (image_size[0] // patch_size[0]) * (image_size[1] // patch_size[1])

    key = jax.random.PRNGKey(0)
    pkey, xkey = jax.random.split(key)
    params = init_params(pkey, embed_dim, depth, patch_size, num_patches, num_classes)
    x = jax.random.normal(xkey, (batch, 3, image_size[0], image_size[1]), jnp.float32)

    out = ivt_forward(
        x, params,
        embed_dim=embed_dim, n_head=n_head,
        patch_size=patch_size, num_classes=num_classes,
    )
    out = jax.block_until_ready(out)

    assert out.shape == (batch, num_classes), out.shape
    assert bool(jnp.all(jnp.isfinite(out)))
    print("KERNEL_OK")
</pallas_src>

<mosaic_0001>
module attributes {stable_mosaic.version = 11 : i64} {
  func.func @fused_vit_kernel(%arg0: i32, %arg1: i32, %arg2: memref<2x16x12xbf16, #tpu.memory_space<vmem>>, %arg3: memref<1x16x32xf32, #tpu.memory_space<vmem>>, %arg4: memref<12x32xbf16, #tpu.memory_space<vmem>>, %arg5: memref<1x32xf32, #tpu.memory_space<vmem>>, %arg6: memref<1x32x96xbf16, #tpu.memory_space<vmem>>, %arg7: memref<1x1x96xf32, #tpu.memory_space<vmem>>, %arg8: memref<1x32x32xbf16, #tpu.memory_space<vmem>>, %arg9: memref<1x6x32xf32, #tpu.memory_space<vmem>>, %arg10: memref<1x32x128xbf16, #tpu.memory_space<vmem>>, %arg11: memref<1x1x128xf32, #tpu.memory_space<vmem>>, %arg12: memref<1x128x32xbf16, #tpu.memory_space<vmem>>, %arg13: memref<2x64xf32, #tpu.memory_space<vmem>>, %arg14: memref<64x10xbf16, #tpu.memory_space<vmem>>, %arg15: memref<1x10xf32, #tpu.memory_space<vmem>>, %arg16: memref<2x1x10xf32, #tpu.memory_space<vmem>>, %arg17: memref<2x16x32xf32, #tpu.memory_space<vmem>>, %arg18: memref<2x16x32xf32, #tpu.memory_space<vmem>>) attributes {dimension_semantics = [#tpu.dimension_semantics<parallel>, #tpu.dimension_semantics<arbitrary>], iteration_bounds = array<i64: 1, 2>, scalar_prefetch = 0 : i64, scratch_operands = 2 : i64, tpu.core_type = #tpu.core_type<tc>, window_params = [{transform_indices = @transform_0, window_bounds = array<i64: 2, 16, 12>}, {pipeline_mode = #tpu.pipeline_mode<synchronous>, transform_indices = @transform_1, window_bounds = array<i64: 1, 16, 32>}, {pipeline_mode = #tpu.pipeline_mode<synchronous>, transform_indices = @transform_2, window_bounds = array<i64: 12, 32>}, {pipeline_mode = #tpu.pipeline_mode<synchronous>, transform_indices = @transform_3, window_bounds = array<i64: 1, 32>}, {transform_indices = @transform_4, window_bounds = array<i64: 1, 32, 96>}, {transform_indices = @transform_5, window_bounds = array<i64: 1, 1, 96>}, {transform_indices = @transform_6, window_bounds = array<i64: 1, 32, 32>}, {transform_indices = @transform_7, window_bounds = array<i64: 1, 6, 32>}, {transform_indices = @transform_8, window_bounds = array<i64: 1, 32, 128>}, {transform_indices = @transform_9, window_bounds = array<i64: 1, 1, 128>}, {transform_indices = @transform_10, window_bounds = array<i64: 1, 128, 32>}, {pipeline_mode = #tpu.pipeline_mode<synchronous>, transform_indices = @transform_11, window_bounds = array<i64: 2, 64>}, {pipeline_mode = #tpu.pipeline_mode<synchronous>, transform_indices = @transform_12, window_bounds = array<i64: 64, 10>}, {pipeline_mode = #tpu.pipeline_mode<synchronous>, transform_indices = @transform_13, window_bounds = array<i64: 1, 10>}, {transform_indices = @transform_14, window_bounds = array<i64: 2, 1, 10>}]} {
    %c0_i32 = arith.constant 0 : i32
    %0 = arith.cmpi eq, %arg1, %c0_i32 : i32
    %1 = arith.extui %0 : i1 to i32
    %c0_i32_0 = arith.constant 0 : i32
    %2 = arith.cmpi ne, %1, %c0_i32_0 : i32
    scf.if %2 {
      %c0_66 = arith.constant 0 : index
      %c0_67 = arith.constant 0 : index
      %c0_68 = arith.constant 0 : index
      %198 = vector.load %arg2[%c0_66, %c0_67, %c0_68] : memref<2x16x12xbf16, #tpu.memory_space<vmem>>, vector<2x16x12xbf16>
      %199 = vector.shape_cast %198 : vector<2x16x12xbf16> to vector<32x12xbf16>
      %c0_69 = arith.constant 0 : index
      %c0_70 = arith.constant 0 : index
      %200 = vector.load %arg4[%c0_69, %c0_70] : memref<12x32xbf16, #tpu.memory_space<vmem>>, vector<12x32xbf16>
      %cst_71 = arith.constant dense<0.000000e+00> : vector<32x32xf32>
      %201 = tpu.matmul %199, %200, %cst_71 {dimension_numbers = #tpu.dot_dimension_numbers<[1], [0], [0], [1], [0, 0, 1, 1], [], []>} : vector<32x12xbf16>, vector<12x32xbf16>, vector<32x32xf32> -> vector<32x32xf32>
      %202 = vector.shape_cast %201 : vector<32x32xf32> to vector<2x16x32xf32>
      %c0_72 = arith.constant 0 : index
      %c0_73 = arith.constant 0 : index
      %203 = vector.load %arg5[%c0_72, %c0_73] : memref<1x32xf32, #tpu.memory_space<vmem>>, vector<1x32xf32>
      %204 = vector.shape_cast %203 : vector<1x32xf32> to vector<1x1x32xf32>
      %205 = vector.broadcast %204 : vector<1x1x32xf32> to vector<2x16x32xf32>
      %206 = arith.addf %202, %205 : vector<2x16x32xf32>
      %c0_74 = arith.constant 0 : index
      %c0_75 = arith.constant 0 : index
      %c0_76 = arith.constant 0 : index
      %207 = vector.load %arg3[%c0_74, %c0_75, %c0_76] : memref<1x16x32xf32, #tpu.memory_space<vmem>>, vector<1x16x32xf32>
      %208 = vector.broadcast %207 : vector<1x16x32xf32> to vector<2x16x32xf32>
      %209 = arith.addf %206, %208 : vector<2x16x32xf32>
      %c0_77 = arith.constant 0 : index
      %c0_78 = arith.constant 0 : index
      %c0_79 = arith.constant 0 : index
      %210 = vector.load %arg17[%c0_77, %c0_78, %c0_79] : memref<2x16x32xf32, #tpu.memory_space<vmem>>, vector<2x16x32xf32>
      tpu.vector_store %arg17[%c0_77, %c0_78, %c0_79], %209 {strides = array<i32>} : memref<2x16x32xf32, #tpu.memory_space<vmem>>, vector<2x16x32xf32>,
      %c0_80 = arith.constant 0 : index
      %c0_81 = arith.constant 0 : index
      %c0_82 = arith.constant 0 : index
      %211 = vector.load %arg18[%c0_80, %c0_81, %c0_82] : memref<2x16x32xf32, #tpu.memory_space<vmem>>, vector<2x16x32xf32>
      tpu.vector_store %arg18[%c0_80, %c0_81, %c0_82], %209 {strides = array<i32>} : memref<2x16x32xf32, #tpu.memory_space<vmem>>, vector<2x16x32xf32>,
    } else {
    }
    %c0 = arith.constant 0 : index
    %c0_1 = arith.constant 0 : index
    %c0_2 = arith.constant 0 : index
    %3 = vector.load %arg17[%c0, %c0_1, %c0_2] : memref<2x16x32xf32, #tpu.memory_space<vmem>>, vector<2x16x32xf32>
    %c0_3 = arith.constant 0 : index
    %c0_4 = arith.constant 0 : index
    %c0_5 = arith.constant 0 : index
    %4 = vector.load %arg18[%c0_3, %c0_4, %c0_5] : memref<2x16x32xf32, #tpu.memory_space<vmem>>, vector<2x16x32xf32>
    %c0_6 = arith.constant 0 : index
    %c0_7 = arith.constant 0 : index
    %c0_8 = arith.constant 0 : index
    %5 = vector.load %arg9[%c0_6, %c0_7, %c0_8] : memref<1x6x32xf32, #tpu.memory_space<vmem>>, vector<1x6x32xf32>
    %6 = vector.shape_cast %5 : vector<1x6x32xf32> to vector<6x32xf32>
    %7 = vector.extract_strided_slice %6 {offsets = [0, 0], sizes = [1, 32], strides = [1, 1]} : vector<6x32xf32> to vector<1x32xf32>
    %8 = vector.extract_strided_slice %6 {offsets = [1, 0], sizes = [1, 32], strides = [1, 1]} : vector<6x32xf32> to vector<1x32xf32>
    %9 = vector.extract_strided_slice %6 {offsets = [2, 0], sizes = [1, 32], strides = [1, 1]} : vector<6x32xf32> to vector<1x32xf32>
    %10 = vector.extract_strided_slice %6 {offsets = [3, 0], sizes = [1, 32], strides = [1, 1]} : vector<6x32xf32> to vector<1x32xf32>
    %11 = vector.extract_strided_slice %6 {offsets = [4, 0], sizes = [1, 32], strides = [1, 1]} : vector<6x32xf32> to vector<1x32xf32>
    %12 = vector.extract_strided_slice %6 {offsets = [5, 0], sizes = [1, 32], strides = [1, 1]} : vector<6x32xf32> to vector<1x32xf32>
    %cst = arith.constant dense<0.000000e+00> : vector<2x16xf32>
    %13 = vector.multi_reduction <add>, %4, %cst [2] : vector<2x16x32xf32> to vector<2x16xf32>
    %14 = vector.shape_cast %13 : vector<2x16xf32> to vector<2x16x1xf32>
    %cst_9 = arith.constant 3.200000e+01 : f32
    %15 = vector.broadcast %cst_9 : f32 to vector<2x16x1xf32>
    %16 = arith.divf %14, %15 : vector<2x16x1xf32>
    %17 = vector.broadcast %16 : vector<2x16x1xf32> to vector<2x16x32xf32>
    %18 = arith.subf %4, %17 : vector<2x16x32xf32>
    %19 = arith.mulf %18, %18 : vector<2x16x32xf32>
    %cst_10 = arith.constant dense<0.000000e+00> : vector<2x16xf32>
    %20 = vector.multi_reduction <add>, %19, %cst_10 [2] : vector<2x16x32xf32> to vector<2x16xf32>
    %21 = vector.shape_cast %20 : vector<2x16xf32> to vector<2x16x1xf32>
    %cst_11 = arith.constant 3.200000e+01 : f32
    %22 = vector.broadcast %cst_11 : f32 to vector<2x16x1xf32>
    %23 = arith.divf %21, %22 : vector<2x16x1xf32>
    %24 = vector.broadcast %16 : vector<2x16x1xf32> to vector<2x16x32xf32>
    %25 = arith.subf %4, %24 : vector<2x16x32xf32>
    %cst_12 = arith.constant 9.99999997E-7 : f32
    %26 = vector.broadcast %cst_12 : f32 to vector<2x16x1xf32>
    %27 = arith.addf %23, %26 : vector<2x16x1xf32>
    %28 = math.rsqrt %27 : vector<2x16x1xf32>
    %29 = vector.broadcast %28 : vector<2x16x1xf32> to vector<2x16x32xf32>
    %30 = arith.mulf %25, %29 : vector<2x16x32xf32>
    %31 = vector.shape_cast %7 : vector<1x32xf32> to vector<1x1x32xf32>
    %32 = vector.broadcast %31 : vector<1x1x32xf32> to vector<2x16x32xf32>
    %33 = arith.mulf %30, %32 : vector<2x16x32xf32>
    %34 = vector.shape_cast %8 : vector<1x32xf32> to vector<1x1x32xf32>
    %35 = vector.broadcast %34 : vector<1x1x32xf32> to vector<2x16x32xf32>
    %36 = arith.addf %33, %35 : vector<2x16x32xf32>
    %37 = vector.shape_cast %36 : vector<2x16x32xf32> to vector<32x32xf32>
    %38 = arith.truncf %37 : vector<32x32xf32> to vector<32x32xbf16>
    %c0_13 = arith.constant 0 : index
    %c0_14 = arith.constant 0 : index
    %c0_15 = arith.constant 0 : index
    %39 = vector.load %arg6[%c0_13, %c0_14, %c0_15] : memref<1x32x96xbf16, #tpu.memory_space<vmem>>, vector<1x32x96xbf16>
    %40 = vector.shape_cast %39 : vector<1x32x96xbf16> to vector<32x96xbf16>
    %cst_16 = arith.constant dense<0.000000e+00> : vector<32x96xf32>
    %41 = tpu.matmul %38, %40, %cst_16 {dimension_numbers = #tpu.dot_dimension_numbers<[1], [0], [0], [1], [0, 0, 1, 1], [], []>} : vector<32x32xbf16>, vector<32x96xbf16>, vector<32x96xf32> -> vector<32x96xf32>
    %c0_17 = arith.constant 0 : index
    %c0_18 = arith.constant 0 : index
    %c0_19 = arith.constant 0 : index
    %42 = vector.load %arg7[%c0_17, %c0_18, %c0_19] : memref<1x1x96xf32, #tpu.memory_space<vmem>>, vector<1x1x96xf32>
    %43 = vector.shape_cast %42 : vector<1x1x96xf32> to vector<1x96xf32>
    %44 = vector.broadcast %43 : vector<1x96xf32> to vector<32x96xf32>
    %45 = arith.addf %41, %44 : vector<32x96xf32>
    %46 = vector.extract_strided_slice %45 {offsets = [0, 0], sizes = [32, 8], strides = [1, 1]} : vector<32x96xf32> to vector<32x8xf32>
    %47 = arith.truncf %46 : vector<32x8xf32> to vector<32x8xbf16>
    %48 = vector.shape_cast %47 : vector<32x8xbf16> to vector<2x16x8xbf16>
    %49 = vector.extract_strided_slice %45 {offsets = [0, 32], sizes = [32, 8], strides = [1, 1]} : vector<32x96xf32> to vector<32x8xf32>
    %50 = arith.truncf %49 : vector<32x8xf32> to vector<32x8xbf16>
    %51 = vector.shape_cast %50 : vector<32x8xbf16> to vector<2x16x8xbf16>
    %52 = vector.extract_strided_slice %45 {offsets = [0, 64], sizes = [32, 8], strides = [1, 1]} : vector<32x96xf32> to vector<32x8xf32>
    %53 = arith.truncf %52 : vector<32x8xf32> to vector<32x8xbf16>
    %54 = vector.shape_cast %53 : vector<32x8xbf16> to vector<2x16x8xbf16>
    "tpu.trace_start"() <{level = 10 : i32, message = "bnf,bmf->bnm"}> : () -> ()
    %cst_20 = arith.constant dense<0.000000e+00> : vector<2x16x16xf32>
    %55 = tpu.matmul %48, %51, %cst_20 {dimension_numbers = #tpu.dot_dimension_numbers<[2], [2], [1], [1], [0, 0, 0, 1, 1, 1], [0], [0]>} : vector<2x16x8xbf16>, vector<2x16x8xbf16>, vector<2x16x16xf32> -> vector<2x16x16xf32>
    "tpu.trace_stop"() : () -> ()
    %cst_21 = arith.constant dense<0xFF800000> : vector<2x16xf32>
    %56 = vector.multi_reduction <maximumf>, %55, %cst_21 [2] : vector<2x16x16xf32> to vector<2x16xf32>
    %57 = vector.shape_cast %56 : vector<2x16xf32> to vector<2x16x1xf32>
    %58 = vector.broadcast %57 : vector<2x16x1xf32> to vector<2x16x16xf32>
    %59 = arith.subf %55, %58 : vector<2x16x16xf32>
    %60 = math.exp %59 : vector<2x16x16xf32>
    %cst_22 = arith.constant dense<0.000000e+00> : vector<2x16xf32>
    %61 = vector.multi_reduction <add>, %60, %cst_22 [2] : vector<2x16x16xf32> to vector<2x16xf32>
    %62 = vector.shape_cast %61 : vector<2x16xf32> to vector<2x16x1xf32>
    %63 = tpu.reciprocal %62 {approx = true} : vector<2x16x1xf32> -> vector<2x16x1xf32>
    %64 = vector.broadcast %63 : vector<2x16x1xf32> to vector<2x16x16xf32>
    %65 = arith.mulf %60, %64 : vector<2x16x16xf32>
    %66 = arith.truncf %65 : vector<2x16x16xf32> to vector<2x16x16xbf16>
    "tpu.trace_start"() <{level = 10 : i32, message = "bnm,bmf->bnf"}> : () -> ()
    %cst_23 = arith.constant dense<0.000000e+00> : vector<2x16x8xf32>
    %67 = tpu.matmul %66, %54, %cst_23 {dimension_numbers = #tpu.dot_dimension_numbers<[2], [1], [1], [2], [0, 0, 0, 1, 1, 2], [0], [0]>} : vector<2x16x16xbf16>, vector<2x16x8xbf16>, vector<2x16x8xf32> -> vector<2x16x8xf32>
    "tpu.trace_stop"() : () -> ()
    %68 = vector.extract_strided_slice %45 {offsets = [0, 8], sizes = [32, 8], strides = [1, 1]} : vector<32x96xf32> to vector<32x8xf32>
    %69 = arith.truncf %68 : vector<32x8xf32> to vector<32x8xbf16>
    %70 = vector.shape_cast %69 : vector<32x8xbf16> to vector<2x16x8xbf16>
    %71 = vector.extract_strided_slice %45 {offsets = [0, 40], sizes = [32, 8], strides = [1, 1]} : vector<32x96xf32> to vector<32x8xf32>
    %72 = arith.truncf %71 : vector<32x8xf32> to vector<32x8xbf16>
    %73 = vector.shape_cast %72 : vector<32x8xbf16> to vector<2x16x8xbf16>
    %74 = vector.extract_strided_slice %45 {offsets = [0, 72], sizes = [32, 8], strides = [1, 1]} : vector<32x96xf32> to vector<32x8xf32>
    %75 = arith.truncf %74 : vector<32x8xf32> to vector<32x8xbf16>
    %76 = vector.shape_cast %75 : vector<32x8xbf16> to vector<2x16x8xbf16>
    "tpu.trace_start"() <{level = 10 : i32, message = "bnf,bmf->bnm"}> : () -> ()
    %cst_24 = arith.constant dense<0.000000e+00> : vector<2x16x16xf32>
    %77 = tpu.matmul %70, %73, %cst_24 {dimension_numbers = #tpu.dot_dimension_numbers<[2], [2], [1], [1], [0, 0, 0, 1, 1, 1], [0], [0]>} : vector<2x16x8xbf16>, vector<2x16x8xbf16>, vector<2x16x16xf32> -> vector<2x16x16xf32>
    "tpu.trace_stop"() : () -> ()
    %cst_25 = arith.constant dense<0xFF800000> : vector<2x16xf32>
    %78 = vector.multi_reduction <maximumf>, %77, %cst_25 [2] : vector<2x16x16xf32> to vector<2x16xf32>
    %79 = vector.shape_cast %78 : vector<2x16xf32> to vector<2x16x1xf32>
    %80 = vector.broadcast %79 : vector<2x16x1xf32> to vector<2x16x16xf32>
    %81 = arith.subf %77, %80 : vector<2x16x16xf32>
    %82 = math.exp %81 : vector<2x16x16xf32>
    %cst_26 = arith.constant dense<0.000000e+00> : vector<2x16xf32>
    %83 = vector.multi_reduction <add>, %82, %cst_26 [2] : vector<2x16x16xf32> to vector<2x16xf32>
    %84 = vector.shape_cast %83 : vector<2x16xf32> to vector<2x16x1xf32>
    %85 = tpu.reciprocal %84 {approx = true} : vector<2x16x1xf32> -> vector<2x16x1xf32>
    %86 = vector.broadcast %85 : vector<2x16x1xf32> to vector<2x16x16xf32>
    %87 = arith.mulf %82, %86 : vector<2x16x16xf32>
    %88 = arith.truncf %87 : vector<2x16x16xf32> to vector<2x16x16xbf16>
    "tpu.trace_start"() <{level = 10 : i32, message = "bnm,bmf->bnf"}> : () -> ()
    %cst_27 = arith.constant dense<0.000000e+00> : vector<2x16x8xf32>
    %89 = tpu.matmul %88, %76, %cst_27 {dimension_numbers = #tpu.dot_dimension_numbers<[2], [1], [1], [2], [0, 0, 0, 1, 1, 2], [0], [0]>} : vector<2x16x16xbf16>, vector<2x16x8xbf16>, vector<2x16x8xf32> -> vector<2x16x8xf32>
    "tpu.trace_stop"() : () -> ()
    %90 = vector.extract_strided_slice %45 {offsets = [0, 16], sizes = [32, 8], strides = [1, 1]} : vector<32x96xf32> to vector<32x8xf32>
    %91 = arith.truncf %90 : vector<32x8xf32> to vector<32x8xbf16>
    %92 = vector.shape_cast %91 : vector<32x8xbf16> to vector<2x16x8xbf16>
    %93 = vector.extract_strided_slice %45 {offsets = [0, 48], sizes = [32, 8], strides = [1, 1]} : vector<32x96xf32> to vector<32x8xf32>
    %94 = arith.truncf %93 : vector<32x8xf32> to vector<32x8xbf16>
    %95 = vector.shape_cast %94 : vector<32x8xbf16> to vector<2x16x8xbf16>
    %96 = vector.extract_strided_slice %45 {offsets = [0, 80], sizes = [32, 8], strides = [1, 1]} : vector<32x96xf32> to vector<32x8xf32>
    %97 = arith.truncf %96 : vector<32x8xf32> to vector<32x8xbf16>
    %98 = vector.shape_cast %97 : vector<32x8xbf16> to vector<2x16x8xbf16>
    "tpu.trace_start"() <{level = 10 : i32, message = "bnf,bmf->bnm"}> : () -> ()
    %cst_28 = arith.constant dense<0.000000e+00> : vector<2x16x16xf32>
    %99 = tpu.matmul %92, %95, %cst_28 {dimension_numbers = #tpu.dot_dimension_numbers<[2], [2], [1], [1], [0, 0, 0, 1, 1, 1], [0], [0]>} : vector<2x16x8xbf16>, vector<2x16x8xbf16>, vector<2x16x16xf32> -> vector<2x16x16xf32>
    "tpu.trace_stop"() : () -> ()
    %cst_29 = arith.constant dense<0xFF800000> : vector<2x16xf32>
    %100 = vector.multi_reduction <maximumf>, %99, %cst_29 [2] : vector<2x16x16xf32> to vector<2x16xf32>
    %101 = vector.shape_cast %100 : vector<2x16xf32> to vector<2x16x1xf32>
    %102 = vector.broadcast %101 : vector<2x16x1xf32> to vector<2x16x16xf32>
    %103 = arith.subf %99, %102 : vector<2x16x16xf32>
    %104 = math.exp %103 : vector<2x16x16xf32>
    %cst_30 = arith.constant dense<0.000000e+00> : vector<2x16xf32>
    %105 = vector.multi_reduction <add>, %104, %cst_30 [2] : vector<2x16x16xf32> to vector<2x16xf32>
    %106 = vector.shape_cast %105 : vector<2x16xf32> to vector<2x16x1xf32>
    %107 = tpu.reciprocal %106 {approx = true} : vector<2x16x1xf32> -> vector<2x16x1xf32>
    %108 = vector.broadcast %107 : vector<2x16x1xf32> to vector<2x16x16xf32>
    %109 = arith.mulf %104, %108 : vector<2x16x16xf32>
    %110 = arith.truncf %109 : vector<2x16x16xf32> to vector<2x16x16xbf16>
    "tpu.trace_start"() <{level = 10 : i32, message = "bnm,bmf->bnf"}> : () -> ()
    %cst_31 = arith.constant dense<0.000000e+00> : vector<2x16x8xf32>
    %111 = tpu.matmul %110, %98, %cst_31 {dimension_numbers = #tpu.dot_dimension_numbers<[2], [1], [1], [2], [0, 0, 0, 1, 1, 2], [0], [0]>} : vector<2x16x16xbf16>, vector<2x16x8xbf16>, vector<2x16x8xf32> -> vector<2x16x8xf32>
    "tpu.trace_stop"() : () -> ()
    %112 = vector.extract_strided_slice %45 {offsets = [0, 24], sizes = [32, 8], strides = [1, 1]} : vector<32x96xf32> to vector<32x8xf32>
    %113 = arith.truncf %112 : vector<32x8xf32> to vector<32x8xbf16>
    %114 = vector.shape_cast %113 : vector<32x8xbf16> to vector<2x16x8xbf16>
    %115 = vector.extract_strided_slice %45 {offsets = [0, 56], sizes = [32, 8], strides = [1, 1]} : vector<32x96xf32> to vector<32x8xf32>
    %116 = arith.truncf %115 : vector<32x8xf32> to vector<32x8xbf16>
    %117 = vector.shape_cast %116 : vector<32x8xbf16> to vector<2x16x8xbf16>
    %118 = vector.extract_strided_slice %45 {offsets = [0, 88], sizes = [32, 8], strides = [1, 1]} : vector<32x96xf32> to vector<32x8xf32>
    %119 = arith.truncf %118 : vector<32x8xf32> to vector<32x8xbf16>
    %120 = vector.shape_cast %119 : vector<32x8xbf16> to vector<2x16x8xbf16>
    "tpu.trace_start"() <{level = 10 : i32, message = "bnf,bmf->bnm"}> : () -> ()
    %cst_32 = arith.constant dense<0.000000e+00> : vector<2x16x16xf32>
    %121 = tpu.matmul %114, %117, %cst_32 {dimension_numbers = #tpu.dot_dimension_numbers<[2], [2], [1], [1], [0, 0, 0, 1, 1, 1], [0], [0]>} : vector<2x16x8xbf16>, vector<2x16x8xbf16>, vector<2x16x16xf32> -> vector<2x16x16xf32>
    "tpu.trace_stop"() : () -> ()
    %cst_33 = arith.constant dense<0xFF800000> : vector<2x16xf32>
    %122 = vector.multi_reduction <maximumf>, %121, %cst_33 [2] : vector<2x16x16xf32> to vector<2x16xf32>
    %123 = vector.shape_cast %122 : vector<2x16xf32> to vector<2x16x1xf32>
    %124 = vector.broadcast %123 : vector<2x16x1xf32> to vector<2x16x16xf32>
    %125 = arith.subf %121, %124 : vector<2x16x16xf32>
    %126 = math.exp %125 : vector<2x16x16xf32>
    %cst_34 = arith.constant dense<0.000000e+00> : vector<2x16xf32>
    %127 = vector.multi_reduction <add>, %126, %cst_34 [2] : vector<2x16x16xf32> to vector<2x16xf32>
    %128 = vector.shape_cast %127 : vector<2x16xf32> to vector<2x16x1xf32>
    %129 = tpu.reciprocal %128 {approx = true} : vector<2x16x1xf32> -> vector<2x16x1xf32>
    %130 = vector.broadcast %129 : vector<2x16x1xf32> to vector<2x16x16xf32>
    %131 = arith.mulf %126, %130 : vector<2x16x16xf32>
    %132 = arith.truncf %131 : vector<2x16x16xf32> to vector<2x16x16xbf16>
    "tpu.trace_start"() <{level = 10 : i32, message = "bnm,bmf->bnf"}> : () -> ()
    %cst_35 = arith.constant dense<0.000000e+00> : vector<2x16x8xf32>
    %133 = tpu.matmul %132, %120, %cst_35 {dimension_numbers = #tpu.dot_dimension_numbers<[2], [1], [1], [2], [0, 0, 0, 1, 1, 2], [0], [0]>} : vector<2x16x16xbf16>, vector<2x16x8xbf16>, vector<2x16x8xf32> -> vector<2x16x8xf32>
    "tpu.trace_stop"() : () -> ()
    %134 = tpu.concatenate %67, %89, %111, %133 in 2 : vector<2x16x8xf32>, vector<2x16x8xf32>, vector<2x16x8xf32>, vector<2x16x8xf32> -> vector<2x16x32xf32>
    %135 = vector.shape_cast %134 : vector<2x16x32xf32> to vector<32x32xf32>
    %136 = arith.truncf %135 : vector<32x32xf32> to vector<32x32xbf16>
    %c0_36 = arith.constant 0 : index
    %c0_37 = arith.constant 0 : index
    %c0_38 = arith.constant 0 : index
    %137 = vector.load %arg8[%c0_36, %c0_37, %c0_38] : memref<1x32x32xbf16, #tpu.memory_space<vmem>>, vector<1x32x32xbf16>
    %138 = vector.shape_cast %137 : vector<1x32x32xbf16> to vector<32x32xbf16>
    %cst_39 = arith.constant dense<0.000000e+00> : vector<32x32xf32>
    %139 = tpu.matmul %136, %138, %cst_39 {dimension_numbers = #tpu.dot_dimension_numbers<[1], [0], [0], [1], [0, 0, 1, 1], [], []>} : vector<32x32xbf16>, vector<32x32xbf16>, vector<32x32xf32> -> vector<32x32xf32>
    %140 = vector.broadcast %11 : vector<1x32xf32> to vector<32x32xf32>
    %141 = arith.addf %139, %140 : vector<32x32xf32>
    %142 = vector.shape_cast %141 : vector<32x32xf32> to vector<2x16x32xf32>
    %143 = arith.addf %3, %142 : vector<2x16x32xf32>
    %cst_40 = arith.constant dense<0.000000e+00> : vector<2x16xf32>
    %144 = vector.multi_reduction <add>, %143, %cst_40 [2] : vector<2x16x32xf32> to vector<2x16xf32>
    %145 = vector.shape_cast %144 : vector<2x16xf32> to vector<2x16x1xf32>
    %cst_41 = arith.constant 3.200000e+01 : f32
    %146 = vector.broadcast %cst_41 : f32 to vector<2x16x1xf32>
    %147 = arith.divf %145, %146 : vector<2x16x1xf32>
    %148 = vector.broadcast %147 : vector<2x16x1xf32> to vector<2x16x32xf32>
    %149 = arith.subf %143, %148 : vector<2x16x32xf32>
    %150 = arith.mulf %149, %149 : vector<2x16x32xf32>
    %cst_42 = arith.constant dense<0.000000e+00> : vector<2x16xf32>
    %151 = vector.multi_reduction <add>, %150, %cst_42 [2] : vector<2x16x32xf32> to vector<2x16xf32>
    %152 = vector.shape_cast %151 : vector<2x16xf32> to vector<2x16x1xf32>
    %cst_43 = arith.constant 3.200000e+01 : f32
    %153 = vector.broadcast %cst_43 : f32 to vector<2x16x1xf32>
    %154 = arith.divf %152, %153 : vector<2x16x1xf32>
    %155 = vector.broadcast %147 : vector<2x16x1xf32> to vector<2x16x32xf32>
    %156 = arith.subf %143, %155 : vector<2x16x32xf32>
    %cst_44 = arith.constant 9.99999974E-6 : f32
    %157 = vector.broadcast %cst_44 : f32 to vector<2x16x1xf32>
    %158 = arith.addf %154, %157 : vector<2x16x1xf32>
    %159 = math.rsqrt %158 : vector<2x16x1xf32>
    %160 = vector.broadcast %159 : vector<2x16x1xf32> to vector<2x16x32xf32>
    %161 = arith.mulf %156, %160 : vector<2x16x32xf32>
    %162 = vector.shape_cast %9 : vector<1x32xf32> to vector<1x1x32xf32>
    %163 = vector.broadcast %162 : vector<1x1x32xf32> to vector<2x16x32xf32>
    %164 = arith.mulf %161, %163 : vector<2x16x32xf32>
    %165 = vector.shape_cast %10 : vector<1x32xf32> to vector<1x1x32xf32>
    %166 = vector.broadcast %165 : vector<1x1x32xf32> to vector<2x16x32xf32>
    %167 = arith.addf %164, %166 : vector<2x16x32xf32>
    %168 = vector.shape_cast %167 : vector<2x16x32xf32> to vector<32x32xf32>
    %169 = arith.truncf %168 : vector<32x32xf32> to vector<32x32xbf16>
    %c0_45 = arith.constant 0 : index
    %c0_46 = arith.constant 0 : index
    %c0_47 = arith.constant 0 : index
    %170 = vector.load %arg10[%c0_45, %c0_46, %c0_47] : memref<1x32x128xbf16, #tpu.memory_space<vmem>>, vector<1x32x128xbf16>
    %171 = vector.shape_cast %170 : vector<1x32x128xbf16> to vector<32x128xbf16>
    %cst_48 = arith.constant dense<0.000000e+00> : vector<32x128xf32>
    %172 = tpu.matmul %169, %171, %cst_48 {dimension_numbers = #tpu.dot_dimension_numbers<[1], [0], [0], [1], [0, 0, 1, 1], [], []>} : vector<32x32xbf16>, vector<32x128xbf16>, vector<32x128xf32> -> vector<32x128xf32>
    %c0_49 = arith.constant 0 : index
    %c0_50 = arith.constant 0 : index
    %c0_51 = arith.constant 0 : index
    %173 = vector.load %arg11[%c0_49, %c0_50, %c0_51] : memref<1x1x128xf32, #tpu.memory_space<vmem>>, vector<1x1x128xf32>
    %174 = vector.shape_cast %173 : vector<1x1x128xf32> to vector<1x128xf32>
    %175 = vector.broadcast %174 : vector<1x128xf32> to vector<32x128xf32>
    %176 = arith.addf %172, %175 : vector<32x128xf32>
    %cst_52 = arith.constant 5.000000e-01 : f32
    %177 = vector.broadcast %cst_52 : f32 to vector<32x128xf32>
    %178 = arith.mulf %177, %176 : vector<32x128xf32>
    %cst_53 = arith.constant 0.707106769 : f32
    %179 = vector.broadcast %cst_53 : f32 to vector<32x128xf32>
    %180 = arith.mulf %176, %179 : vector<32x128xf32>
    %181 = math.erf %180 : vector<32x128xf32>
    %cst_54 = arith.constant 1.000000e+00 : f32
    %182 = vector.broadcast %cst_54 : f32 to vector<32x128xf32>
    %183 = arith.addf %182, %181 : vector<32x128xf32>
    %184 = arith.mulf %178, %183 : vector<32x128xf32>
    %185 = arith.truncf %184 : vector<32x128xf32> to vector<32x128xbf16>
    %c0_55 = arith.constant 0 : index
    %c0_56 = arith.constant 0 : index
    %c0_57 = arith.constant 0 : index
    %186 = vector.load %arg12[%c0_55, %c0_56, %c0_57] : memref<1x128x32xbf16, #tpu.memory_space<vmem>>, vector<1x128x32xbf16>
    %187 = vector.shape_cast %186 : vector<1x128x32xbf16> to vector<128x32xbf16>
    %cst_58 = arith.constant dense<0.000000e+00> : vector<32x32xf32>
    %188 = tpu.matmul %185, %187, %cst_58 {dimension_numbers = #tpu.dot_dimension_numbers<[1], [0], [0], [1], [0, 0, 1, 1], [], []>} : vector<32x128xbf16>, vector<128x32xbf16>, vector<32x32xf32> -> vector<32x32xf32>
    %189 = vector.broadcast %12 : vector<1x32xf32> to vector<32x32xf32>
    %190 = arith.addf %188, %189 : vector<32x32xf32>
    %191 = vector.shape_cast %190 : vector<32x32xf32> to vector<2x16x32xf32>
    %192 = arith.addf %4, %191 : vector<2x16x32xf32>
    %c0_59 = arith.constant 0 : index
    %c0_60 = arith.constant 0 : index
    %c0_61 = arith.constant 0 : index
    %193 = vector.load %arg17[%c0_59, %c0_60, %c0_61] : memref<2x16x32xf32, #tpu.memory_space<vmem>>, vector<2x16x32xf32>
    tpu.vector_store %arg17[%c0_59, %c0_60, %c0_61], %143 {strides = array<i32>} : memref<2x16x32xf32, #tpu.memory_space<vmem>>, vector<2x16x32xf32>,
    %c0_62 = arith.constant 0 : index
    %c0_63 = arith.constant 0 : index
    %c0_64 = arith.constant 0 : index
    %194 = vector.load %arg18[%c0_62, %c0_63, %c0_64] : memref<2x16x32xf32, #tpu.memory_space<vmem>>, vector<2x16x32xf32>
    tpu.vector_store %arg18[%c0_62, %c0_63, %c0_64], %192 {strides = array<i32>} : memref<2x16x32xf32, #tpu.memory_space<vmem>>, vector<2x16x32xf32>,
    %c1_i32 = arith.constant 1 : i32
    %195 = arith.cmpi eq, %arg1, %c1_i32 : i32
    %196 = arith.extui %195 : i1 to i32
    %c0_i32_65 = arith.constant 0 : i32
    %197 = arith.cmpi ne, %196, %c0_i32_65 : i32
    scf.if %197 {
      %cst_66 = arith.constant dense<0.000000e+00> : vector<2x32xf32>
      %198 = vector.multi_reduction <add>, %143, %cst_66 [1] : vector<2x16x32xf32> to vector<2x32xf32>
      %cst_67 = arith.constant 1.600000e+01 : f32
      %199 = vector.broadcast %cst_67 : f32 to vector<2x32xf32>
      %200 = arith.divf %198, %199 : vector<2x32xf32>
      %cst_68 = arith.constant dense<0.000000e+00> : vector<2x32xf32>
      %201 = vector.multi_reduction <add>, %192, %cst_68 [1] : vector<2x16x32xf32> to vector<2x32xf32>
      %cst_69 = arith.constant 1.600000e+01 : f32
      %202 = vector.broadcast %cst_69 : f32 to vector<2x32xf32>
      %203 = arith.divf %201, %202 : vector<2x32xf32>
      %204 = tpu.concatenate %200, %203 in 1 : vector<2x32xf32>, vector<2x32xf32> -> vector<2x64xf32>
      %c0_70 = arith.constant 0 : index
      %c0_71 = arith.constant 0 : index
      %205 = vector.load %arg13[%c0_70, %c0_71] : memref<2x64xf32, #tpu.memory_space<vmem>>, vector<1x64xf32>
      %c1 = arith.constant 1 : index
      %c0_72 = arith.constant 0 : index
      %206 = vector.load %arg13[%c1, %c0_72] : memref<2x64xf32, #tpu.memory_space<vmem>>, vector<1x64xf32>
      %cst_73 = arith.constant dense<0.000000e+00> : vector<2xf32>
      %207 = vector.multi_reduction <add>, %204, %cst_73 [1] : vector<2x64xf32> to vector<2xf32>
      %208 = vector.shape_cast %207 : vector<2xf32> to vector<2x1xf32>
      %cst_74 = arith.constant 6.400000e+01 : f32
      %209 = vector.broadcast %cst_74 : f32 to vector<2x1xf32>
      %210 = arith.divf %208, %209 : vector<2x1xf32>
      %211 = vector.broadcast %210 : vector<2x1xf32> to vector<2x64xf32>
      %212 = arith.subf %204, %211 : vector<2x64xf32>
      %213 = arith.mulf %212, %212 : vector<2x64xf32>
      %cst_75 = arith.constant dense<0.000000e+00> : vector<2xf32>
      %214 = vector.multi_reduction <add>, %213, %cst_75 [1] : vector<2x64xf32> to vector<2xf32>
      %215 = vector.shape_cast %214 : vector<2xf32> to vector<2x1xf32>
      %cst_76 = arith.constant 6.400000e+01 : f32
      %216 = vector.broadcast %cst_76 : f32 to vector<2x1xf32>
      %217 = arith.divf %215, %216 : vector<2x1xf32>
      %218 = vector.broadcast %210 : vector<2x1xf32> to vector<2x64xf32>
      %219 = arith.subf %204, %218 : vector<2x64xf32>
      %cst_77 = arith.constant 9.99999974E-6 : f32
      %220 = vector.broadcast %cst_77 : f32 to vector<2x1xf32>
      %221 = arith.addf %217, %220 : vector<2x1xf32>
      %222 = math.rsqrt %221 : vector<2x1xf32>
      %223 = vector.broadcast %222 : vector<2x1xf32> to vector<2x64xf32>
      %224 = arith.mulf %219, %223 : vector<2x64xf32>
      %225 = vector.broadcast %205 : vector<1x64xf32> to vector<2x64xf32>
      %226 = arith.mulf %224, %225 : vector<2x64xf32>
      %227 = vector.broadcast %206 : vector<1x64xf32> to vector<2x64xf32>
      %228 = arith.addf %226, %227 : vector<2x64xf32>
      %229 = arith.truncf %228 : vector<2x64xf32> to vector<2x64xbf16>
      %c0_78 = arith.constant 0 : index
      %c0_79 = arith.constant 0 : index
      %230 = vector.load %arg14[%c0_78, %c0_79] : memref<64x10xbf16, #tpu.memory_space<vmem>>, vector<64x10xbf16>
      %cst_80 = arith.constant dense<0.000000e+00> : vector<2x10xf32>
      %231 = tpu.matmul %229, %230, %cst_80 {dimension_numbers = #tpu.dot_dimension_numbers<[1], [0], [0], [1], [0, 0, 1, 1], [], []>} : vector<2x64xbf16>, vector<64x10xbf16>, vector<2x10xf32> -> vector<2x10xf32>
      %c0_81 = arith.constant 0 : index
      %c0_82 = arith.constant 0 : index
      %232 = vector.load %arg15[%c0_81, %c0_82] : memref<1x10xf32, #tpu.memory_space<vmem>>, vector<1x10xf32>
      %233 = vector.broadcast %232 : vector<1x10xf32> to vector<2x10xf32>
      %234 = arith.addf %231, %233 : vector<2x10xf32>
      %c0_83 = arith.constant 0 : index
      %c0_84 = arith.constant 0 : index
      %c0_85 = arith.constant 0 : index
      %235 = vector.load %arg16[%c0_83, %c0_84, %c0_85] : memref<2x1x10xf32, #tpu.memory_space<vmem>>, vector<2x1x10xf32>
      %236 = vector.shape_cast %235 : vector<2x1x10xf32> to vector<2x10xf32>
      %237 = vector.shape_cast %234 : vector<2x10xf32> to vector<2x1x10xf32>
      tpu.vector_store %arg16[%c0_83, %c0_84, %c0_85], %237 {strides = array<i32>} : memref<2x1x10xf32, #tpu.memory_space<vmem>>, vector<2x1x10xf32>,
    } else {
    }
    return
  }
  func.func @transform_0(%arg0: i32, %arg1: i32) -> (i32, i32, i32) {
    %c0_i32 = arith.constant 0 : i32
    %c0_i32_0 = arith.constant 0 : i32
    %c0_i32_1 = arith.constant 0 : i32
    return %arg0, %c0_i32, %c0_i32_0 : i32, i32, i32
  }
  func.func @transform_1(%arg0: i32, %arg1: i32) -> (i32, i32, i32) {
    %c0_i32 = arith.constant 0 : i32
    %c0_i32_0 = arith.constant 0 : i32
    %c0_i32_1 = arith.constant 0 : i32
    %c0_i32_2 = arith.constant 0 : i32
    return %c0_i32, %c0_i32_0, %c0_i32_1 : i32, i32, i32
  }
  func.func @transform_2(%arg0: i32, %arg1: i32) -> (i32, i32) {
    %c0_i32 = arith.constant 0 : i32
    %c0_i32_0 = arith.constant 0 : i32
    %c0_i32_1 = arith.constant 0 : i32
    return %c0_i32, %c0_i32_0 : i32, i32
  }
  func.func @transform_3(%arg0: i32, %arg1: i32) -> (i32, i32) {
    %c0_i32 = arith.constant 0 : i32
    %c0_i32_0 = arith.constant 0 : i32
    %c0_i32_1 = arith.constant 0 : i32
    return %c0_i32, %c0_i32_0 : i32, i32
  }
  func.func @transform_4(%arg0: i32, %arg1: i32) -> (i32, i32, i32) {
    %c0_i32 = arith.constant 0 : i32
    %c0_i32_0 = arith.constant 0 : i32
    %c0_i32_1 = arith.constant 0 : i32
    return %arg1, %c0_i32, %c0_i32_0 : i32, i32, i32
  }
  func.func @transform_5(%arg0: i32, %arg1: i32) -> (i32, i32, i32) {
    %c0_i32 = arith.constant 0 : i32
    %c0_i32_0 = arith.constant 0 : i32
    %c0_i32_1 = arith.constant 0 : i32
    return %arg1, %c0_i32, %c0_i32_0 : i32, i32, i32
  }
  func.func @transform_6(%arg0: i32, %arg1: i32) -> (i32, i32, i32) {
    %c0_i32 = arith.constant 0 : i32
    %c0_i32_0 = arith.constant 0 : i32
    %c0_i32_1 = arith.constant 0 : i32
    return %arg1, %c0_i32, %c0_i32_0 : i32, i32, i32
  }
  func.func @transform_7(%arg0: i32, %arg1: i32) -> (i32, i32, i32) {
    %c0_i32 = arith.constant 0 : i32
    %c0_i32_0 = arith.constant 0 : i32
    %c0_i32_1 = arith.constant 0 : i32
    return %arg1, %c0_i32, %c0_i32_0 : i32, i32, i32
  }
  func.func @transform_8(%arg0: i32, %arg1: i32) -> (i32, i32, i32) {
    %c0_i32 = arith.constant 0 : i32
    %c0_i32_0 = arith.constant 0 : i32
    %c0_i32_1 = arith.constant 0 : i32
    return %arg1, %c0_i32, %c0_i32_0 : i32, i32, i32
  }
  func.func @transform_9(%arg0: i32, %arg1: i32) -> (i32, i32, i32) {
    %c0_i32 = arith.constant 0 : i32
    %c0_i32_0 = arith.constant 0 : i32
    %c0_i32_1 = arith.constant 0 : i32
    return %arg1, %c0_i32, %c0_i32_0 : i32, i32, i32
  }
  func.func @transform_10(%arg0: i32, %arg1: i32) -> (i32, i32, i32) {
    %c0_i32 = arith.constant 0 : i32
    %c0_i32_0 = arith.constant 0 : i32
    %c0_i32_1 = arith.constant 0 : i32
    return %arg1, %c0_i32, %c0_i32_0 : i32, i32, i32
  }
  func.func @transform_11(%arg0: i32, %arg1: i32) -> (i32, i32) {
    %c0_i32 = arith.constant 0 : i32
    %c0_i32_0 = arith.constant 0 : i32
    %c0_i32_1 = arith.constant 0 : i32
    return %c0_i32, %c0_i32_0 : i32, i32
  }
  func.func @transform_12(%arg0: i32, %arg1: i32) -> (i32, i32) {
    %c0_i32 = arith.constant 0 : i32
    %c0_i32_0 = arith.constant 0 : i32
    %c0_i32_1 = arith.constant 0 : i32
    return %c0_i32, %c0_i32_0 : i32, i32
  }
  func.func @transform_13(%arg0: i32, %arg1: i32) -> (i32, i32) {
    %c0_i32 = arith.constant 0 : i32
    %c0_i32_0 = arith.constant 0 : i32
    %c0_i32_1 = arith.constant 0 : i32
    return %c0_i32, %c0_i32_0 : i32, i32
  }
  func.func @transform_14(%arg0: i32, %arg1: i32) -> (i32, i32, i32) {
    %c0_i32 = arith.constant 0 : i32
    %c0_i32_0 = arith.constant 0 : i32
    %c0_i32_1 = arith.constant 0 : i32
    return %arg0, %c0_i32, %c0_i32_0 : i32, i32, i32
  }
}

</mosaic_0001>

<llo_original>
// kernel: tpu_custom_call.1
$region0: #{tpu_custom_call.1}
  #allocation0 [shape = 'u32[]', space=smem, size = 0x4, offset = 0x4, fixed_abs, tag = 'smem constant byte address 0x4 - core index']
  #allocation1 [shape = 'u32[144,128]{1,0:T(1,128)}', space=vmem, size = 0x12000, scoped, tag = 'internal scratch']
  #allocation2 [shape = 'f32[2,16,32]{2,1,0:T(8,128)}', space=vmem, size = 0x4000, scoped, tag = 'scratch operand']
  #allocation3 [shape = 'f32[2,16,32]{2,1,0:T(8,128)}', space=vmem, size = 0x4000, scoped, tag = 'scratch operand']
  %s0 = inlined_call_operand.hbm [shape: bf16[2,16,12], index: 0, kind: input, shape index: {}]
  %s1 = inlined_call_operand.hbm [shape: f32[1,16,32], index: 1, kind: input, shape index: {}]
  %s2 = inlined_call_operand.hbm [shape: bf16[12,32], index: 2, kind: input, shape index: {}]
  %s3 = inlined_call_operand.hbm [shape: f32[1,32], index: 3, kind: input, shape index: {}]
  %s4 = inlined_call_operand.hbm [shape: bf16[2,32,96], index: 4, kind: input, shape index: {}]
  %s5 = inlined_call_operand.hbm [shape: f32[2,1,96], index: 5, kind: input, shape index: {}]
  %s6 = inlined_call_operand.hbm [shape: bf16[2,32,32], index: 6, kind: input, shape index: {}]
  %s7 = inlined_call_operand.hbm [shape: f32[2,6,32], index: 7, kind: input, shape index: {}]
  %s8 = inlined_call_operand.hbm [shape: bf16[2,32,128], index: 8, kind: input, shape index: {}]
  %s9 = inlined_call_operand.hbm [shape: f32[2,1,128], index: 9, kind: input, shape index: {}]
  %s10 = inlined_call_operand.hbm [shape: bf16[2,128,32], index: 10, kind: input, shape index: {}]
  %s11 = inlined_call_operand.hbm [shape: f32[2,64], index: 11, kind: input, shape index: {}]
  %s12 = inlined_call_operand.hbm [shape: bf16[64,10], index: 12, kind: input, shape index: {}]
  %s13 = inlined_call_operand.hbm [shape: f32[1,10], index: 13, kind: input, shape index: {}]
  %s14 = inlined_call_operand.hbm [shape: f32[2,1,10], index: 14, kind: output, shape index: {}]
  %s15 = sld [smem:[#allocation0]]
  $region153: #{tpu_custom_call.1} parent=0
    _
  %s17 = ssub.s32 1, %s15
  %s18 = scalar_select 0, %s17, %s15
  $region1: #{tpu_custom_call.1} parent=0
    #allocation4 [shape = 'u8[8192]{0}', space=vmem, size = 0x2000, scoped, tag = 'input window, operand 0, single buffered']
    #allocation5 [shape = 's32[2]{0}', space=sflag, size = 0x8, scoped, tag = 'scoped memory for tpu_custom_call.1']
    #allocation6 [shape = 's32[2]{0}', space=sflag, size = 0x8, scoped, tag = 'scoped memory for tpu_custom_call.1']
    #allocation7 [shape = 'u8[8192]{0}', space=vmem, size = 0x2000, scoped, tag = 'input window, operand 1, single buffered']
    #allocation8 [shape = 's32[1]{0}', space=sflag, size = 0x4, scoped, tag = 'scoped memory for tpu_custom_call.1']
    #allocation9 [shape = 'u8[4096]{0}', space=vmem, size = 0x1000, scoped, tag = 'input window, operand 2, single buffered']
    #allocation10 [shape = 'u8[512]{0}', space=vmem, size = 0x400, scoped, tag = 'input window, operand 3, single buffered']
    #allocation11 [shape = 's32[1]{0}', space=sflag, size = 0x4, scoped, tag = 'scoped memory for tpu_custom_call.1']
    #allocation12 [shape = 'u8[16384]{0}', space=vmem, size = 0x4000, scoped, tag = 'input window, operand 4']
    #allocation13 [shape = 'u8[1024]{0}', space=vmem, size = 0x400, scoped, tag = 'input window, operand 5']
    #allocation14 [shape = 'u8[16384]{0}', space=vmem, size = 0x4000, scoped, tag = 'input window, operand 6']
    #allocation15 [shape = 'u8[8192]{0}', space=vmem, size = 0x2000, scoped, tag = 'input window, operand 7']
    #allocation16 [shape = 'u8[16384]{0}', space=vmem, size = 0x4000, scoped, tag = 'input window, operand 8']
    #allocation17 [shape = 'u8[1024]{0}', space=vmem, size = 0x400, scoped, tag = 'input window, operand 9']
    #allocation18 [shape = 'u8[65536]{0}', space=vmem, size = 0x10000, scoped, tag = 'input window, operand 10']
    #allocation19 [shape = 'u8[1024]{0}', space=vmem, size = 0x400, scoped, tag = 'input window, operand 11, single buffered']
    #allocation20 [shape = 'u8[16384]{0}', space=vmem, size = 0x4000, scoped, tag = 'input window, operand 12, single buffered']
    #allocation21 [shape = 'u8[512]{0}', space=vmem, size = 0x400, scoped, tag = 'input window, operand 13, single buffered']
    #allocation22 [shape = 's32[1]{0}', space=sflag, size = 0x4, scoped, tag = 'scoped memory for tpu_custom_call.1']
    #allocation23 [shape = 'u8[1024]{0}', space=vmem, size = 0x400, scoped, tag = 'output window, operand 0, single buffered']
    %19 = vsyncpa [#allocation5], 0
    %20 = vsyncpa [#allocation8], 0
    %21 = vsyncpa [#allocation11], 0
    %22 = vsyncpa [#allocation22], 0
    %23 = vsyncpa [#allocation6], 0
    loop: start=0, step=1, limit=4
    $region2: #{tpu_custom_call.1} parent=1 // loop_pre_header
      _
    $region3: #{tpu_custom_call.1} parent=1 // loop_header
      %s25 = sphi 0, %s29
      %p26 = scmp.ge.s32.totalorder %s25, 4
      %s32 = sphi 0, %s44
      %s33 = sphi 0, %s40
      %s34 = sphi 0, %s32
      %s35 = sphi 0, %s33
      %s36 = sphi 0, %s34
      %s37 = sphi 0, %s35
      %s47 = sphi 0, %s49
      %s50 = sphi 0, %s47
      %s51 = sphi 0, %s50
      %s67 = sphi 0, %s51
      %s71 = sphi 0, %s71
      %s73 = sphi 0, %s71
      %s74 = sphi 0, %s73
      %s88 = sphi 0, %s74
      %s92 = sphi 0, %s92
      %s94 = sphi 0, %s92
      %s95 = sphi 0, %s94
      %s109 = sphi 0, %s95
      %s113 = sphi 0, %s113
      %s115 = sphi 0, %s113
      %s116 = sphi 0, %s115
      %s130 = sphi 0, %s116
      %s136 = sphi 0, %s138
      %s139 = sphi 0, %s136
      %s140 = sphi 0, %s139
      %s156 = sphi 0, %s140
      %s162 = sphi 0, %s164
      %s165 = sphi 0, %s162
      %s166 = sphi 0, %s165
      %s182 = sphi 0, %s166
      %s188 = sphi 0, %s190
      %s191 = sphi 0, %s188
      %s192 = sphi 0, %s191
      %s208 = sphi 0, %s192
      %s214 = sphi 0, %s216
      %s217 = sphi 0, %s214
      %s218 = sphi 0, %s217
      %s234 = sphi 0, %s218
      %s240 = sphi 0, %s242
      %s243 = sphi 0, %s240
      %s244 = sphi 0, %s243
      %s260 = sphi 0, %s244
      %s266 = sphi 0, %s268
      %s269 = sphi 0, %s266
      %s270 = sphi 0, %s269
      %s286 = sphi 0, %s270
      %s292 = sphi 0, %s294
      %s295 = sphi 0, %s292
      %s296 = sphi 0, %s295
      %s312 = sphi 0, %s296
      %s316 = sphi 0, %s316
      %s318 = sphi 0, %s316
      %s319 = sphi 0, %s318
      %s333 = sphi 0, %s319
      %s337 = sphi 0, %s337
      %s339 = sphi 0, %s337
      %s340 = sphi 0, %s339
      %s354 = sphi 0, %s340
      %s358 = sphi 0, %s358
      %s360 = sphi 0, %s358
      %s361 = sphi 0, %s360
      %s375 = sphi 0, %s361
      %s381 = sphi 0, %s383
      %s384 = sphi 0, %s381
      %s385 = sphi 0, %s384
      %s401 = sphi 0, %s385
    $region4: #{tpu_custom_call.1} parent=1 // loop_header_branch
      %28 = sbr.rel (%p26) target = $region8
    $region5: #{tpu_custom_call.1} parent=1 // loop_body
      %s30 = ssub.s32 %s25, 1
      %s31 = ssub.s32 %s25, 2
      %s38 = sadd.s32 1, %s33
      %p39 = scmp.ge.s32.totalorder %s38, 2
      %s40 = scalar_select %p39, 0, %s38
      %s41 = sadd.s32 1, %s32
      %s42 = scalar_select %p39, %s41, %s32
      %p43 = scmp.ge.s32.totalorder %s42, 1
      %s44 = scalar_select %p43, 0, %s42
      %s45 = ssub.s32 %s32, %s44
      %p46 = scmp.eq.s32.totalorder %s45, 0
      %s48 = sadd.s32 %s47, 1
      %s49 = scalar_select %p46, %s47, %s48
      %p52 = pneg %p46
      %p53 = scmp.eq.s32.totalorder %s25, 1
      %p54 = por %p52, %p53
      %p55 = scmp.ne.s32.totalorder %s47, %s50
      %p56 = scmp.eq.s32.totalorder %s25, 0
      %p57 = por %p55, %p56
      %p58 = scmp.ne.s32.totalorder %s47, %s50
      %p59 = scmp.eq.s32.totalorder %s30, 1
      %p60 = por %p58, %p59
      %p61 = scmp.ne.s32.totalorder %s50, %s51
      %p62 = scmp.eq.s32.totalorder %s30, 0
      %p63 = por %p61, %p62
      %p64 = scmp.ne.s32.totalorder %s50, %s51
      %p65 = scmp.eq.s32.totalorder %s31, 1
      %p66 = por %p64, %p65
      %p68 = scmp.ne.s32.totalorder %s51, %s67
      %p69 = scmp.eq.s32.totalorder %s31, 0
      %p70 = por %p68, %p69
      %s72 = sadd.s32 %s71, 1
      %p75 = scmp.eq.s32.totalorder %s25, 1
      %p76 = scmp.ne.s32.totalorder %s71, %s73
      %p77 = scmp.eq.s32.totalorder %s25, 0
      %p78 = por %p76, %p77
      %p79 = scmp.ne.s32.totalorder %s71, %s73
      %p80 = scmp.eq.s32.totalorder %s30, 1
      %p81 = por %p79, %p80
      %p82 = scmp.ne.s32.totalorder %s73, %s74
      %p83 = scmp.eq.s32.totalorder %s30, 0
      %p84 = por %p82, %p83
      %p85 = scmp.ne.s32.totalorder %s73, %s74
      %p86 = scmp.eq.s32.totalorder %s31, 1
      %p87 = por %p85, %p86
      %p89 = scmp.ne.s32.totalorder %s74, %s88
      %p90 = scmp.eq.s32.totalorder %s31, 0
      %p91 = por %p89, %p90
      %s93 = sadd.s32 %s92, 1
      %p96 = scmp.eq.s32.totalorder %s25, 1
      %p97 = scmp.ne.s32.totalorder %s92, %s94
      %p98 = scmp.eq.s32.totalorder %s25, 0
      %p99 = por %p97, %p98
      %p100 = scmp.ne.s32.totalorder %s92, %s94
      %p101 = scmp.eq.s32.totalorder %s30, 1
      %p102 = por %p100, %p101
      %p103 = scmp.ne.s32.totalorder %s94, %s95
      %p104 = scmp.eq.s32.totalorder %s30, 0
      %p105 = por %p103, %p104
      %p106 = scmp.ne.s32.totalorder %s94, %s95
      %p107 = scmp.eq.s32.totalorder %s31, 1
      %p108 = por %p106, %p107
      %p110 = scmp.ne.s32.totalorder %s95, %s109
      %p111 = scmp.eq.s32.totalorder %s31, 0
      %p112 = por %p110, %p111
      %s114 = sadd.s32 %s113, 1
      %p117 = scmp.eq.s32.totalorder %s25, 1
      %p118 = scmp.ne.s32.totalorder %s113, %s115
      %p119 = scmp.eq.s32.totalorder %s25, 0
      %p120 = por %p118, %p119
      %p121 = scmp.ne.s32.totalorder %s113, %s115
      %p122 = scmp.eq.s32.totalorder %s30, 1
      %p123 = por %p121, %p122
      %p124 = scmp.ne.s32.totalorder %s115, %s116
      %p125 = scmp.eq.s32.totalorder %s30, 0
      %p126 = por %p124, %p125
      %p127 = scmp.ne.s32.totalorder %s115, %s116
      %p128 = scmp.eq.s32.totalorder %s31, 1
      %p129 = por %p127, %p128
      %p131 = scmp.ne.s32.totalorder %s116, %s130
      %p132 = scmp.eq.s32.totalorder %s31, 0
      %p133 = por %p131, %p132
      %s134 = ssub.s32 %s33, %s40
      %p135 = scmp.eq.s32.totalorder %s134, 0
      %s137 = sadd.s32 %s136, 1
      %s138 = scalar_select %p135, %s136, %s137
      %p141 = pneg %p135
      %p142 = scmp.eq.s32.totalorder %s25, 1
      %p143 = por %p141, %p142
      %p144 = scmp.ne.s32.totalorder %s136, %s139
      %p145 = scmp.eq.s32.totalorder %s25, 0
      %p146 = por %p144, %p145
      %p147 = scmp.ne.s32.totalorder %s136, %s139
      %p148 = scmp.eq.s32.totalorder %s30, 1
      %p149 = por %p147, %p148
      %p150 = scmp.ne.s32.totalorder %s139, %s140
      %p151 = scmp.eq.s32.totalorder %s30, 0
      %p152 = por %p150, %p151
      %p153 = scmp.ne.s32.totalorder %s139, %s140
      %p154 = scmp.eq.s32.totalorder %s31, 1
      %p155 = por %p153, %p154
      %p157 = scmp.ne.s32.totalorder %s140, %s156
      %p158 = scmp.eq.s32.totalorder %s31, 0
      %p159 = por %p157, %p158
      %s160 = ssub.s32 %s33, %s40
      %p161 = scmp.eq.s32.totalorder %s160, 0
      %s163 = sadd.s32 %s162, 1
      %s164 = scalar_select %p161, %s162, %s163
      %p167 = pneg %p161
      %p168 = scmp.eq.s32.totalorder %s25, 1
      %p169 = por %p167, %p168
      %p170 = scmp.ne.s32.totalorder %s162, %s165
      %p171 = scmp.eq.s32.totalorder %s25, 0
      %p172 = por %p170, %p171
      %p173 = scmp.ne.s32.totalorder %s162, %s165
      %p174 = scmp.eq.s32.totalorder %s30, 1
      %p175 = por %p173, %p174
      %p176 = scmp.ne.s32.totalorder %s165, %s166
      %p177 = scmp.eq.s32.totalorder %s30, 0
      %p178 = por %p176, %p177
      %p179 = scmp.ne.s32.totalorder %s165, %s166
      %p180 = scmp.eq.s32.totalorder %s31, 1
      %p181 = por %p179, %p180
      %p183 = scmp.ne.s32.totalorder %s166, %s182
      %p184 = scmp.eq.s32.totalorder %s31, 0
      %p185 = por %p183, %p184
      %s186 = ssub.s32 %s33, %s40
      %p187 = scmp.eq.s32.totalorder %s186, 0
      %s189 = sadd.s32 %s188, 1
      %s190 = scalar_select %p187, %s188, %s189
      %p193 = pneg %p187
      %p194 = scmp.eq.s32.totalorder %s25, 1
      %p195 = por %p193, %p194
      %p196 = scmp.ne.s32.totalorder %s188, %s191
      %p197 = scmp.eq.s32.totalorder %s25, 0
      %p198 = por %p196, %p197
      %p199 = scmp.ne.s32.totalorder %s188, %s191
      %p200 = scmp.eq.s32.totalorder %s30, 1
      %p201 = por %p199, %p200
      %p202 = scmp.ne.s32.totalorder %s191, %s192
      %p203 = scmp.eq.s32.totalorder %s30, 0
      %p204 = por %p202, %p203
      %p205 = scmp.ne.s32.totalorder %s191, %s192
      %p206 = scmp.eq.s32.totalorder %s31, 1
      %p207 = por %p205, %p206
      %p209 = scmp.ne.s32.totalorder %s192, %s208
      %p210 = scmp.eq.s32.totalorder %s31, 0
      %p211 = por %p209, %p210
      %s212 = ssub.s32 %s33, %s40
      %p213 = scmp.eq.s32.totalorder %s212, 0
      %s215 = sadd.s32 %s214, 1
      %s216 = scalar_select %p213, %s214, %s215
      %p219 = pneg %p213
      %p220 = scmp.eq.s32.totalorder %s25, 1
      %p221 = por %p219, %p220
      %p222 = scmp.ne.s32.totalorder %s214, %s217
      %p223 = scmp.eq.s32.totalorder %s25, 0
      %p224 = por %p222, %p223
      %p225 = scmp.ne.s32.totalorder %s214, %s217
      %p226 = scmp.eq.s32.totalorder %s30, 1
      %p227 = por %p225, %p226
      %p228 = scmp.ne.s32.totalorder %s217, %s218
      %p229 = scmp.eq.s32.totalorder %s30, 0
      %p230 = por %p228, %p229
      %p231 = scmp.ne.s32.totalorder %s217, %s218
      %p232 = scmp.eq.s32.totalorder %s31, 1
      %p233 = por %p231, %p232
      %p235 = scmp.ne.s32.totalorder %s218, %s234
      %p236 = scmp.eq.s32.totalorder %s31, 0
      %p237 = por %p235, %p236
      %s238 = ssub.s32 %s33, %s40
      %p239 = scmp.eq.s32.totalorder %s238, 0
      %s241 = sadd.s32 %s240, 1
      %s242 = scalar_select %p239, %s240, %s241
      %p245 = pneg %p239
      %p246 = scmp.eq.s32.totalorder %s25, 1
      %p247 = por %p245, %p246
      %p248 = scmp.ne.s32.totalorder %s240, %s243
      %p249 = scmp.eq.s32.totalorder %s25, 0
      %p250 = por %p248, %p249
      %p251 = scmp.ne.s32.totalorder %s240, %s243
      %p252 = scmp.eq.s32.totalorder %s30, 1
      %p253 = por %p251, %p252
      %p254 = scmp.ne.s32.totalorder %s243, %s244
      %p255 = scmp.eq.s32.totalorder %s30, 0
      %p256 = por %p254, %p255
      %p257 = scmp.ne.s32.totalorder %s243, %s244
      %p258 = scmp.eq.s32.totalorder %s31, 1
      %p259 = por %p257, %p258
      %p261 = scmp.ne.s32.totalorder %s244, %s260
      %p262 = scmp.eq.s32.totalorder %s31, 0
      %p263 = por %p261, %p262
      %s264 = ssub.s32 %s33, %s40
      %p265 = scmp.eq.s32.totalorder %s264, 0
      %s267 = sadd.s32 %s266, 1
      %s268 = scalar_select %p265, %s266, %s267
      %p271 = pneg %p265
      %p272 = scmp.eq.s32.totalorder %s25, 1
      %p273 = por %p271, %p272
      %p274 = scmp.ne.s32.totalorder %s266, %s269
      %p275 = scmp.eq.s32.totalorder %s25, 0
      %p276 = por %p274, %p275
      %p277 = scmp.ne.s32.totalorder %s266, %s269
      %p278 = scmp.eq.s32.totalorder %s30, 1
      %p279 = por %p277, %p278
      %p280 = scmp.ne.s32.totalorder %s269, %s270
      %p281 = scmp.eq.s32.totalorder %s30, 0
      %p282 = por %p280, %p281
      %p283 = scmp.ne.s32.totalorder %s269, %s270
      %p284 = scmp.eq.s32.totalorder %s31, 1
      %p285 = por %p283, %p284
      %p287 = scmp.ne.s32.totalorder %s270, %s286
      %p288 = scmp.eq.s32.totalorder %s31, 0
      %p289 = por %p287, %p288
      %s290 = ssub.s32 %s33, %s40
      %p291 = scmp.eq.s32.totalorder %s290, 0
      %s293 = sadd.s32 %s292, 1
      %s294 = scalar_select %p291, %s292, %s293
      %p297 = pneg %p291
      %p298 = scmp.eq.s32.totalorder %s25, 1
      %p299 = por %p297, %p298
      %p300 = scmp.ne.s32.totalorder %s292, %s295
      %p301 = scmp.eq.s32.totalorder %s25, 0
      %p302 = por %p300, %p301
      %p303 = scmp.ne.s32.totalorder %s292, %s295
      %p304 = scmp.eq.s32.totalorder %s30, 1
      %p305 = por %p303, %p304
      %p306 = scmp.ne.s32.totalorder %s295, %s296
      %p307 = scmp.eq.s32.totalorder %s30, 0
      %p308 = por %p306, %p307
      %p309 = scmp.ne.s32.totalorder %s295, %s296
      %p310 = scmp.eq.s32.totalorder %s31, 1
      %p311 = por %p309, %p310
      %p313 = scmp.ne.s32.totalorder %s296, %s312
      %p314 = scmp.eq.s32.totalorder %s31, 0
      %p315 = por %p313, %p314
      %s317 = sadd.s32 %s316, 1
      %p320 = scmp.eq.s32.totalorder %s25, 1
      %p321 = scmp.ne.s32.totalorder %s316, %s318
      %p322 = scmp.eq.s32.totalorder %s25, 0
      %p323 = por %p321, %p322
      %p324 = scmp.ne.s32.totalorder %s316, %s318
      %p325 = scmp.eq.s32.totalorder %s30, 1
      %p326 = por %p324, %p325
      %p327 = scmp.ne.s32.totalorder %s318, %s319
      %p328 = scmp.eq.s32.totalorder %s30, 0
      %p329 = por %p327, %p328
      %p330 = scmp.ne.s32.totalorder %s318, %s319
      %p331 = scmp.eq.s32.totalorder %s31, 1
      %p332 = por %p330, %p331
      %p334 = scmp.ne.s32.totalorder %s319, %s333
      %p335 = scmp.eq.s32.totalorder %s31, 0
      %p336 = por %p334, %p335
      %s338 = sadd.s32 %s337, 1
      %p341 = scmp.eq.s32.totalorder %s25, 1
      %p342 = scmp.ne.s32.totalorder %s337, %s339
      %p343 = scmp.eq.s32.totalorder %s25, 0
      %p344 = por %p342, %p343
      %p345 = scmp.ne.s32.totalorder %s337, %s339
      %p346 = scmp.eq.s32.totalorder %s30, 1
      %p347 = por %p345, %p346
      %p348 = scmp.ne.s32.totalorder %s339, %s340
      %p349 = scmp.eq.s32.totalorder %s30, 0
      %p350 = por %p348, %p349
      %p351 = scmp.ne.s32.totalorder %s339, %s340
      %p352 = scmp.eq.s32.totalorder %s31, 1
      %p353 = por %p351, %p352
      %p355 = scmp.ne.s32.totalorder %s340, %s354
      %p356 = scmp.eq.s32.totalorder %s31, 0
      %p357 = por %p355, %p356
      %s359 = sadd.s32 %s358, 1
      %p362 = scmp.eq.s32.totalorder %s25, 1
      %p363 = scmp.ne.s32.totalorder %s358, %s360
      %p364 = scmp.eq.s32.totalorder %s25, 0
      %p365 = por %p363, %p364
      %p366 = scmp.ne.s32.totalorder %s358, %s360
      %p367 = scmp.eq.s32.totalorder %s30, 1
      %p368 = por %p366, %p367
      %p369 = scmp.ne.s32.totalorder %s360, %s361
      %p370 = scmp.eq.s32.totalorder %s30, 0
      %p371 = por %p369, %p370
      %p372 = scmp.ne.s32.totalorder %s360, %s361
      %p373 = scmp.eq.s32.totalorder %s31, 1
      %p374 = por %p372, %p373
      %p376 = scmp.ne.s32.totalorder %s361, %s375
      %p377 = scmp.eq.s32.totalorder %s31, 0
      %p378 = por %p376, %p377
      %s379 = ssub.s32 %s32, %s44
      %p380 = scmp.eq.s32.totalorder %s379, 0
      %s382 = sadd.s32 %s381, 1
      %s383 = scalar_select %p380, %s381, %s382
      %p386 = pneg %p380
      %p387 = scmp.eq.s32.totalorder %s25, 1
      %p388 = por %p386, %p387
      %p389 = scmp.ne.s32.totalorder %s381, %s384
      %p390 = scmp.eq.s32.totalorder %s25, 0
      %p391 = por %p389, %p390
      %p392 = scmp.ne.s32.totalorder %s381, %s384
      %p393 = scmp.eq.s32.totalorder %s30, 1
      %p394 = por %p392, %p393
      %p395 = scmp.ne.s32.totalorder %s384, %s385
      %p396 = scmp.eq.s32.totalorder %s30, 0
      %p397 = por %p395, %p396
      %p398 = scmp.ne.s32.totalorder %s384, %s385
      %p399 = scmp.eq.s32.totalorder %s31, 1
      %p400 = por %p398, %p399
      %p402 = scmp.ne.s32.totalorder %s385, %s401
      %p403 = scmp.eq.s32.totalorder %s31, 0
      %p404 = por %p402, %p403
      %p405 = scmp.le.s32.totalorder 1, %s25
      %p406 = scmp.lt.s32.totalorder %s25, 3
      %p407 = pnand %p405, %p406
      %p408 = pneg %p407
      // Predicated region
      $region9: #{tpu_custom_call.1} parent=5 // pred_check
        _
      $region10: #{tpu_custom_call.1} parent=5 // pred_check_branch
        %410 = sbr.rel (%p407) target = $region12
      $region11: #{tpu_custom_call.1} parent=5 // pred_region
        %s411 = ssub.s32 %s25, 1
        // Predicated region
        $region13: #{tpu_custom_call.1} parent=11 // pred_check
          %p412 = pneg %p63
        $region14: #{tpu_custom_call.1} parent=11 // pred_check_branch
          %414 = sbr.rel (%p412) target = $region16
        $region15: #{tpu_custom_call.1} parent=11 // pred_region
          %s415 = smul.u32 2, %s34
          %s417 = ssub.s32 256, 256
          %418 = vsyncadd [#allocation5], %s417
          %s419 = smul.addr %s415, 2
          %s420 = smul.addr %s419, 64
          %s421 = scalar_lea.hbm %s0, %s420
          %s422 = sshll.u32 [#allocation4], 4
          %s423 = int_to_ptr.vmem [resolvable:$true] %s422
          %428 = dma.hbm_to_vmem [thread:$0]  %s421, 256, %s423, [#allocation5], 64, 64, 4
        $region16: #{tpu_custom_call.1} parent=11 // pred_fallthru
          _
        // Predicated region
        $region17: #{tpu_custom_call.1} parent=11 // pred_check
          %p429 = pneg %p84
        $region18: #{tpu_custom_call.1} parent=11 // pred_check_branch
          %431 = sbr.rel (%p429) target = $region20
        $region19: #{tpu_custom_call.1} parent=11 // pred_region
          %s433 = ssub.s32 256, 256
          %434 = vsyncadd [#allocation8], %s433
          %s435 = sshll.u32 [#allocation7], 4
          %s436 = int_to_ptr.vmem [resolvable:$true] %s435
          %441 = dma.hbm_to_vmem [thread:$0]  %s1, 256, %s436, [#allocation8], 128, 128, 8
        $region20: #{tpu_custom_call.1} parent=11 // pred_fallthru
          _
        // Predicated region
        $region21: #{tpu_custom_call.1} parent=11 // pred_check
          %p442 = pneg %p105
        $region22: #{tpu_custom_call.1} parent=11 // pred_check_branch
          %444 = sbr.rel (%p442) target = $region24
        $region23: #{tpu_custom_call.1} parent=11 // pred_region
          %s446 = ssub.s32 128, 128
          %447 = vsyncadd [#allocation8], %s446
          %s448 = sshll.u32 [#allocation9], 4
          %s449 = int_to_ptr.vmem [resolvable:$true] %s448
          %454 = dma.hbm_to_vmem [thread:$0]  %s2, 128, %s449, [#allocation8], 64, 64, 4
        $region24: #{tpu_custom_call.1} parent=11 // pred_fallthru
          _
        // Predicated region
        $region25: #{tpu_custom_call.1} parent=11 // pred_check
          %p455 = pneg %p126
        $region26: #{tpu_custom_call.1} parent=11 // pred_check_branch
          %457 = sbr.rel (%p455) target = $region28
        $region27: #{tpu_custom_call.1} parent=11 // pred_region
          %s459 = ssub.s32 16, 16
          %460 = vsyncadd [#allocation11], %s459
          %s462 = sshll.u32 [#allocation10], 4
          %s463 = int_to_ptr.vmem [resolvable:$true] %s462
          %465 = dma.hbm_to_vmem [thread:$0]  %s3, 16, %s463, [#allocation11]
        $region28: #{tpu_custom_call.1} parent=11 // pred_fallthru
          _
        // Predicated region
        $region29: #{tpu_custom_call.1} parent=11 // pred_check
          %p466 = pneg %p329
        $region30: #{tpu_custom_call.1} parent=11 // pred_check_branch
          %468 = sbr.rel (%p466) target = $region32
        $region31: #{tpu_custom_call.1} parent=11 // pred_region
          %s470 = ssub.s32 32, 32
          %471 = vsyncadd [#allocation8], %s470
          %s473 = sshll.u32 [#allocation19], 4
          %s474 = int_to_ptr.vmem [resolvable:$true] %s473
          %476 = dma.hbm_to_vmem [thread:$0]  %s11, 32, %s474, [#allocation8]
        $region32: #{tpu_custom_call.1} parent=11 // pred_fallthru
          _
        // Predicated region
        $region33: #{tpu_custom_call.1} parent=11 // pred_check
          %p477 = pneg %p350
        $region34: #{tpu_custom_call.1} parent=11 // pred_check_branch
          %479 = sbr.rel (%p477) target = $region36
        $region35: #{tpu_custom_call.1} parent=11 // pred_region
          %s481 = ssub.s32 512, 512
          %482 = vsyncadd [#allocation11], %s481
          %s483 = sshll.u32 [#allocation20], 4
          %s484 = int_to_ptr.vmem [resolvable:$true] %s483
          %489 = dma.hbm_to_vmem [thread:$0]  %s12, 512, %s484, [#allocation11], 64, 64, 4
        $region36: #{tpu_custom_call.1} parent=11 // pred_fallthru
          _
        // Predicated region
        $region37: #{tpu_custom_call.1} parent=11 // pred_check
          %p490 = pneg %p371
        $region38: #{tpu_custom_call.1} parent=11 // pred_check_branch
          %492 = sbr.rel (%p490) target = $region40
        $region39: #{tpu_custom_call.1} parent=11 // pred_region
          %s494 = ssub.s32 16, 16
          %495 = vsyncadd [#allocation22], %s494
          %s497 = sshll.u32 [#allocation21], 4
          %s498 = int_to_ptr.vmem [resolvable:$true] %s497
          %500 = dma.hbm_to_vmem [thread:$0]  %s13, 16, %s498, [#allocation22]
        $region40: #{tpu_custom_call.1} parent=11 // pred_fallthru
          _
      $region12: #{tpu_custom_call.1} parent=5 // pred_fallthru
        _
      %p501 = scmp.lt.s32.totalorder %s25, 2
      // Predicated region
      $region41: #{tpu_custom_call.1} parent=5 // pred_check
        %p502 = pneg %p501
      $region42: #{tpu_custom_call.1} parent=5 // pred_check_branch
        %504 = sbr.rel (%p502) target = $region44
      $region43: #{tpu_custom_call.1} parent=5 // pred_region
        // Predicated region
        $region45: #{tpu_custom_call.1} parent=43 // pred_check
          %p505 = pneg %p146
        $region46: #{tpu_custom_call.1} parent=43 // pred_check_branch
          %507 = sbr.rel (%p505) target = $region48
        $region47: #{tpu_custom_call.1} parent=43 // pred_region
          %s508 = sand.u32 %s25, 1
          %s509 = scalar_lea.sflag [#allocation5], %s508
          %s510 = sand.u32 %s136, 1
          %s511 = smul.addr %s510, 16
          %s512 = scalar_lea.vmem [#allocation12], %s511
          %s514 = ssub.s32 256, 256
          %515 = vsyncadd %s509, %s514
          %s516 = smul.addr %s33, 4
          %s517 = smul.addr %s516, 64
          %s518 = scalar_lea.hbm %s4, %s517
          %s519 = sshll.u32 %s512, 4
          %s520 = int_to_ptr.vmem [resolvable:$true] %s519
          %525 = dma.hbm_to_vmem [thread:$0]  %s518, 256, %s520, %s509, 64, 64, 4
        $region48: #{tpu_custom_call.1} parent=43 // pred_fallthru
          _
        // Predicated region
        $region49: #{tpu_custom_call.1} parent=43 // pred_check
          %p526 = pneg %p172
        $region50: #{tpu_custom_call.1} parent=43 // pred_check_branch
          %528 = sbr.rel (%p526) target = $region52
        $region51: #{tpu_custom_call.1} parent=43 // pred_region
          %s529 = sand.u32 %s25, 1
          %s530 = scalar_lea.sflag [#allocation5], %s529
          %s531 = sand.u32 %s162, 1
          %s532 = scalar_lea.vmem [#allocation13], %s531
          %s534 = ssub.s32 16, 16
          %535 = vsyncadd %s530, %s534
          %s536 = smul.addr %s33, 16
          %s537 = scalar_lea.hbm %s5, %s536
          %s539 = sshll.u32 %s532, 4
          %s540 = int_to_ptr.vmem [resolvable:$true] %s539
          %542 = dma.hbm_to_vmem [thread:$0]  %s537, 16, %s540, %s530
        $region52: #{tpu_custom_call.1} parent=43 // pred_fallthru
          _
        // Predicated region
        $region53: #{tpu_custom_call.1} parent=43 // pred_check
          %p543 = pneg %p198
        $region54: #{tpu_custom_call.1} parent=43 // pred_check_branch
          %545 = sbr.rel (%p543) target = $region56
        $region55: #{tpu_custom_call.1} parent=43 // pred_region
          %s546 = sand.u32 %s25, 1
          %s547 = scalar_lea.sflag [#allocation5], %s546
          %s548 = sand.u32 %s188, 1
          %s549 = smul.addr %s548, 16
          %s550 = scalar_lea.vmem [#allocation14], %s549
          %s552 = ssub.s32 256, 256
          %553 = vsyncadd %s547, %s552
          %s554 = smul.addr %s33, 4
          %s555 = smul.addr %s554, 64
          %s556 = scalar_lea.hbm %s6, %s555
          %s557 = sshll.u32 %s550, 4
          %s558 = int_to_ptr.vmem [resolvable:$true] %s557
          %563 = dma.hbm_to_vmem [thread:$0]  %s556, 256, %s558, %s547, 64, 64, 4
        $region56: #{tpu_custom_call.1} parent=43 // pred_fallthru
          _
        // Predicated region
        $region57: #{tpu_custom_call.1} parent=43 // pred_check
          %p564 = pneg %p224
        $region58: #{tpu_custom_call.1} parent=43 // pred_check_branch
          %566 = sbr.rel (%p564) target = $region60
        $region59: #{tpu_custom_call.1} parent=43 // pred_region
          %s567 = sand.u32 %s25, 1
          %s568 = scalar_lea.sflag [#allocation5], %s567
          %s569 = sand.u32 %s214, 1
          %s570 = smul.addr %s569, 8
          %s571 = scalar_lea.vmem [#allocation15], %s570
          %s573 = ssub.s32 128, 128
          %574 = vsyncadd %s568, %s573
          %s575 = smul.addr %s33, 128
          %s576 = scalar_lea.hbm %s7, %s575
          %s578 = sshll.u32 %s571, 4
          %s579 = int_to_ptr.vmem [resolvable:$true] %s578
          %581 = dma.hbm_to_vmem [thread:$0]  %s576, 128, %s579, %s568
        $region60: #{tpu_custom_call.1} parent=43 // pred_fallthru
          _
        // Predicated region
        $region61: #{tpu_custom_call.1} parent=43 // pred_check
          %p582 = pneg %p250
        $region62: #{tpu_custom_call.1} parent=43 // pred_check_branch
          %584 = sbr.rel (%p582) target = $region64
        $region63: #{tpu_custom_call.1} parent=43 // pred_region
          %s585 = sand.u32 %s25, 1
          %s586 = scalar_lea.sflag [#allocation5], %s585
          %s587 = sand.u32 %s240, 1
          %s588 = smul.addr %s587, 16
          %s589 = scalar_lea.vmem [#allocation16], %s588
          %s591 = ssub.s32 256, 256
          %592 = vsyncadd %s586, %s591
          %s593 = smul.addr %s33, 4
          %s594 = smul.addr %s593, 64
          %s595 = scalar_lea.hbm %s8, %s594
          %s596 = sshll.u32 %s589, 4
          %s597 = int_to_ptr.vmem [resolvable:$true] %s596
          %602 = dma.hbm_to_vmem [thread:$0]  %s595, 256, %s597, %s586, 64, 64, 4
        $region64: #{tpu_custom_call.1} parent=43 // pred_fallthru
          _
        // Predicated region
        $region65: #{tpu_custom_call.1} parent=43 // pred_check
          %p603 = pneg %p276
        $region66: #{tpu_custom_call.1} parent=43 // pred_check_branch
          %605 = sbr.rel (%p603) target = $region68
        $region67: #{tpu_custom_call.1} parent=43 // pred_region
          %s606 = sand.u32 %s25, 1
          %s607 = scalar_lea.sflag [#allocation5], %s606
          %s608 = sand.u32 %s266, 1
          %s609 = scalar_lea.vmem [#allocation17], %s608
          %s611 = ssub.s32 16, 16
          %612 = vsyncadd %s607, %s611
          %s613 = smul.addr %s33, 16
          %s614 = scalar_lea.hbm %s9, %s613
          %s616 = sshll.u32 %s609, 4
          %s617 = int_to_ptr.vmem [resolvable:$true] %s616
          %619 = dma.hbm_to_vmem [thread:$0]  %s614, 16, %s617, %s607
        $region68: #{tpu_custom_call.1} parent=43 // pred_fallthru
          _
        // Predicated region
        $region69: #{tpu_custom_call.1} parent=43 // pred_check
          %p620 = pneg %p302
        $region70: #{tpu_custom_call.1} parent=43 // pred_check_branch
          %622 = sbr.rel (%p620) target = $region72
        $region71: #{tpu_custom_call.1} parent=43 // pred_region
          %s623 = sand.u32 %s25, 1
          %s624 = scalar_lea.sflag [#allocation5], %s623
          %s625 = sand.u32 %s292, 1
          %s626 = smul.addr %s625, 64
          %s627 = scalar_lea.vmem [#allocation18], %s626
          %s629 = ssub.s32 1024, 1024
          %630 = vsyncadd %s624, %s629
          %s631 = smul.addr %s33, 16
          %s632 = smul.addr %s631, 64
          %s633 = scalar_lea.hbm %s10, %s632
          %s634 = sshll.u32 %s627, 4
          %s635 = int_to_ptr.vmem [resolvable:$true] %s634
          %640 = dma.hbm_to_vmem [thread:$0]  %s633, 1024, %s635, %s624, 64, 64, 4
        $region72: #{tpu_custom_call.1} parent=43 // pred_fallthru
          _
      $region44: #{tpu_custom_call.1} parent=5 // pred_fallthru
        _
      %p641 = scmp.le.s32.totalorder 1, %s25
      %p642 = scmp.lt.s32.totalorder %s25, 3
      %p643 = pnand %p641, %p642
      %p644 = pneg %p643
      // Predicated region
      $region73: #{tpu_custom_call.1} parent=5 // pred_check
        _
      $region74: #{tpu_custom_call.1} parent=5 // pred_check_branch
        %646 = sbr.rel (%p643) target = $region76
      $region75: #{tpu_custom_call.1} parent=5 // pred_region
        %s647 = ssub.s32 %s25, 1
        // Predicated region
        $region77: #{tpu_custom_call.1} parent=75 // pred_check
          %p648 = pneg %p63
        $region78: #{tpu_custom_call.1} parent=75 // pred_check_branch
          %650 = sbr.rel (%p648) target = $region80
        $region79: #{tpu_custom_call.1} parent=75 // pred_region
          %651 = dma.done [#allocation5], 256
        $region80: #{tpu_custom_call.1} parent=75 // pred_fallthru
          _
        // Predicated region
        $region81: #{tpu_custom_call.1} parent=75 // pred_check
          %p652 = pneg %p84
        $region82: #{tpu_custom_call.1} parent=75 // pred_check_branch
          %654 = sbr.rel (%p652) target = $region84
        $region83: #{tpu_custom_call.1} parent=75 // pred_region
          %655 = dma.done [#allocation8], 256
        $region84: #{tpu_custom_call.1} parent=75 // pred_fallthru
          _
        // Predicated region
        $region85: #{tpu_custom_call.1} parent=75 // pred_check
          %p656 = pneg %p105
        $region86: #{tpu_custom_call.1} parent=75 // pred_check_branch
          %658 = sbr.rel (%p656) target = $region88
        $region87: #{tpu_custom_call.1} parent=75 // pred_region
          %659 = dma.done [#allocation8], 128
        $region88: #{tpu_custom_call.1} parent=75 // pred_fallthru
          _
        // Predicated region
        $region89: #{tpu_custom_call.1} parent=75 // pred_check
          %p660 = pneg %p126
        $region90: #{tpu_custom_call.1} parent=75 // pred_check_branch
          %662 = sbr.rel (%p660) target = $region92
        $region91: #{tpu_custom_call.1} parent=75 // pred_region
          %663 = dma.done [#allocation11], 16
        $region92: #{tpu_custom_call.1} parent=75 // pred_fallthru
          _
        %s664 = sand.u32 %s30, 1
        %s665 = scalar_lea.sflag [#allocation5], %s664
        %s666 = sand.u32 %s139, 1
        %s667 = smul.addr %s666, 16
        %s668 = scalar_lea.vmem [#allocation12], %s667
        // Predicated region
        $region93: #{tpu_custom_call.1} parent=75 // pred_check
          %p669 = pneg %p152
        $region94: #{tpu_custom_call.1} parent=75 // pred_check_branch
          %671 = sbr.rel (%p669) target = $region96
        $region95: #{tpu_custom_call.1} parent=75 // pred_region
          %672 = dma.done %s665, 256
        $region96: #{tpu_custom_call.1} parent=75 // pred_fallthru
          _
        %s673 = sand.u32 %s30, 1
        %s674 = scalar_lea.sflag [#allocation5], %s673
        %s675 = sand.u32 %s165, 1
        %s676 = scalar_lea.vmem [#allocation13], %s675
        // Predicated region
        $region97: #{tpu_custom_call.1} parent=75 // pred_check
          %p677 = pneg %p178
        $region98: #{tpu_custom_call.1} parent=75 // pred_check_branch
          %679 = sbr.rel (%p677) target = $region100
        $region99: #{tpu_custom_call.1} parent=75 // pred_region
          %680 = dma.done %s674, 16
        $region100: #{tpu_custom_call.1} parent=75 // pred_fallthru
          _
        %s681 = sand.u32 %s30, 1
        %s682 = scalar_lea.sflag [#allocation5], %s681
        %s683 = sand.u32 %s191, 1
        %s684 = smul.addr %s683, 16
        %s685 = scalar_lea.vmem [#allocation14], %s684
        // Predicated region
        $region101: #{tpu_custom_call.1} parent=75 // pred_check
          %p686 = pneg %p204
        $region102: #{tpu_custom_call.1} parent=75 // pred_check_branch
          %688 = sbr.rel (%p686) target = $region104
        $region103: #{tpu_custom_call.1} parent=75 // pred_region
          %689 = dma.done %s682, 256
        $region104: #{tpu_custom_call.1} parent=75 // pred_fallthru
          _
        %s690 = sand.u32 %s30, 1
        %s691 = scalar_lea.sflag [#allocation5], %s690
        %s692 = sand.u32 %s217, 1
        %s693 = smul.addr %s692, 8
        %s694 = scalar_lea.vmem [#allocation15], %s693
        // Predicated region
        $region105: #{tpu_custom_call.1} parent=75 // pred_check
          %p695 = pneg %p230
        $region106: #{tpu_custom_call.1} parent=75 // pred_check_branch
          %697 = sbr.rel (%p695) target = $region108
        $region107: #{tpu_custom_call.1} parent=75 // pred_region
          %698 = dma.done %s691, 128
        $region108: #{tpu_custom_call.1} parent=75 // pred_fallthru
          _
        %s699 = sand.u32 %s30, 1
        %s700 = scalar_lea.sflag [#allocation5], %s699
        %s701 = sand.u32 %s243, 1
        %s702 = smul.addr %s701, 16
        %s703 = scalar_lea.vmem [#allocation16], %s702
        // Predicated region
        $region109: #{tpu_custom_call.1} parent=75 // pred_check
          %p704 = pneg %p256
        $region110: #{tpu_custom_call.1} parent=75 // pred_check_branch
          %706 = sbr.rel (%p704) target = $region112
        $region111: #{tpu_custom_call.1} parent=75 // pred_region
          %707 = dma.done %s700, 256
        $region112: #{tpu_custom_call.1} parent=75 // pred_fallthru
          _
        %s708 = sand.u32 %s30, 1
        %s709 = scalar_lea.sflag [#allocation5], %s708
        %s710 = sand.u32 %s269, 1
        %s711 = scalar_lea.vmem [#allocation17], %s710
        // Predicated region
        $region113: #{tpu_custom_call.1} parent=75 // pred_check
          %p712 = pneg %p282
        $region114: #{tpu_custom_call.1} parent=75 // pred_check_branch
          %714 = sbr.rel (%p712) target = $region116
        $region115: #{tpu_custom_call.1} parent=75 // pred_region
          %715 = dma.done %s709, 16
        $region116: #{tpu_custom_call.1} parent=75 // pred_fallthru
          _
        %s716 = sand.u32 %s30, 1
        %s717 = scalar_lea.sflag [#allocation5], %s716
        %s718 = sand.u32 %s295, 1
        %s719 = smul.addr %s718, 64
        %s720 = scalar_lea.vmem [#allocation18], %s719
        // Predicated region
        $region117: #{tpu_custom_call.1} parent=75 // pred_check
          %p721 = pneg %p308
        $region118: #{tpu_custom_call.1} parent=75 // pred_check_branch
          %723 = sbr.rel (%p721) target = $region120
        $region119: #{tpu_custom_call.1} parent=75 // pred_region
          %724 = dma.done %s717, 1024
        $region120: #{tpu_custom_call.1} parent=75 // pred_fallthru
          _
        // Predicated region
        $region121: #{tpu_custom_call.1} parent=75 // pred_check
          %p725 = pneg %p329
        $region122: #{tpu_custom_call.1} parent=75 // pred_check_branch
          %727 = sbr.rel (%p725) target = $region124
        $region123: #{tpu_custom_call.1} parent=75 // pred_region
          %728 = dma.done [#allocation8], 32
        $region124: #{tpu_custom_call.1} parent=75 // pred_fallthru
          _
        // Predicated region
        $region125: #{tpu_custom_call.1} parent=75 // pred_check
          %p729 = pneg %p350
        $region126: #{tpu_custom_call.1} parent=75 // pred_check_branch
          %731 = sbr.rel (%p729) target = $region128
        $region127: #{tpu_custom_call.1} parent=75 // pred_region
          %732 = dma.done [#allocation11], 512
        $region128: #{tpu_custom_call.1} parent=75 // pred_fallthru
          _
        // Predicated region
        $region129: #{tpu_custom_call.1} parent=75 // pred_check
          %p733 = pneg %p371
        $region130: #{tpu_custom_call.1} parent=75 // pred_check_branch
          %735 = sbr.rel (%p733) target = $region132
        $region131: #{tpu_custom_call.1} parent=75 // pred_region
          %736 = dma.done [#allocation22], 16
        $region132: #{tpu_custom_call.1} parent=75 // pred_fallthru
          _
        %p737 = pneg %p63
        %p738 = pneg %p60
        %p739 = pneg %p84
        %p740 = pneg %p81
        %p741 = pneg %p105
        %p742 = pneg %p102
        %p743 = pneg %p126
        %p744 = pneg %p123
        %s745 = sand.u32 %s30, 1
        %s746 = scalar_lea.sflag [#allocation5], %s745
        %s747 = sand.u32 %s139, 1
        %s748 = smul.addr %s747, 16
        %s749 = scalar_lea.vmem [#allocation12], %s748
        %p750 = pneg %p152
        %p751 = pneg %p149
        %s752 = sand.u32 %s30, 1
        %s753 = scalar_lea.sflag [#allocation5], %s752
        %s754 = sand.u32 %s165, 1
        %s755 = scalar_lea.vmem [#allocation13], %s754
        %p756 = pneg %p178
        %p757 = pneg %p175
        %s758 = sand.u32 %s30, 1
        %s759 = scalar_lea.sflag [#allocation5], %s758
        %s760 = sand.u32 %s191, 1
        %s761 = smul.addr %s760, 16
        %s762 = scalar_lea.vmem [#allocation14], %s761
        %p763 = pneg %p204
        %p764 = pneg %p201
        %s765 = sand.u32 %s30, 1
        %s766 = scalar_lea.sflag [#allocation5], %s765
        %s767 = sand.u32 %s217, 1
        %s768 = smul.addr %s767, 8
        %s769 = scalar_lea.vmem [#allocation15], %s768
        %p770 = pneg %p230
        %p771 = pneg %p227
        %s772 = sand.u32 %s30, 1
        %s773 = scalar_lea.sflag [#allocation5], %s772
        %s774 = sand.u32 %s243, 1
        %s775 = smul.addr %s774, 16
        %s776 = scalar_lea.vmem [#allocation16], %s775
        %p777 = pneg %p256
        %p778 = pneg %p253
        %s779 = sand.u32 %s30, 1
        %s780 = scalar_lea.sflag [#allocation5], %s779
        %s781 = sand.u32 %s269, 1
        %s782 = scalar_lea.vmem [#allocation17], %s781
        %p783 = pneg %p282
        %p784 = pneg %p279
        %s785 = sand.u32 %s30, 1
        %s786 = scalar_lea.sflag [#allocation5], %s785
        %s787 = sand.u32 %s295, 1
        %s788 = smul.addr %s787, 64
        %s789 = scalar_lea.vmem [#allocation18], %s788
        %p790 = pneg %p308
        %p791 = pneg %p305
        %p792 = pneg %p329
        %p793 = pneg %p326
        %p794 = pneg %p350
        %p795 = pneg %p347
        %p796 = pneg %p371
        %p797 = pneg %p368
        %p798 = pneg %p397
        %p799 = pneg %p394
        %s800 = smul.u32 2, %s34
        %s801 = smul.u32 2, %s34
        %p803 = scmp.eq.s32.totalorder %s35, 0
        // Predicated region
        $region133: #{tpu_custom_call.1} parent=75 // pred_check
          %p804 = pneg %p803
        $region134: #{tpu_custom_call.1} parent=75 // pred_check_branch
          %806 = sbr.rel (%p804) target = $region136
        $region135: #{tpu_custom_call.1} parent=75 // pred_region
          %v807 = vld [vmem:[#allocation4] sm:$0xf]
          %v808 = vld [vmem:[#allocation4 + $0x4] sm:$0xf]
          %v809 = vld [vmem:[#allocation4 + $0x8] sm:$0xf]
          %v810 = vld [vmem:[#allocation4 + $0xc] sm:$0xf]
          %v811 = vld [vmem:[#allocation9] sm:$0xf]
          %v812 = vld [vmem:[#allocation9 + $0x4] sm:$0x3]
          %v817 = vunpack.c.l.b16 %v807
          %v818 = vunpack.c.l.b16 %v808
          %v819 = vunpack.c.l.b16 %v809
          %v820 = vunpack.c.l.b16 %v810
          %v821 = vpack.c.b16 %v818, %v817
          %v822 = vpack.c.b16 %v820, %v819
          %v825 = vunpack.c.l.b16 %v811
          %v826 = vunpack.c.l.b16 %v812
          %v827 = vpack.c.b16 %v826, %v825
          %vm828 = vcmask 97280
          %v830 = vsel %vm828, %v821, 0
          %v833 = vsel %vm828, %v822, 0
          %vm835 = vcmask 1045504
          %v837 = vsel %vm835, %v827, 0
          %839 = vmatprep.subr.bf16.mxu0 0
          %840 = vmatpush1.bf16.msra.mxu0 %v837
          %841 = vmatprep.subr.bf16.mxu0 0
          %842 = vmatpush1.bf16.msra.mxu0 0
          %843 = vmatprep.subr.bf16.mxu0 0
          %844 = vmatpush1.bf16.msra.mxu0 0
          %845 = vmatprep.subr.bf16.mxu0 0
          %846 = vmatpush1.bf16.msra.mxu0 0
          %847 = vmatprep.subr.bf16.mxu0 0
          %848 = vmatpush1.bf16.msra.mxu0 0
          %849 = vmatprep.subr.bf16.mxu0 0
          %850 = vmatpush1.bf16.msra.mxu0 0
          %851 = vmatprep.subr.bf16.mxu0 0
          %852 = vmatpush1.bf16.msra.mxu0 0
          %853 = vmatprep.subr.bf16.mxu0 0
          %854 = vmatpush1.bf16.msra.mxu0 0
          %855 = vmatprep.subr.bf16.mxu0 0
          %856 = vmatpush1.bf16.msra.mxu0 0
          %857 = vmatprep.subr.bf16.mxu0 0
          %858 = vmatpush1.bf16.msra.mxu0 0
          %859 = vmatprep.subr.bf16.mxu0 0
          %860 = vmatpush1.bf16.msra.mxu0 0
          %861 = vmatprep.subr.bf16.mxu0 0
          %862 = vmatpush1.bf16.msra.mxu0 0
          %863 = vmatprep.subr.bf16.mxu0 0
          %864 = vmatpush1.bf16.msra.mxu0 0
          %865 = vmatprep.subr.bf16.mxu0 0
          %866 = vmatpush1.bf16.msra.mxu0 0
          %867 = vmatprep.subr.bf16.mxu0 0
          %868 = vmatpush1.bf16.msra.mxu0 0
          %869 = vmatprep.subr.bf16.mxu0 0
          %870 = vmatpush1.bf16.msra.mxu0 0
          %871 = vmatprep.mubr.bf16.mxu0 0
          %872 = vmatmul.mubr.bf16.gmra.mrb[0].mxu0 %v830
          %v873 = vpop.f32.mrb[0].mxu0
          %v874 = vadd.f32 0.0, %v873
          %v875 = vpop.f32.mrb[0].mxu0
          %v876 = vpop.f32.mrb[0].mxu0
          %v877 = vadd.f32 0.0, %v876
          %v878 = vpop.f32.mrb[0].mxu0
          %879 = vmatprep.mubr.bf16.mxu0 0
          %880 = vmatmul.mubr.bf16.gmra.mrb[0].mxu0 %v833
          %v881 = vpop.f32.mrb[0].mxu0
          %v882 = vadd.f32 0.0, %v881
          %v883 = vpop.f32.mrb[0].mxu0
          %v884 = vpop.f32.mrb[0].mxu0
          %v885 = vadd.f32 0.0, %v884
          %v886 = vpop.f32.mrb[0].mxu0
          %887 = vdwg.mxu0
          %v888 = vld [vmem:[#allocation10] sm:$0x1]
          %v890 = vlaneseq
          %v891 = vshrl.u32 %v890, 7
          %v892 = vsub.s32 0, %v891
          %v893 = vrot.slane %v888, %v892
          %v895 = vadd.f32 %v874, %v893
          %v896 = vadd.f32 %v877, %v893
          %v897 = vadd.f32 %v882, %v893
          %v898 = vadd.f32 %v885, %v893
          %v899 = vld [vmem:[#allocation7] sm:$0xff]
          %v900 = vld [vmem:[#allocation7 + $0x8] sm:$0xff]
          %v901 = vadd.f32 %v895, %v899
          %v902 = vadd.f32 %v896, %v900
          %v903 = vadd.f32 %v897, %v899
          %v904 = vadd.f32 %v898, %v900
          %vm905 = vcmask 261120
          %906 = vst.msk [vmem:[#allocation2] sm:$0xff] %vm905, %v901
          %907 = vst.msk [vmem:[#allocation2 + $0x8] sm:$0xff] %vm905, %v902
          %908 = vst.msk [vmem:[#allocation2 + $0x10] sm:$0xff] %vm905, %v903
          %909 = vst.msk [vmem:[#allocation2 + $0x18] sm:$0xff] %vm905, %v904
          %910 = vst.msk [vmem:[#allocation3] sm:$0xff] %vm905, %v901
          %911 = vst.msk [vmem:[#allocation3 + $0x8] sm:$0xff] %vm905, %v902
          %912 = vst.msk [vmem:[#allocation3 + $0x10] sm:$0xff] %vm905, %v903
          %913 = vst.msk [vmem:[#allocation3 + $0x18] sm:$0xff] %vm905, %v904
        $region136: #{tpu_custom_call.1} parent=75 // pred_fallthru
          _
        %v914 = vld [vmem:[#allocation2] sm:$0xff]
        %v915 = vld [vmem:[#allocation2 + $0x8] sm:$0xff]
        %v916 = vld [vmem:[#allocation2 + $0x10] sm:$0xff]
        %v917 = vld [vmem:[#allocation2 + $0x18] sm:$0xff]
        %v918 = vld [vmem:[#allocation3] sm:$0xff]
        %v919 = vld [vmem:[#allocation3 + $0x8] sm:$0xff]
        %v920 = vld [vmem:[#allocation3 + $0x10] sm:$0xff]
        %v921 = vld [vmem:[#allocation3 + $0x18] sm:$0xff]
        %v922 = vld [vmem:[%s694] sm:$0x3f]
        %vm923 = vcmask 261120
        %v924 = vsel %vm923, %v918, 0.0
        %925 = vadd.xlane.f32.xlu0 %v924
        %v926 = vpop.xlane.xlu0 %925
        %v927 = vsel %vm923, %v919, 0.0
        %928 = vadd.xlane.f32.xlu0 %v927
        %v929 = vpop.xlane.xlu0 %928
        %v930 = vsel %vm923, %v920, 0.0
        %931 = vadd.xlane.f32.xlu0 %v930
        %v932 = vpop.xlane.xlu0 %931
        %v933 = vsel %vm923, %v921, 0.0
        %934 = vadd.xlane.f32.xlu0 %v933
        %v935 = vpop.xlane.xlu0 %934
        %v936 = vrcp.pop 32.0
        %v937 = vmul.f32 %v926, %v936
        %v938 = vmul.f32 %v929, %v936
        %v939 = vmul.f32 %v932, %v936
        %v940 = vmul.f32 %v935, %v936
        %v941 = vsub.f32 %v918, %v937
        %v942 = vsub.f32 %v919, %v938
        %v943 = vsub.f32 %v920, %v939
        %v944 = vsub.f32 %v921, %v940
        %v945 = vmul.f32 %v941, %v941
        %v946 = vmul.f32 %v942, %v942
        %v947 = vmul.f32 %v943, %v943
        %v948 = vmul.f32 %v944, %v944
        %v949 = vsel %vm923, %v945, 0.0
        %950 = vadd.xlane.f32.xlu0 %v949
        %v951 = vpop.xlane.xlu0 %950
        %v952 = vsel %vm923, %v946, 0.0
        %953 = vadd.xlane.f32.xlu0 %v952
        %v954 = vpop.xlane.xlu0 %953
        %v955 = vsel %vm923, %v947, 0.0
        %956 = vadd.xlane.f32.xlu0 %v955
        %v957 = vpop.xlane.xlu0 %956
        %v958 = vsel %vm923, %v948, 0.0
        %959 = vadd.xlane.f32.xlu0 %v958
        %v960 = vpop.xlane.xlu0 %959
        %v961 = vmul.f32 %v951, %v936
        %v962 = vmul.f32 %v954, %v936
        %v963 = vmul.f32 %v957, %v936
        %v964 = vmul.f32 %v960, %v936
        %v965 = vadd.f32 %v961, 1e-06
        %v966 = vadd.f32 %v962, 1e-06
        %v967 = vadd.f32 %v963, 1e-06
        %v968 = vadd.f32 %v964, 1e-06
        %v969 = vrsqrt.pop %v965
        %v970 = vrsqrt.pop %v966
        %v971 = vrsqrt.pop %v967
        %v972 = vrsqrt.pop %v968
        %v973 = vmul.f32 %v941, %v969
        %v974 = vmul.f32 %v942, %v970
        %v975 = vmul.f32 %v943, %v971
        %v976 = vmul.f32 %v944, %v972
        %v977 = vlaneseq
        %v978 = vshrl.u32 %v977, 7
        %v979 = vsub.s32 0, %v978
        %v980 = vrot.slane %v922, %v979
        %v981 = vmul.f32 %v973, %v980
        %v982 = vmul.f32 %v974, %v980
        %v983 = vmul.f32 %v975, %v980
        %v984 = vmul.f32 %v976, %v980
        %v985 = vlaneseq
        %v986 = vshrl.u32 %v985, 7
        %v987 = vsub.s32 1, %v986
        %v988 = vrot.slane %v922, %v987
        %v989 = vadd.f32 %v981, %v988
        %v990 = vadd.f32 %v982, %v988
        %v991 = vadd.f32 %v983, %v988
        %v992 = vadd.f32 %v984, %v988
        %v993 = vpack.c.bf16 %v990, %v989
        %v994 = vpack.c.bf16 %v992, %v991
        %v995 = vld [vmem:[%s668] sm:$0xf]
        %v996 = vld [vmem:[%s668 + $0x4] sm:$0xf]
        %v997 = vld [vmem:[%s668 + $0x8] sm:$0xf]
        %v998 = vld [vmem:[%s668 + $0xc] sm:$0xf]
        %v999 = vld [vmem:[%s676] sm:$0x1]
        %v1001 = vlaneseq
        %v1002 = vshrl.u32 %v1001, 7
        %v1003 = vsub.s32 0, %v1002
        %v1004 = vrot.slane %v999, %v1003
        %v1010 = vunpack.c.l.b16 %v995
        %v1011 = vunpack.c.l.b16 %v996
        %v1012 = vunpack.c.l.b16 %v997
        %v1013 = vunpack.c.l.b16 %v998
        %v1014 = vpack.c.b16 %v1011, %v1010
        %v1015 = vpack.c.b16 %v1013, %v1012
        %v1019 = vsel %vm923, %v993, 0
        %v1022 = vsel %vm923, %v994, 0
        %1024 = vmatprep.subr.bf16.mxu0 0
        %1025 = vmatpush1.bf16.msra.mxu0 %v1014
        %1026 = vmatprep.subr.bf16.mxu0 0
        %1027 = vmatpush1.bf16.msra.mxu0 %v1015
        %1028 = vmatprep.subr.bf16.mxu0 0
        %1029 = vmatpush1.bf16.msra.mxu0 0
        %1030 = vmatprep.subr.bf16.mxu0 0
        %1031 = vmatpush1.bf16.msra.mxu0 0
        %1032 = vmatprep.subr.bf16.mxu0 0
        %1033 = vmatpush1.bf16.msra.mxu0 0
        %1034 = vmatprep.subr.bf16.mxu0 0
        %1035 = vmatpush1.bf16.msra.mxu0 0
        %1036 = vmatprep.subr.bf16.mxu0 0
        %1037 = vmatpush1.bf16.msra.mxu0 0
        %1038 = vmatprep.subr.bf16.mxu0 0
        %1039 = vmatpush1.bf16.msra.mxu0 0
        %1040 = vmatprep.subr.bf16.mxu0 0
        %1041 = vmatpush1.bf16.msra.mxu0 0
        %1042 = vmatprep.subr.bf16.mxu0 0
        %1043 = vmatpush1.bf16.msra.mxu0 0
        %1044 = vmatprep.subr.bf16.mxu0 0
        %1045 = vmatpush1.bf16.msra.mxu0 0
        %1046 = vmatprep.subr.bf16.mxu0 0
        %1047 = vmatpush1.bf16.msra.mxu0 0
        %1048 = vmatprep.subr.bf16.mxu0 0
        %1049 = vmatpush1.bf16.msra.mxu0 0
        %1050 = vmatprep.subr.bf16.mxu0 0
        %1051 = vmatpush1.bf16.msra.mxu0 0
        %1052 = vmatprep.subr.bf16.mxu0 0
        %1053 = vmatpush1.bf16.msra.mxu0 0
        %1054 = vmatprep.subr.bf16.mxu0 0
        %1055 = vmatpush1.bf16.msra.mxu0 0
        %1056 = vmatprep.mubr.bf16.mxu0 0
        %1057 = vmatmul.mubr.bf16.gmra.mrb[0].mxu0 %v1019
        %v1058 = vpop.f32.mrb[0].mxu0
        %v1059 = vadd.f32 %v1004, %v1058
        %v1060 = vpop.f32.mrb[0].mxu0
        %v1061 = vpop.f32.mrb[0].mxu0
        %v1062 = vadd.f32 %v1004, %v1061
        %v1063 = vpop.f32.mrb[0].mxu0
        %1064 = vmatprep.mubr.bf16.mxu0 0
        %1065 = vmatmul.mubr.bf16.gmra.mrb[0].mxu0 %v1022
        %v1066 = vpop.f32.mrb[0].mxu0
        %v1067 = vadd.f32 %v1004, %v1066
        %v1068 = vpop.f32.mrb[0].mxu0
        %v1069 = vpop.f32.mrb[0].mxu0
        %v1070 = vadd.f32 %v1004, %v1069
        %v1071 = vpop.f32.mrb[0].mxu0
        %1072 = vdwg.mxu0
        %v1073 = vpack.c.bf16 %v1062, %v1059
        %v1074 = vpack.c.bf16 %v1070, %v1067
        %1076 = vrot.lane.b32.xlu0 %v1073, 96
        %v1077 = vpop.permute.xlu0 %1076
        %vm1078 = vcmask 64512
        %v1080 = vsel %vm1078, %v1073, 0
        %v1083 = vsel %vm1078, %v1077, 0
        %1085 = vmatprep.subr.bf16.mxu0 0
        %1086 = vmatpush1.bf16.xpose.msra.mxu0 %v1083
        %1087 = vmatprep.subr.bf16.mxu0 0
        %1088 = vmatpush1.bf16.xpose.msra.mxu0 0
        %1089 = vmatprep.subr.bf16.mxu0 0
        %1090 = vmatpush1.bf16.xpose.msra.mxu0 0
        %1091 = vmatprep.subr.bf16.mxu0 0
        %1092 = vmatpush1.bf16.xpose.msra.mxu0 0
        %1093 = vmatprep.subr.bf16.mxu0 0
        %1094 = vmatpush1.bf16.xpose.msra.mxu0 0
        %1095 = vmatprep.subr.bf16.mxu0 0
        %1096 = vmatpush1.bf16.xpose.msra.mxu0 0
        %1097 = vmatprep.subr.bf16.mxu0 0
        %1098 = vmatpush1.bf16.xpose.msra.mxu0 0
        %1099 = vmatprep.subr.bf16.mxu0 0
        %1100 = vmatpush1.bf16.xpose.msra.mxu0 0
        %1101 = vmatprep.subr.bf16.mxu0 0
        %1102 = vmatpush1.bf16.xpose.msra.mxu0 0
        %1103 = vmatprep.subr.bf16.mxu0 0
        %1104 = vmatpush1.bf16.xpose.msra.mxu0 0
        %1105 = vmatprep.subr.bf16.mxu0 0
        %1106 = vmatpush1.bf16.xpose.msra.mxu0 0
        %1107 = vmatprep.subr.bf16.mxu0 0
        %1108 = vmatpush1.bf16.xpose.msra.mxu0 0
        %1109 = vmatprep.subr.bf16.mxu0 0
        %1110 = vmatpush1.bf16.xpose.msra.mxu0 0
        %1111 = vmatprep.subr.bf16.mxu0 0
        %1112 = vmatpush1.bf16.xpose.msra.mxu0 0
        %1113 = vmatprep.subr.bf16.mxu0 0
        %1114 = vmatpush1.bf16.xpose.msra.mxu0 0
        %1115 = vmatprep.subr.bf16.mxu0 0
        %1116 = vmatpush1.bf16.xpose.msra.mxu0 0
        %1117 = vmatprep.mubr.bf16.mxu0 0
        %1118 = vmatmul.mubr.bf16.gmra.mrb[0].mxu0 %v1080
        %v1119 = vpop.f32.mrb[0].mxu0
        %v1120 = vadd.f32 0.0, %v1119
        %v1121 = vpop.f32.mrb[0].mxu0
        %v1122 = vpop.f32.mrb[0].mxu0
        %v1123 = vadd.f32 0.0, %v1122
        %v1124 = vpop.f32.mrb[0].mxu0
        %1125 = vdwg.mxu0
        %1127 = vrot.lane.b32.xlu0 %v1074, 96
        %v1128 = vpop.permute.xlu0 %1127
        %v1130 = vsel %vm1078, %v1074, 0
        %v1133 = vsel %vm1078, %v1128, 0
        %1135 = vmatprep.subr.bf16.mxu0 0
        %1136 = vmatpush1.bf16.xpose.msra.mxu0 %v1133
        %1137 = vmatprep.subr.bf16.mxu0 0
        %1138 = vmatpush1.bf16.xpose.msra.mxu0 0
        %1139 = vmatprep.subr.bf16.mxu0 0
        %1140 = vmatpush1.bf16.xpose.msra.mxu0 0
        %1141 = vmatprep.subr.bf16.mxu0 0
        %1142 = vmatpush1.bf16.xpose.msra.mxu0 0
        %1143 = vmatprep.subr.bf16.mxu0 0
        %1144 = vmatpush1.bf16.xpose.msra.mxu0 0
        %1145 = vmatprep.subr.bf16.mxu0 0
        %1146 = vmatpush1.bf16.xpose.msra.mxu0 0
        %1147 = vmatprep.subr.bf16.mxu0 0
        %1148 = vmatpush1.bf16.xpose.msra.mxu0 0
        %1149 = vmatprep.subr.bf16.mxu0 0
        %1150 = vmatpush1.bf16.xpose.msra.mxu0 0
        %1151 = vmatprep.subr.bf16.mxu0 0
        %1152 = vmatpush1.bf16.xpose.msra.mxu0 0
        %1153 = vmatprep.subr.bf16.mxu0 0
        %1154 = vmatpush1.bf16.xpose.msra.mxu0 0
        %1155 = vmatprep.subr.bf16.mxu0 0
        %1156 = vmatpush1.bf16.xpose.msra.mxu0 0
        %1157 = vmatprep.subr.bf16.mxu0 0
        %1158 = vmatpush1.bf16.xpose.msra.mxu0 0
        %1159 = vmatprep.subr.bf16.mxu0 0
        %1160 = vmatpush1.bf16.xpose.msra.mxu0 0
        %1161 = vmatprep.subr.bf16.mxu0 0
        %1162 = vmatpush1.bf16.xpose.msra.mxu0 0
        %1163 = vmatprep.subr.bf16.mxu0 0
        %1164 = vmatpush1.bf16.xpose.msra.mxu0 0
        %1165 = vmatprep.subr.bf16.mxu0 0
        %1166 = vmatpush1.bf16.xpose.msra.mxu0 0
        %1167 = vmatprep.mubr.bf16.mxu0 0
        %1168 = vmatmul.mubr.bf16.gmra.mrb[0].mxu0 %v1130
        %v1169 = vpop.f32.mrb[0].mxu0
        %v1170 = vadd.f32 0.0, %v1169
        %v1171 = vpop.f32.mrb[0].mxu0
        %v1172 = vpop.f32.mrb[0].mxu0
        %v1173 = vadd.f32 0.0, %v1172
        %v1174 = vpop.f32.mrb[0].mxu0
        %1175 = vdwg.mxu0
        %vm1176 = vcmask 130048
        %v1177 = vsel %vm1176, %v1120, -inf
        %1178 = vmax.xlane.f32.xlu0 %v1177
        %v1179 = vpop.xlane.xlu0 %1178
        %v1180 = vsel %vm1176, %v1123, -inf
        %1181 = vmax.xlane.f32.xlu0 %v1180
        %v1182 = vpop.xlane.xlu0 %1181
        %v1183 = vsel %vm1176, %v1170, -inf
        %1184 = vmax.xlane.f32.xlu0 %v1183
        %v1185 = vpop.xlane.xlu0 %1184
        %v1186 = vsel %vm1176, %v1173, -inf
        %1187 = vmax.xlane.f32.xlu0 %v1186
        %v1188 = vpop.xlane.xlu0 %1187
        %v1189 = vsub.f32 %v1120, %v1179
        %v1190 = vsub.f32 %v1123, %v1182
        %v1191 = vsub.f32 %v1170, %v1185
        %v1192 = vsub.f32 %v1173, %v1188
        %v1193 = vmul.f32 %v1189, 1.442695
        %v1194 = vpow.pop %v1193
        %v1195 = vmul.f32 %v1190, 1.442695
        %v1196 = vpow.pop %v1195
        %v1197 = vmul.f32 %v1191, 1.442695
        %v1198 = vpow.pop %v1197
        %v1199 = vmul.f32 %v1192, 1.442695
        %v1200 = vpow.pop %v1199
        %v1201 = vsel %vm1176, %v1194, 0.0
        %1202 = vadd.xlane.f32.xlu0 %v1201
        %v1203 = vpop.xlane.xlu0 %1202
        %v1204 = vsel %vm1176, %v1196, 0.0
        %1205 = vadd.xlane.f32.xlu0 %v1204
        %v1206 = vpop.xlane.xlu0 %1205
        %v1207 = vsel %vm1176, %v1198, 0.0
        %1208 = vadd.xlane.f32.xlu0 %v1207
        %v1209 = vpop.xlane.xlu0 %1208
        %v1210 = vsel %vm1176, %v1200, 0.0
        %1211 = vadd.xlane.f32.xlu0 %v1210
        %v1212 = vpop.xlane.xlu0 %1211
        %v1213 = vrcp.pop %v1203
        %v1214 = vrcp.pop %v1206
        %v1215 = vrcp.pop %v1209
        %v1216 = vrcp.pop %v1212
        %v1217 = vmul.f32 %v1194, %v1213
        %v1218 = vmul.f32 %v1196, %v1214
        %v1219 = vmul.f32 %v1198, %v1215
        %v1220 = vmul.f32 %v1200, %v1216
        %v1221 = vpack.c.bf16 %v1218, %v1217
        %v1222 = vpack.c.bf16 %v1220, %v1219
        %1223 = vrot.lane.b32.xlu0 %v1073, 64
        %v1224 = vpop.permute.xlu0 %1223
        %v1227 = vsel %vm1176, %v1221, 0
        %1229 = vmatprep.subr.bf16.mxu0 0
        %1230 = vmatpush1.bf16.msra.mxu0 %v1224
        %1231 = vmatprep.subr.bf16.mxu0 0
        %1232 = vmatpush1.bf16.msra.mxu0 0
        %1233 = vmatprep.subr.bf16.mxu0 0
        %1234 = vmatpush1.bf16.msra.mxu0 0
        %1235 = vmatprep.subr.bf16.mxu0 0
        %1236 = vmatpush1.bf16.msra.mxu0 0
        %1237 = vmatprep.subr.bf16.mxu0 0
        %1238 = vmatpush1.bf16.msra.mxu0 0
        %1239 = vmatprep.subr.bf16.mxu0 0
        %1240 = vmatpush1.bf16.msra.mxu0 0
        %1241 = vmatprep.subr.bf16.mxu0 0
        %1242 = vmatpush1.bf16.msra.mxu0 0
        %1243 = vmatprep.subr.bf16.mxu0 0
        %1244 = vmatpush1.bf16.msra.mxu0 0
        %1245 = vmatprep.subr.bf16.mxu0 0
        %1246 = vmatpush1.bf16.msra.mxu0 0
        %1247 = vmatprep.subr.bf16.mxu0 0
        %1248 = vmatpush1.bf16.msra.mxu0 0
        %1249 = vmatprep.subr.bf16.mxu0 0
        %1250 = vmatpush1.bf16.msra.mxu0 0
        %1251 = vmatprep.subr.bf16.mxu0 0
        %1252 = vmatpush1.bf16.msra.mxu0 0
        %1253 = vmatprep.subr.bf16.mxu0 0
        %1254 = vmatpush1.bf16.msra.mxu0 0
        %1255 = vmatprep.subr.bf16.mxu0 0
        %1256 = vmatpush1.bf16.msra.mxu0 0
        %1257 = vmatprep.subr.bf16.mxu0 0
        %1258 = vmatpush1.bf16.msra.mxu0 0
        %1259 = vmatprep.subr.bf16.mxu0 0
        %1260 = vmatpush1.bf16.msra.mxu0 0
        %1261 = vmatprep.mubr.bf16.mxu0 0
        %1262 = vmatmul.mubr.bf16.gmra.mrb[0].mxu0 %v1227
        %v1263 = vpop.f32.mrb[0].mxu0
        %v1264 = vadd.f32 0.0, %v1263
        %v1265 = vpop.f32.mrb[0].mxu0
        %v1266 = vpop.f32.mrb[0].mxu0
        %v1267 = vadd.f32 0.0, %v1266
        %v1268 = vpop.f32.mrb[0].mxu0
        %1269 = vdwg.mxu0
        %1270 = vrot.lane.b32.xlu0 %v1074, 64
        %v1271 = vpop.permute.xlu0 %1270
        %v1274 = vsel %vm1176, %v1222, 0
        %1276 = vmatprep.subr.bf16.mxu0 0
        %1277 = vmatpush1.bf16.msra.mxu0 %v1271
        %1278 = vmatprep.subr.bf16.mxu0 0
        %1279 = vmatpush1.bf16.msra.mxu0 0
        %1280 = vmatprep.subr.bf16.mxu0 0
        %1281 = vmatpush1.bf16.msra.mxu0 0
        %1282 = vmatprep.subr.bf16.mxu0 0
        %1283 = vmatpush1.bf16.msra.mxu0 0
        %1284 = vmatprep.subr.bf16.mxu0 0
        %1285 = vmatpush1.bf16.msra.mxu0 0
        %1286 = vmatprep.subr.bf16.mxu0 0
        %1287 = vmatpush1.bf16.msra.mxu0 0
        %1288 = vmatprep.subr.bf16.mxu0 0
        %1289 = vmatpush1.bf16.msra.mxu0 0
        %1290 = vmatprep.subr.bf16.mxu0 0
        %1291 = vmatpush1.bf16.msra.mxu0 0
        %1292 = vmatprep.subr.bf16.mxu0 0
        %1293 = vmatpush1.bf16.msra.mxu0 0
        %1294 = vmatprep.subr.bf16.mxu0 0
        %1295 = vmatpush1.bf16.msra.mxu0 0
        %1296 = vmatprep.subr.bf16.mxu0 0
        %1297 = vmatpush1.bf16.msra.mxu0 0
        %1298 = vmatprep.subr.bf16.mxu0 0
        %1299 = vmatpush1.bf16.msra.mxu0 0
        %1300 = vmatprep.subr.bf16.mxu0 0
        %1301 = vmatpush1.bf16.msra.mxu0 0
        %1302 = vmatprep.subr.bf16.mxu0 0
        %1303 = vmatpush1.bf16.msra.mxu0 0
        %1304 = vmatprep.subr.bf16.mxu0 0
        %1305 = vmatpush1.bf16.msra.mxu0 0
        %1306 = vmatprep.subr.bf16.mxu0 0
        %1307 = vmatpush1.bf16.msra.mxu0 0
        %1308 = vmatprep.mubr.bf16.mxu0 0
        %1309 = vmatmul.mubr.bf16.gmra.mrb[0].mxu0 %v1274
        %v1310 = vpop.f32.mrb[0].mxu0
        %v1311 = vadd.f32 0.0, %v1310
        %v1312 = vpop.f32.mrb[0].mxu0
        %v1313 = vpop.f32.mrb[0].mxu0
        %v1314 = vadd.f32 0.0, %v1313
        %v1315 = vpop.f32.mrb[0].mxu0
        %1316 = vdwg.mxu0
        %1317 = vrot.lane.b32.xlu0 %v1073, 120
        %v1318 = vpop.permute.xlu0 %1317
        %1319 = vrot.lane.b32.xlu0 %v1073, 88
        %v1320 = vpop.permute.xlu0 %1319
        %v1322 = vsel %vm1078, %v1318, 0
        %v1325 = vsel %vm1078, %v1320, 0
        %1327 = vmatprep.subr.bf16.mxu0 0
        %1328 = vmatpush1.bf16.xpose.msra.mxu0 %v1325
        %1329 = vmatprep.subr.bf16.mxu0 0
        %1330 = vmatpush1.bf16.xpose.msra.mxu0 0
        %1331 = vmatprep.subr.bf16.mxu0 0
        %1332 = vmatpush1.bf16.xpose.msra.mxu0 0
        %1333 = vmatprep.subr.bf16.mxu0 0
        %1334 = vmatpush1.bf16.xpose.msra.mxu0 0
        %1335 = vmatprep.subr.bf16.mxu0 0
        %1336 = vmatpush1.bf16.xpose.msra.mxu0 0
        %1337 = vmatprep.subr.bf16.mxu0 0
        %1338 = vmatpush1.bf16.xpose.msra.mxu0 0
        %1339 = vmatprep.subr.bf16.mxu0 0
        %1340 = vmatpush1.bf16.xpose.msra.mxu0 0
        %1341 = vmatprep.subr.bf16.mxu0 0
        %1342 = vmatpush1.bf16.xpose.msra.mxu0 0
        %1343 = vmatprep.subr.bf16.mxu0 0
        %1344 = vmatpush1.bf16.xpose.msra.mxu0 0
        %1345 = vmatprep.subr.bf16.mxu0 0
        %1346 = vmatpush1.bf16.xpose.msra.mxu0 0
        %1347 = vmatprep.subr.bf16.mxu0 0
        %1348 = vmatpush1.bf16.xpose.msra.mxu0 0
        %1349 = vmatprep.subr.bf16.mxu0 0
        %1350 = vmatpush1.bf16.xpose.msra.mxu0 0
        %1351 = vmatprep.subr.bf16.mxu0 0
        %1352 = vmatpush1.bf16.xpose.msra.mxu0 0
        %1353 = vmatprep.subr.bf16.mxu0 0
        %1354 = vmatpush1.bf16.xpose.msra.mxu0 0
        %1355 = vmatprep.subr.bf16.mxu0 0
        %1356 = vmatpush1.bf16.xpose.msra.mxu0 0
        %1357 = vmatprep.subr.bf16.mxu0 0
        %1358 = vmatpush1.bf16.xpose.msra.mxu0 0
        %1359 = vmatprep.mubr.bf16.mxu0 0
        %1360 = vmatmul.mubr.bf16.gmra.mrb[0].mxu0 %v1322
        %v1361 = vpop.f32.mrb[0].mxu0
        %v1362 = vadd.f32 0.0, %v1361
        %v1363 = vpop.f32.mrb[0].mxu0
        %v1364 = vpop.f32.mrb[0].mxu0
        %v1365 = vadd.f32 0.0, %v1364
        %v1366 = vpop.f32.mrb[0].mxu0
        %1367 = vdwg.mxu0
        %1368 = vrot.lane.b32.xlu0 %v1074, 120
        %v1369 = vpop.permute.xlu0 %1368
        %1370 = vrot.lane.b32.xlu0 %v1074, 88
        %v1371 = vpop.permute.xlu0 %1370
        %v1373 = vsel %vm1078, %v1369, 0
        %v1376 = vsel %vm1078, %v1371, 0
        %1378 = vmatprep.subr.bf16.mxu0 0
        %1379 = vmatpush1.bf16.xpose.msra.mxu0 %v1376
        %1380 = vmatprep.subr.bf16.mxu0 0
        %1381 = vmatpush1.bf16.xpose.msra.mxu0 0
        %1382 = vmatprep.subr.bf16.mxu0 0
        %1383 = vmatpush1.bf16.xpose.msra.mxu0 0
        %1384 = vmatprep.subr.bf16.mxu0 0
        %1385 = vmatpush1.bf16.xpose.msra.mxu0 0
        %1386 = vmatprep.subr.bf16.mxu0 0
        %1387 = vmatpush1.bf16.xpose.msra.mxu0 0
        %1388 = vmatprep.subr.bf16.mxu0 0
        %1389 = vmatpush1.bf16.xpose.msra.mxu0 0
        %1390 = vmatprep.subr.bf16.mxu0 0
        %1391 = vmatpush1.bf16.xpose.msra.mxu0 0
        %1392 = vmatprep.subr.bf16.mxu0 0
        %1393 = vmatpush1.bf16.xpose.msra.mxu0 0
        %1394 = vmatprep.subr.bf16.mxu0 0
        %1395 = vmatpush1.bf16.xpose.msra.mxu0 0
        %1396 = vmatprep.subr.bf16.mxu0 0
        %1397 = vmatpush1.bf16.xpose.msra.mxu0 0
        %1398 = vmatprep.subr.bf16.mxu0 0
        %1399 = vmatpush1.bf16.xpose.msra.mxu0 0
        %1400 = vmatprep.subr.bf16.mxu0 0
        %1401 = vmatpush1.bf16.xpose.msra.mxu0 0
        %1402 = vmatprep.subr.bf16.mxu0 0
        %1403 = vmatpush1.bf16.xpose.msra.mxu0 0
        %1404 = vmatprep.subr.bf16.mxu0 0
        %1405 = vmatpush1.bf16.xpose.msra.mxu0 0
        %1406 = vmatprep.subr.bf16.mxu0 0
        %1407 = vmatpush1.bf16.xpose.msra.mxu0 0
        %1408 = vmatprep.subr.bf16.mxu0 0
        %1409 = vmatpush1.bf16.xpose.msra.mxu0 0
        %1410 = vmatprep.mubr.bf16.mxu0 0
        %1411 = vmatmul.mubr.bf16.gmra.mrb[0].mxu0 %v1373
        %v1412 = vpop.f32.mrb[0].mxu0
        %v1413 = vadd.f32 0.0, %v1412
        %v1414 = vpop.f32.mrb[0].mxu0
        %v1415 = vpop.f32.mrb[0].mxu0
        %v1416 = vadd.f32 0.0, %v1415
        %v1417 = vpop.f32.mrb[0].mxu0
        %1418 = vdwg.mxu0
        %v1419 = vsel %vm1176, %v1362, -inf
        %1420 = vmax.xlane.f32.xlu0 %v1419
        %v1421 = vpop.xlane.xlu0 %1420
        %v1422 = vsel %vm1176, %v1365, -inf
        %1423 = vmax.xlane.f32.xlu0 %v1422
        %v1424 = vpop.xlane.xlu0 %1423
        %v1425 = vsel %vm1176, %v1413, -inf
        %1426 = vmax.xlane.f32.xlu0 %v1425
        %v1427 = vpop.xlane.xlu0 %1426
        %v1428 = vsel %vm1176, %v1416, -inf
        %1429 = vmax.xlane.f32.xlu0 %v1428
        %v1430 = vpop.xlane.xlu0 %1429
        %v1431 = vsub.f32 %v1362, %v1421
        %v1432 = vsub.f32 %v1365, %v1424
        %v1433 = vsub.f32 %v1413, %v1427
        %v1434 = vsub.f32 %v1416, %v1430
        %v1435 = vmul.f32 %v1431, 1.442695
        %v1436 = vpow.pop %v1435
        %v1437 = vmul.f32 %v1432, 1.442695
        %v1438 = vpow.pop %v1437
        %v1439 = vmul.f32 %v1433, 1.442695
        %v1440 = vpow.pop %v1439
        %v1441 = vmul.f32 %v1434, 1.442695
        %v1442 = vpow.pop %v1441
        %v1443 = vsel %vm1176, %v1436, 0.0
        %1444 = vadd.xlane.f32.xlu0 %v1443
        %v1445 = vpop.xlane.xlu0 %1444
        %v1446 = vsel %vm1176, %v1438, 0.0
        %1447 = vadd.xlane.f32.xlu0 %v1446
        %v1448 = vpop.xlane.xlu0 %1447
        %v1449 = vsel %vm1176, %v1440, 0.0
        %1450 = vadd.xlane.f32.xlu0 %v1449
        %v1451 = vpop.xlane.xlu0 %1450
        %v1452 = vsel %vm1176, %v1442, 0.0
        %1453 = vadd.xlane.f32.xlu0 %v1452
        %v1454 = vpop.xlane.xlu0 %1453
        %v1455 = vrcp.pop %v1445
        %v1456 = vrcp.pop %v1448
        %v1457 = vrcp.pop %v1451
        %v1458 = vrcp.pop %v1454
        %v1459 = vmul.f32 %v1436, %v1455
        %v1460 = vmul.f32 %v1438, %v1456
        %v1461 = vmul.f32 %v1440, %v1457
        %v1462 = vmul.f32 %v1442, %v1458
        %v1463 = vpack.c.bf16 %v1460, %v1459
        %v1464 = vpack.c.bf16 %v1462, %v1461
        %1465 = vrot.lane.b32.xlu0 %v1073, 56
        %v1466 = vpop.permute.xlu0 %1465
        %v1469 = vsel %vm1176, %v1463, 0
        %1471 = vmatprep.subr.bf16.mxu0 0
        %1472 = vmatpush1.bf16.msra.mxu0 %v1466
        %1473 = vmatprep.subr.bf16.mxu0 0
        %1474 = vmatpush1.bf16.msra.mxu0 0
        %1475 = vmatprep.subr.bf16.mxu0 0
        %1476 = vmatpush1.bf16.msra.mxu0 0
        %1477 = vmatprep.subr.bf16.mxu0 0
        %1478 = vmatpush1.bf16.msra.mxu0 0
        %1479 = vmatprep.subr.bf16.mxu0 0
        %1480 = vmatpush1.bf16.msra.mxu0 0
        %1481 = vmatprep.subr.bf16.mxu0 0
        %1482 = vmatpush1.bf16.msra.mxu0 0
        %1483 = vmatprep.subr.bf16.mxu0 0
        %1484 = vmatpush1.bf16.msra.mxu0 0
        %1485 = vmatprep.subr.bf16.mxu0 0
        %1486 = vmatpush1.bf16.msra.mxu0 0
        %1487 = vmatprep.subr.bf16.mxu0 0
        %1488 = vmatpush1.bf16.msra.mxu0 0
        %1489 = vmatprep.subr.bf16.mxu0 0
        %1490 = vmatpush1.bf16.msra.mxu0 0
        %1491 = vmatprep.subr.bf16.mxu0 0
        %1492 = vmatpush1.bf16.msra.mxu0 0
        %1493 = vmatprep.subr.bf16.mxu0 0
        %1494 = vmatpush1.bf16.msra.mxu0 0
        %1495 = vmatprep.subr.bf16.mxu0 0
        %1496 = vmatpush1.bf16.msra.mxu0 0
        %1497 = vmatprep.subr.bf16.mxu0 0
        %1498 = vmatpush1.bf16.msra.mxu0 0
        %1499 = vmatprep.subr.bf16.mxu0 0
        %1500 = vmatpush1.bf16.msra.mxu0 0
        %1501 = vmatprep.subr.bf16.mxu0 0
        %1502 = vmatpush1.bf16.msra.mxu0 0
        %1503 = vmatprep.mubr.bf16.mxu0 0
        %1504 = vmatmul.mubr.bf16.gmra.mrb[0].mxu0 %v1469
        %v1505 = vpop.f32.mrb[0].mxu0
        %v1506 = vadd.f32 0.0, %v1505
        %v1507 = vpop.f32.mrb[0].mxu0
        %v1508 = vpop.f32.mrb[0].mxu0
        %v1509 = vadd.f32 0.0, %v1508
        %v1510 = vpop.f32.mrb[0].mxu0
        %1511 = vdwg.mxu0
        %1512 = vrot.lane.b32.xlu0 %v1074, 56
        %v1513 = vpop.permute.xlu0 %1512
        %v1516 = vsel %vm1176, %v1464, 0
        %1518 = vmatprep.subr.bf16.mxu0 0
        %1519 = vmatpush1.bf16.msra.mxu0 %v1513
        %1520 = vmatprep.subr.bf16.mxu0 0
        %1521 = vmatpush1.bf16.msra.mxu0 0
        %1522 = vmatprep.subr.bf16.mxu0 0
        %1523 = vmatpush1.bf16.msra.mxu0 0
        %1524 = vmatprep.subr.bf16.mxu0 0
        %1525 = vmatpush1.bf16.msra.mxu0 0
        %1526 = vmatprep.subr.bf16.mxu0 0
        %1527 = vmatpush1.bf16.msra.mxu0 0
        %1528 = vmatprep.subr.bf16.mxu0 0
        %1529 = vmatpush1.bf16.msra.mxu0 0
        %1530 = vmatprep.subr.bf16.mxu0 0
        %1531 = vmatpush1.bf16.msra.mxu0 0
        %1532 = vmatprep.subr.bf16.mxu0 0
        %1533 = vmatpush1.bf16.msra.mxu0 0
        %1534 = vmatprep.subr.bf16.mxu0 0
        %1535 = vmatpush1.bf16.msra.mxu0 0
        %1536 = vmatprep.subr.bf16.mxu0 0
        %1537 = vmatpush1.bf16.msra.mxu0 0
        %1538 = vmatprep.subr.bf16.mxu0 0
        %1539 = vmatpush1.bf16.msra.mxu0 0
        %1540 = vmatprep.subr.bf16.mxu0 0
        %1541 = vmatpush1.bf16.msra.mxu0 0
        %1542 = vmatprep.subr.bf16.mxu0 0
        %1543 = vmatpush1.bf16.msra.mxu0 0
        %1544 = vmatprep.subr.bf16.mxu0 0
        %1545 = vmatpush1.bf16.msra.mxu0 0
        %1546 = vmatprep.subr.bf16.mxu0 0
        %1547 = vmatpush1.bf16.msra.mxu0 0
        %1548 = vmatprep.subr.bf16.mxu0 0
        %1549 = vmatpush1.bf16.msra.mxu0 0
        %1550 = vmatprep.mubr.bf16.mxu0 0
        %1551 = vmatmul.mubr.bf16.gmra.mrb[0].mxu0 %v1516
        %v1552 = vpop.f32.mrb[0].mxu0
        %v1553 = vadd.f32 0.0, %v1552
        %v1554 = vpop.f32.mrb[0].mxu0
        %v1555 = vpop.f32.mrb[0].mxu0
        %v1556 = vadd.f32 0.0, %v1555
        %v1557 = vpop.f32.mrb[0].mxu0
        %1558 = vdwg.mxu0
        %1559 = vrot.lane.b32.xlu0 %v1073, 112
        %v1560 = vpop.permute.xlu0 %1559
        %1561 = vrot.lane.b32.xlu0 %v1073, 80
        %v1562 = vpop.permute.xlu0 %1561
        %v1564 = vsel %vm1078, %v1560, 0
        %v1567 = vsel %vm1078, %v1562, 0
        %1569 = vmatprep.subr.bf16.mxu0 0
        %1570 = vmatpush1.bf16.xpose.msra.mxu0 %v1567
        %1571 = vmatprep.subr.bf16.mxu0 0
        %1572 = vmatpush1.bf16.xpose.msra.mxu0 0
        %1573 = vmatprep.subr.bf16.mxu0 0
        %1574 = vmatpush1.bf16.xpose.msra.mxu0 0
        %1575 = vmatprep.subr.bf16.mxu0 0
        %1576 = vmatpush1.bf16.xpose.msra.mxu0 0
        %1577 = vmatprep.subr.bf16.mxu0 0
        %1578 = vmatpush1.bf16.xpose.msra.mxu0 0
        %1579 = vmatprep.subr.bf16.mxu0 0
        %1580 = vmatpush1.bf16.xpose.msra.mxu0 0
        %1581 = vmatprep.subr.bf16.mxu0 0
        %1582 = vmatpush1.bf16.xpose.msra.mxu0 0
        %1583 = vmatprep.subr.bf16.mxu0 0
        %1584 = vmatpush1.bf16.xpose.msra.mxu0 0
        %1585 = vmatprep.subr.bf16.mxu0 0
        %1586 = vmatpush1.bf16.xpose.msra.mxu0 0
        %1587 = vmatprep.subr.bf16.mxu0 0
        %1588 = vmatpush1.bf16.xpose.msra.mxu0 0
        %1589 = vmatprep.subr.bf16.mxu0 0
        %1590 = vmatpush1.bf16.xpose.msra.mxu0 0
        %1591 = vmatprep.subr.bf16.mxu0 0
        %1592 = vmatpush1.bf16.xpose.msra.mxu0 0
        %1593 = vmatprep.subr.bf16.mxu0 0
        %1594 = vmatpush1.bf16.xpose.msra.mxu0 0
        %1595 = vmatprep.subr.bf16.mxu0 0
        %1596 = vmatpush1.bf16.xpose.msra.mxu0 0
        %1597 = vmatprep.subr.bf16.mxu0 0
        %1598 = vmatpush1.bf16.xpose.msra.mxu0 0
        %1599 = vmatprep.subr.bf16.mxu0 0
        %1600 = vmatpush1.bf16.xpose.msra.mxu0 0
        %1601 = vmatprep.mubr.bf16.mxu0 0
        %1602 = vmatmul.mubr.bf16.gmra.mrb[0].mxu0 %v1564
        %v1603 = vpop.f32.mrb[0].mxu0
        %v1604 = vadd.f32 0.0, %v1603
        %v1605 = vpop.f32.mrb[0].mxu0
        %v1606 = vpop.f32.mrb[0].mxu0
        %v1607 = vadd.f32 0.0, %v1606
        %v1608 = vpop.f32.mrb[0].mxu0
        %1609 = vdwg.mxu0
        %1610 = vrot.lane.b32.xlu0 %v1074, 112
        %v1611 = vpop.permute.xlu0 %1610
        %1612 = vrot.lane.b32.xlu0 %v1074, 80
        %v1613 = vpop.permute.xlu0 %1612
        %v1615 = vsel %vm1078, %v1611, 0
        %v1618 = vsel %vm1078, %v1613, 0
        %1620 = vmatprep.subr.bf16.mxu0 0
        %1621 = vmatpush1.bf16.xpose.msra.mxu0 %v1618
        %1622 = vmatprep.subr.bf16.mxu0 0
        %1623 = vmatpush1.bf16.xpose.msra.mxu0 0
        %1624 = vmatprep.subr.bf16.mxu0 0
        %1625 = vmatpush1.bf16.xpose.msra.mxu0 0
        %1626 = vmatprep.subr.bf16.mxu0 0
        %1627 = vmatpush1.bf16.xpose.msra.mxu0 0
        %1628 = vmatprep.subr.bf16.mxu0 0
        %1629 = vmatpush1.bf16.xpose.msra.mxu0 0
        %1630 = vmatprep.subr.bf16.mxu0 0
        %1631 = vmatpush1.bf16.xpose.msra.mxu0 0
        %1632 = vmatprep.subr.bf16.mxu0 0
        %1633 = vmatpush1.bf16.xpose.msra.mxu0 0
        %1634 = vmatprep.subr.bf16.mxu0 0
        %1635 = vmatpush1.bf16.xpose.msra.mxu0 0
        %1636 = vmatprep.subr.bf16.mxu0 0
        %1637 = vmatpush1.bf16.xpose.msra.mxu0 0
        %1638 = vmatprep.subr.bf16.mxu0 0
        %1639 = vmatpush1.bf16.xpose.msra.mxu0 0
        %1640 = vmatprep.subr.bf16.mxu0 0
        %1641 = vmatpush1.bf16.xpose.msra.mxu0 0
        %1642 = vmatprep.subr.bf16.mxu0 0
        %1643 = vmatpush1.bf16.xpose.msra.mxu0 0
        %1644 = vmatprep.subr.bf16.mxu0 0
        %1645 = vmatpush1.bf16.xpose.msra.mxu0 0
        %1646 = vmatprep.subr.bf16.mxu0 0
        %1647 = vmatpush1.bf16.xpose.msra.mxu0 0
        %1648 = vmatprep.subr.bf16.mxu0 0
        %1649 = vmatpush1.bf16.xpose.msra.mxu0 0
        %1650 = vmatprep.subr.bf16.mxu0 0
        %1651 = vmatpush1.bf16.xpose.msra.mxu0 0
        %1652 = vmatprep.mubr.bf16.mxu0 0
        %1653 = vmatmul.mubr.bf16.gmra.mrb[0].mxu0 %v1615
        %v1654 = vpop.f32.mrb[0].mxu0
        %v1655 = vadd.f32 0.0, %v1654
        %v1656 = vpop.f32.mrb[0].mxu0
        %v1657 = vpop.f32.mrb[0].mxu0
        %v1658 = vadd.f32 0.0, %v1657
        %v1659 = vpop.f32.mrb[0].mxu0
        %1660 = vdwg.mxu0
        %v1661 = vsel %vm1176, %v1604, -inf
        %1662 = vmax.xlane.f32.xlu0 %v1661
        %v1663 = vpop.xlane.xlu0 %1662
        %v1664 = vsel %vm1176, %v1607, -inf
        %1665 = vmax.xlane.f32.xlu0 %v1664
        %v1666 = vpop.xlane.xlu0 %1665
        %v1667 = vsel %vm1176, %v1655, -inf
        %1668 = vmax.xlane.f32.xlu0 %v1667
        %v1669 = vpop.xlane.xlu0 %1668
        %v1670 = vsel %vm1176, %v1658, -inf
        %1671 = vmax.xlane.f32.xlu0 %v1670
        %v1672 = vpop.xlane.xlu0 %1671
        %v1673 = vsub.f32 %v1604, %v1663
        %v1674 = vsub.f32 %v1607, %v1666
        %v1675 = vsub.f32 %v1655, %v1669
        %v1676 = vsub.f32 %v1658, %v1672
        %v1677 = vmul.f32 %v1673, 1.442695
        %v1678 = vpow.pop %v1677
        %v1679 = vmul.f32 %v1674, 1.442695
        %v1680 = vpow.pop %v1679
        %v1681 = vmul.f32 %v1675, 1.442695
        %v1682 = vpow.pop %v1681
        %v1683 = vmul.f32 %v1676, 1.442695
        %v1684 = vpow.pop %v1683
        %v1685 = vsel %vm1176, %v1678, 0.0
        %1686 = vadd.xlane.f32.xlu0 %v1685
        %v1687 = vpop.xlane.xlu0 %1686
        %v1688 = vsel %vm1176, %v1680, 0.0
        %1689 = vadd.xlane.f32.xlu0 %v1688
        %v1690 = vpop.xlane.xlu0 %1689
        %v1691 = vsel %vm1176, %v1682, 0.0
        %1692 = vadd.xlane.f32.xlu0 %v1691
        %v1693 = vpop.xlane.xlu0 %1692
        %v1694 = vsel %vm1176, %v1684, 0.0
        %1695 = vadd.xlane.f32.xlu0 %v1694
        %v1696 = vpop.xlane.xlu0 %1695
        %v1697 = vrcp.pop %v1687
        %v1698 = vrcp.pop %v1690
        %v1699 = vrcp.pop %v1693
        %v1700 = vrcp.pop %v1696
        %v1701 = vmul.f32 %v1678, %v1697
        %v1702 = vmul.f32 %v1680, %v1698
        %v1703 = vmul.f32 %v1682, %v1699
        %v1704 = vmul.f32 %v1684, %v1700
        %v1705 = vpack.c.bf16 %v1702, %v1701
        %v1706 = vpack.c.bf16 %v1704, %v1703
        %1707 = vrot.lane.b32.xlu0 %v1073, 48
        %v1708 = vpop.permute.xlu0 %1707
        %v1711 = vsel %vm1176, %v1705, 0
        %1713 = vmatprep.subr.bf16.mxu0 0
        %1714 = vmatpush1.bf16.msra.mxu0 %v1708
        %1715 = vmatprep.subr.bf16.mxu0 0
        %1716 = vmatpush1.bf16.msra.mxu0 0
        %1717 = vmatprep.subr.bf16.mxu0 0
        %1718 = vmatpush1.bf16.msra.mxu0 0
        %1719 = vmatprep.subr.bf16.mxu0 0
        %1720 = vmatpush1.bf16.msra.mxu0 0
        %1721 = vmatprep.subr.bf16.mxu0 0
        %1722 = vmatpush1.bf16.msra.mxu0 0
        %1723 = vmatprep.subr.bf16.mxu0 0
        %1724 = vmatpush1.bf16.msra.mxu0 0
        %1725 = vmatprep.subr.bf16.mxu0 0
        %1726 = vmatpush1.bf16.msra.mxu0 0
        %1727 = vmatprep.subr.bf16.mxu0 0
        %1728 = vmatpush1.bf16.msra.mxu0 0
        %1729 = vmatprep.subr.bf16.mxu0 0
        %1730 = vmatpush1.bf16.msra.mxu0 0
        %1731 = vmatprep.subr.bf16.mxu0 0
        %1732 = vmatpush1.bf16.msra.mxu0 0
        %1733 = vmatprep.subr.bf16.mxu0 0
        %1734 = vmatpush1.bf16.msra.mxu0 0
        %1735 = vmatprep.subr.bf16.mxu0 0
        %1736 = vmatpush1.bf16.msra.mxu0 0
        %1737 = vmatprep.subr.bf16.mxu0 0
        %1738 = vmatpush1.bf16.msra.mxu0 0
        %1739 = vmatprep.subr.bf16.mxu0 0
        %1740 = vmatpush1.bf16.msra.mxu0 0
        %1741 = vmatprep.subr.bf16.mxu0 0
        %1742 = vmatpush1.bf16.msra.mxu0 0
        %1743 = vmatprep.subr.bf16.mxu0 0
        %1744 = vmatpush1.bf16.msra.mxu0 0
        %1745 = vmatprep.mubr.bf16.mxu0 0
        %1746 = vmatmul.mubr.bf16.gmra.mrb[0].mxu0 %v1711
        %v1747 = vpop.f32.mrb[0].mxu0
        %v1748 = vadd.f32 0.0, %v1747
        %v1749 = vpop.f32.mrb[0].mxu0
        %v1750 = vpop.f32.mrb[0].mxu0
        %v1751 = vadd.f32 0.0, %v1750
        %v1752 = vpop.f32.mrb[0].mxu0
        %1753 = vdwg.mxu0
        %1754 = vrot.lane.b32.xlu0 %v1074, 48
        %v1755 = vpop.permute.xlu0 %1754
        %v1758 = vsel %vm1176, %v1706, 0
        %1760 = vmatprep.subr.bf16.mxu0 0
        %1761 = vmatpush1.bf16.msra.mxu0 %v1755
        %1762 = vmatprep.subr.bf16.mxu0 0
        %1763 = vmatpush1.bf16.msra.mxu0 0
        %1764 = vmatprep.subr.bf16.mxu0 0
        %1765 = vmatpush1.bf16.msra.mxu0 0
        %1766 = vmatprep.subr.bf16.mxu0 0
        %1767 = vmatpush1.bf16.msra.mxu0 0
        %1768 = vmatprep.subr.bf16.mxu0 0
        %1769 = vmatpush1.bf16.msra.mxu0 0
        %1770 = vmatprep.subr.bf16.mxu0 0
        %1771 = vmatpush1.bf16.msra.mxu0 0
        %1772 = vmatprep.subr.bf16.mxu0 0
        %1773 = vmatpush1.bf16.msra.mxu0 0
        %1774 = vmatprep.subr.bf16.mxu0 0
        %1775 = vmatpush1.bf16.msra.mxu0 0
        %1776 = vmatprep.subr.bf16.mxu0 0
        %1777 = vmatpush1.bf16.msra.mxu0 0
        %1778 = vmatprep.subr.bf16.mxu0 0
        %1779 = vmatpush1.bf16.msra.mxu0 0
        %1780 = vmatprep.subr.bf16.mxu0 0
        %1781 = vmatpush1.bf16.msra.mxu0 0
        %1782 = vmatprep.subr.bf16.mxu0 0
        %1783 = vmatpush1.bf16.msra.mxu0 0
        %1784 = vmatprep.subr.bf16.mxu0 0
        %1785 = vmatpush1.bf16.msra.mxu0 0
        %1786 = vmatprep.subr.bf16.mxu0 0
        %1787 = vmatpush1.bf16.msra.mxu0 0
        %1788 = vmatprep.subr.bf16.mxu0 0
        %1789 = vmatpush1.bf16.msra.mxu0 0
        %1790 = vmatprep.subr.bf16.mxu0 0
        %1791 = vmatpush1.bf16.msra.mxu0 0
        %1792 = vmatprep.mubr.bf16.mxu0 0
        %1793 = vmatmul.mubr.bf16.gmra.mrb[0].mxu0 %v1758
        %v1794 = vpop.f32.mrb[0].mxu0
        %v1795 = vadd.f32 0.0, %v1794
        %v1796 = vpop.f32.mrb[0].mxu0
        %v1797 = vpop.f32.mrb[0].mxu0
        %v1798 = vadd.f32 0.0, %v1797
        %v1799 = vpop.f32.mrb[0].mxu0
        %1800 = vdwg.mxu0
        %1801 = vrot.lane.b32.xlu0 %v1073, 104
        %v1802 = vpop.permute.xlu0 %1801
        %1803 = vrot.lane.b32.xlu0 %v1073, 72
        %v1804 = vpop.permute.xlu0 %1803
        %v1806 = vsel %vm1078, %v1802, 0
        %v1809 = vsel %vm1078, %v1804, 0
        %1811 = vmatprep.subr.bf16.mxu0 0
        %1812 = vmatpush1.bf16.xpose.msra.mxu0 %v1809
        %1813 = vmatprep.subr.bf16.mxu0 0
        %1814 = vmatpush1.bf16.xpose.msra.mxu0 0
        %1815 = vmatprep.subr.bf16.mxu0 0
        %1816 = vmatpush1.bf16.xpose.msra.mxu0 0
        %1817 = vmatprep.subr.bf16.mxu0 0
        %1818 = vmatpush1.bf16.xpose.msra.mxu0 0
        %1819 = vmatprep.subr.bf16.mxu0 0
        %1820 = vmatpush1.bf16.xpose.msra.mxu0 0
        %1821 = vmatprep.subr.bf16.mxu0 0
        %1822 = vmatpush1.bf16.xpose.msra.mxu0 0
        %1823 = vmatprep.subr.bf16.mxu0 0
        %1824 = vmatpush1.bf16.xpose.msra.mxu0 0
        %1825 = vmatprep.subr.bf16.mxu0 0
        %1826 = vmatpush1.bf16.xpose.msra.mxu0 0
        %1827 = vmatprep.subr.bf16.mxu0 0
        %1828 = vmatpush1.bf16.xpose.msra.mxu0 0
        %1829 = vmatprep.subr.bf16.mxu0 0
        %1830 = vmatpush1.bf16.xpose.msra.mxu0 0
        %1831 = vmatprep.subr.bf16.mxu0 0
        %1832 = vmatpush1.bf16.xpose.msra.mxu0 0
        %1833 = vmatprep.subr.bf16.mxu0 0
        %1834 = vmatpush1.bf16.xpose.msra.mxu0 0
        %1835 = vmatprep.subr.bf16.mxu0 0
        %1836 = vmatpush1.bf16.xpose.msra.mxu0 0
        %1837 = vmatprep.subr.bf16.mxu0 0
        %1838 = vmatpush1.bf16.xpose.msra.mxu0 0
        %1839 = vmatprep.subr.bf16.mxu0 0
        %1840 = vmatpush1.bf16.xpose.msra.mxu0 0
        %1841 = vmatprep.subr.bf16.mxu0 0
        %1842 = vmatpush1.bf16.xpose.msra.mxu0 0
        %1843 = vmatprep.mubr.bf16.mxu0 0
        %1844 = vmatmul.mubr.bf16.gmra.mrb[0].mxu0 %v1806
        %v1845 = vpop.f32.mrb[0].mxu0
        %v1846 = vadd.f32 0.0, %v1845
        %v1847 = vpop.f32.mrb[0].mxu0
        %v1848 = vpop.f32.mrb[0].mxu0
        %v1849 = vadd.f32 0.0, %v1848
        %v1850 = vpop.f32.mrb[0].mxu0
        %1851 = vdwg.mxu0
        %1852 = vrot.lane.b32.xlu0 %v1074, 104
        %v1853 = vpop.permute.xlu0 %1852
        %1854 = vrot.lane.b32.xlu0 %v1074, 72
        %v1855 = vpop.permute.xlu0 %1854
        %v1857 = vsel %vm1078, %v1853, 0
        %v1860 = vsel %vm1078, %v1855, 0
        %1862 = vmatprep.subr.bf16.mxu0 0
        %1863 = vmatpush1.bf16.xpose.msra.mxu0 %v1860
        %1864 = vmatprep.subr.bf16.mxu0 0
        %1865 = vmatpush1.bf16.xpose.msra.mxu0 0
        %1866 = vmatprep.subr.bf16.mxu0 0
        %1867 = vmatpush1.bf16.xpose.msra.mxu0 0
        %1868 = vmatprep.subr.bf16.mxu0 0
        %1869 = vmatpush1.bf16.xpose.msra.mxu0 0
        %1870 = vmatprep.subr.bf16.mxu0 0
        %1871 = vmatpush1.bf16.xpose.msra.mxu0 0
        %1872 = vmatprep.subr.bf16.mxu0 0
        %1873 = vmatpush1.bf16.xpose.msra.mxu0 0
        %1874 = vmatprep.subr.bf16.mxu0 0
        %1875 = vmatpush1.bf16.xpose.msra.mxu0 0
        %1876 = vmatprep.subr.bf16.mxu0 0
        %1877 = vmatpush1.bf16.xpose.msra.mxu0 0
        %1878 = vmatprep.subr.bf16.mxu0 0
        %1879 = vmatpush1.bf16.xpose.msra.mxu0 0
        %1880 = vmatprep.subr.bf16.mxu0 0
        %1881 = vmatpush1.bf16.xpose.msra.mxu0 0
        %1882 = vmatprep.subr.bf16.mxu0 0
        %1883 = vmatpush1.bf16.xpose.msra.mxu0 0
        %1884 = vmatprep.subr.bf16.mxu0 0
        %1885 = vmatpush1.bf16.xpose.msra.mxu0 0
        %1886 = vmatprep.subr.bf16.mxu0 0
        %1887 = vmatpush1.bf16.xpose.msra.mxu0 0
        %1888 = vmatprep.subr.bf16.mxu0 0
        %1889 = vmatpush1.bf16.xpose.msra.mxu0 0
        %1890 = vmatprep.subr.bf16.mxu0 0
        %1891 = vmatpush1.bf16.xpose.msra.mxu0 0
        %1892 = vmatprep.subr.bf16.mxu0 0
        %1893 = vmatpush1.bf16.xpose.msra.mxu0 0
        %1894 = vmatprep.mubr.bf16.mxu0 0
        %1895 = vmatmul.mubr.bf16.gmra.mrb[0].mxu0 %v1857
        %v1896 = vpop.f32.mrb[0].mxu0
        %v1897 = vadd.f32 0.0, %v1896
        %v1898 = vpop.f32.mrb[0].mxu0
        %v1899 = vpop.f32.mrb[0].mxu0
        %v1900 = vadd.f32 0.0, %v1899
        %v1901 = vpop.f32.mrb[0].mxu0
        %1902 = vdwg.mxu0
        %v1903 = vsel %vm1176, %v1846, -inf
        %1904 = vmax.xlane.f32.xlu0 %v1903
        %v1905 = vpop.xlane.xlu0 %1904
        %v1906 = vsel %vm1176, %v1849, -inf
        %1907 = vmax.xlane.f32.xlu0 %v1906
        %v1908 = vpop.xlane.xlu0 %1907
        %v1909 = vsel %vm1176, %v1897, -inf
        %1910 = vmax.xlane.f32.xlu0 %v1909
        %v1911 = vpop.xlane.xlu0 %1910
        %v1912 = vsel %vm1176, %v1900, -inf
        %1913 = vmax.xlane.f32.xlu0 %v1912
        %v1914 = vpop.xlane.xlu0 %1913
        %v1915 = vsub.f32 %v1846, %v1905
        %v1916 = vsub.f32 %v1849, %v1908
        %v1917 = vsub.f32 %v1897, %v1911
        %v1918 = vsub.f32 %v1900, %v1914
        %v1919 = vmul.f32 %v1915, 1.442695
        %v1920 = vpow.pop %v1919
        %v1921 = vmul.f32 %v1916, 1.442695
        %v1922 = vpow.pop %v1921
        %v1923 = vmul.f32 %v1917, 1.442695
        %v1924 = vpow.pop %v1923
        %v1925 = vmul.f32 %v1918, 1.442695
        %v1926 = vpow.pop %v1925
        %v1927 = vsel %vm1176, %v1920, 0.0
        %1928 = vadd.xlane.f32.xlu0 %v1927
        %v1929 = vpop.xlane.xlu0 %1928
        %v1930 = vsel %vm1176, %v1922, 0.0
        %1931 = vadd.xlane.f32.xlu0 %v1930
        %v1932 = vpop.xlane.xlu0 %1931
        %v1933 = vsel %vm1176, %v1924, 0.0
        %1934 = vadd.xlane.f32.xlu0 %v1933
        %v1935 = vpop.xlane.xlu0 %1934
        %v1936 = vsel %vm1176, %v1926, 0.0
        %1937 = vadd.xlane.f32.xlu0 %v1936
        %v1938 = vpop.xlane.xlu0 %1937
        %v1939 = vrcp.pop %v1929
        %v1940 = vrcp.pop %v1932
        %v1941 = vrcp.pop %v1935
        %v1942 = vrcp.pop %v1938
        %v1943 = vmul.f32 %v1920, %v1939
        %v1944 = vmul.f32 %v1922, %v1940
        %v1945 = vmul.f32 %v1924, %v1941
        %v1946 = vmul.f32 %v1926, %v1942
        %v1947 = vpack.c.bf16 %v1944, %v1943
        %v1948 = vpack.c.bf16 %v1946, %v1945
        %1949 = vrot.lane.b32.xlu0 %v1073, 40
        %v1950 = vpop.permute.xlu0 %1949
        %v1953 = vsel %vm1176, %v1947, 0
        %1955 = vmatprep.subr.bf16.mxu0 0
        %1956 = vmatpush1.bf16.msra.mxu0 %v1950
        %1957 = vmatprep.subr.bf16.mxu0 0
        %1958 = vmatpush1.bf16.msra.mxu0 0
        %1959 = vmatprep.subr.bf16.mxu0 0
        %1960 = vmatpush1.bf16.msra.mxu0 0
        %1961 = vmatprep.subr.bf16.mxu0 0
        %1962 = vmatpush1.bf16.msra.mxu0 0
        %1963 = vmatprep.subr.bf16.mxu0 0
        %1964 = vmatpush1.bf16.msra.mxu0 0
        %1965 = vmatprep.subr.bf16.mxu0 0
        %1966 = vmatpush1.bf16.msra.mxu0 0
        %1967 = vmatprep.subr.bf16.mxu0 0
        %1968 = vmatpush1.bf16.msra.mxu0 0
        %1969 = vmatprep.subr.bf16.mxu0 0
        %1970 = vmatpush1.bf16.msra.mxu0 0
        %1971 = vmatprep.subr.bf16.mxu0 0
        %1972 = vmatpush1.bf16.msra.mxu0 0
        %1973 = vmatprep.subr.bf16.mxu0 0
        %1974 = vmatpush1.bf16.msra.mxu0 0
        %1975 = vmatprep.subr.bf16.mxu0 0
        %1976 = vmatpush1.bf16.msra.mxu0 0
        %1977 = vmatprep.subr.bf16.mxu0 0
        %1978 = vmatpush1.bf16.msra.mxu0 0
        %1979 = vmatprep.subr.bf16.mxu0 0
        %1980 = vmatpush1.bf16.msra.mxu0 0
        %1981 = vmatprep.subr.bf16.mxu0 0
        %1982 = vmatpush1.bf16.msra.mxu0 0
        %1983 = vmatprep.subr.bf16.mxu0 0
        %1984 = vmatpush1.bf16.msra.mxu0 0
        %1985 = vmatprep.subr.bf16.mxu0 0
        %1986 = vmatpush1.bf16.msra.mxu0 0
        %1987 = vmatprep.mubr.bf16.mxu0 0
        %1988 = vmatmul.mubr.bf16.gmra.mrb[0].mxu0 %v1953
        %v1989 = vpop.f32.mrb[0].mxu0
        %v1990 = vadd.f32 0.0, %v1989
        %v1991 = vpop.f32.mrb[0].mxu0
        %v1992 = vpop.f32.mrb[0].mxu0
        %v1993 = vadd.f32 0.0, %v1992
        %v1994 = vpop.f32.mrb[0].mxu0
        %1995 = vdwg.mxu0
        %1996 = vrot.lane.b32.xlu0 %v1074, 40
        %v1997 = vpop.permute.xlu0 %1996
        %v2000 = vsel %vm1176, %v1948, 0
        %2002 = vmatprep.subr.bf16.mxu0 0
        %2003 = vmatpush1.bf16.msra.mxu0 %v1997
        %2004 = vmatprep.subr.bf16.mxu0 0
        %2005 = vmatpush1.bf16.msra.mxu0 0
        %2006 = vmatprep.subr.bf16.mxu0 0
        %2007 = vmatpush1.bf16.msra.mxu0 0
        %2008 = vmatprep.subr.bf16.mxu0 0
        %2009 = vmatpush1.bf16.msra.mxu0 0
        %2010 = vmatprep.subr.bf16.mxu0 0
        %2011 = vmatpush1.bf16.msra.mxu0 0
        %2012 = vmatprep.subr.bf16.mxu0 0
        %2013 = vmatpush1.bf16.msra.mxu0 0
        %2014 = vmatprep.subr.bf16.mxu0 0
        %2015 = vmatpush1.bf16.msra.mxu0 0
        %2016 = vmatprep.subr.bf16.mxu0 0
        %2017 = vmatpush1.bf16.msra.mxu0 0
        %2018 = vmatprep.subr.bf16.mxu0 0
        %2019 = vmatpush1.bf16.msra.mxu0 0
        %2020 = vmatprep.subr.bf16.mxu0 0
        %2021 = vmatpush1.bf16.msra.mxu0 0
        %2022 = vmatprep.subr.bf16.mxu0 0
        %2023 = vmatpush1.bf16.msra.mxu0 0
        %2024 = vmatprep.subr.bf16.mxu0 0
        %2025 = vmatpush1.bf16.msra.mxu0 0
        %2026 = vmatprep.subr.bf16.mxu0 0
        %2027 = vmatpush1.bf16.msra.mxu0 0
        %2028 = vmatprep.subr.bf16.mxu0 0
        %2029 = vmatpush1.bf16.msra.mxu0 0
        %2030 = vmatprep.subr.bf16.mxu0 0
        %2031 = vmatpush1.bf16.msra.mxu0 0
        %2032 = vmatprep.subr.bf16.mxu0 0
        %2033 = vmatpush1.bf16.msra.mxu0 0
        %2034 = vmatprep.mubr.bf16.mxu0 0
        %2035 = vmatmul.mubr.bf16.gmra.mrb[0].mxu0 %v2000
        %v2036 = vpop.f32.mrb[0].mxu0
        %v2037 = vadd.f32 0.0, %v2036
        %v2038 = vpop.f32.mrb[0].mxu0
        %v2039 = vpop.f32.mrb[0].mxu0
        %v2040 = vadd.f32 0.0, %v2039
        %v2041 = vpop.f32.mrb[0].mxu0
        %2042 = vdwg.mxu0
        %2047 = vrot.lane.b32.xlu0 %v1506, 8
        %v2048 = vpop.permute.xlu0 %2047
        %2049 = vrot.lane.b32.xlu0 %v1509, 8
        %v2050 = vpop.permute.xlu0 %2049
        %2051 = vrot.lane.b32.xlu0 %v1553, 8
        %v2052 = vpop.permute.xlu0 %2051
        %2053 = vrot.lane.b32.xlu0 %v1556, 8
        %v2054 = vpop.permute.xlu0 %2053
        %2063 = vrot.lane.b32.xlu0 %v1748, 16
        %v2064 = vpop.permute.xlu0 %2063
        %2065 = vrot.lane.b32.xlu0 %v1751, 16
        %v2066 = vpop.permute.xlu0 %2065
        %2067 = vrot.lane.b32.xlu0 %v1795, 16
        %v2068 = vpop.permute.xlu0 %2067
        %2069 = vrot.lane.b32.xlu0 %v1798, 16
        %v2070 = vpop.permute.xlu0 %2069
        %2079 = vrot.lane.b32.xlu0 %v1990, 24
        %v2080 = vpop.permute.xlu0 %2079
        %2081 = vrot.lane.b32.xlu0 %v1993, 24
        %v2082 = vpop.permute.xlu0 %2081
        %2083 = vrot.lane.b32.xlu0 %v2037, 24
        %v2084 = vpop.permute.xlu0 %2083
        %2085 = vrot.lane.b32.xlu0 %v2040, 24
        %v2086 = vpop.permute.xlu0 %2085
        %v2091 = vsel %vm1078, %v1264, %v2048
        %v2092 = vsel %vm1078, %v1267, %v2050
        %v2093 = vsel %vm1078, %v1311, %v2052
        %v2094 = vsel %vm1078, %v1314, %v2054
        %v2095 = vsel %vm1176, %v2091, %v2064
        %v2096 = vsel %vm1176, %v2092, %v2066
        %v2097 = vsel %vm1176, %v2093, %v2068
        %v2098 = vsel %vm1176, %v2094, %v2070
        %vm2099 = vcmask 195584
        %v2100 = vsel %vm2099, %v2095, %v2080
        %v2101 = vsel %vm2099, %v2096, %v2082
        %v2102 = vsel %vm2099, %v2097, %v2084
        %v2103 = vsel %vm2099, %v2098, %v2086
        %v2104 = vpack.c.bf16 %v2101, %v2100
        %v2105 = vpack.c.bf16 %v2103, %v2102
        %v2106 = vld [vmem:[%s685] sm:$0xf]
        %v2107 = vld [vmem:[%s685 + $0x4] sm:$0xf]
        %v2108 = vld [vmem:[%s685 + $0x8] sm:$0xf]
        %v2109 = vld [vmem:[%s685 + $0xc] sm:$0xf]
        %v2110 = vlaneseq
        %v2111 = vshrl.u32 %v2110, 7
        %v2112 = vsub.s32 4, %v2111
        %v2113 = vrot.slane %v922, %v2112
        %v2118 = vunpack.c.l.b16 %v2106
        %v2119 = vunpack.c.l.b16 %v2107
        %v2120 = vunpack.c.l.b16 %v2108
        %v2121 = vunpack.c.l.b16 %v2109
        %v2122 = vpack.c.b16 %v2119, %v2118
        %v2123 = vpack.c.b16 %v2121, %v2120
        %v2127 = vsel %vm923, %v2104, 0
        %v2130 = vsel %vm923, %v2105, 0
        %2132 = vmatprep.subr.bf16.mxu0 0
        %2133 = vmatpush1.bf16.msra.mxu0 %v2122
        %2134 = vmatprep.subr.bf16.mxu0 0
        %2135 = vmatpush1.bf16.msra.mxu0 %v2123
        %2136 = vmatprep.subr.bf16.mxu0 0
        %2137 = vmatpush1.bf16.msra.mxu0 0
        %2138 = vmatprep.subr.bf16.mxu0 0
        %2139 = vmatpush1.bf16.msra.mxu0 0
        %2140 = vmatprep.subr.bf16.mxu0 0
        %2141 = vmatpush1.bf16.msra.mxu0 0
        %2142 = vmatprep.subr.bf16.mxu0 0
        %2143 = vmatpush1.bf16.msra.mxu0 0
        %2144 = vmatprep.subr.bf16.mxu0 0
        %2145 = vmatpush1.bf16.msra.mxu0 0
        %2146 = vmatprep.subr.bf16.mxu0 0
        %2147 = vmatpush1.bf16.msra.mxu0 0
        %2148 = vmatprep.subr.bf16.mxu0 0
        %2149 = vmatpush1.bf16.msra.mxu0 0
        %2150 = vmatprep.subr.bf16.mxu0 0
        %2151 = vmatpush1.bf16.msra.mxu0 0
        %2152 = vmatprep.subr.bf16.mxu0 0
        %2153 = vmatpush1.bf16.msra.mxu0 0
        %2154 = vmatprep.subr.bf16.mxu0 0
        %2155 = vmatpush1.bf16.msra.mxu0 0
        %2156 = vmatprep.subr.bf16.mxu0 0
        %2157 = vmatpush1.bf16.msra.mxu0 0
        %2158 = vmatprep.subr.bf16.mxu0 0
        %2159 = vmatpush1.bf16.msra.mxu0 0
        %2160 = vmatprep.subr.bf16.mxu0 0
        %2161 = vmatpush1.bf16.msra.mxu0 0
        %2162 = vmatprep.subr.bf16.mxu0 0
        %2163 = vmatpush1.bf16.msra.mxu0 0
        %2164 = vmatprep.mubr.bf16.mxu0 0
        %2165 = vmatmul.mubr.bf16.gmra.mrb[0].mxu0 %v2127
        %v2166 = vpop.f32.mrb[0].mxu0
        %v2167 = vadd.f32 %v2113, %v2166
        %v2168 = vpop.f32.mrb[0].mxu0
        %v2169 = vpop.f32.mrb[0].mxu0
        %v2170 = vadd.f32 %v2113, %v2169
        %v2171 = vpop.f32.mrb[0].mxu0
        %2172 = vmatprep.mubr.bf16.mxu0 0
        %2173 = vmatmul.mubr.bf16.gmra.mrb[0].mxu0 %v2130
        %v2174 = vpop.f32.mrb[0].mxu0
        %v2175 = vadd.f32 %v2113, %v2174
        %v2176 = vpop.f32.mrb[0].mxu0
        %v2177 = vpop.f32.mrb[0].mxu0
        %v2178 = vadd.f32 %v2113, %v2177
        %v2179 = vpop.f32.mrb[0].mxu0
        %2180 = vdwg.mxu0
        %v2181 = vadd.f32 %v914, %v2167
        %v2182 = vadd.f32 %v915, %v2170
        %v2183 = vadd.f32 %v916, %v2175
        %v2184 = vadd.f32 %v917, %v2178
        %v2185 = vsel %vm923, %v2181, 0.0
        %2186 = vadd.xlane.f32.xlu0 %v2185
        %v2187 = vpop.xlane.xlu0 %2186
        %v2188 = vsel %vm923, %v2182, 0.0
        %2189 = vadd.xlane.f32.xlu0 %v2188
        %v2190 = vpop.xlane.xlu0 %2189
        %v2191 = vsel %vm923, %v2183, 0.0
        %2192 = vadd.xlane.f32.xlu0 %v2191
        %v2193 = vpop.xlane.xlu0 %2192
        %v2194 = vsel %vm923, %v2184, 0.0
        %2195 = vadd.xlane.f32.xlu0 %v2194
        %v2196 = vpop.xlane.xlu0 %2195
        %v2197 = vmul.f32 %v2187, %v936
        %v2198 = vmul.f32 %v2190, %v936
        %v2199 = vmul.f32 %v2193, %v936
        %v2200 = vmul.f32 %v2196, %v936
        %v2201 = vsub.f32 %v2181, %v2197
        %v2202 = vsub.f32 %v2182, %v2198
        %v2203 = vsub.f32 %v2183, %v2199
        %v2204 = vsub.f32 %v2184, %v2200
        %v2205 = vmul.f32 %v2201, %v2201
        %v2206 = vmul.f32 %v2202, %v2202
        %v2207 = vmul.f32 %v2203, %v2203
        %v2208 = vmul.f32 %v2204, %v2204
        %v2209 = vsel %vm923, %v2205, 0.0
        %2210 = vadd.xlane.f32.xlu0 %v2209
        %v2211 = vpop.xlane.xlu0 %2210
        %v2212 = vsel %vm923, %v2206, 0.0
        %2213 = vadd.xlane.f32.xlu0 %v2212
        %v2214 = vpop.xlane.xlu0 %2213
        %v2215 = vsel %vm923, %v2207, 0.0
        %2216 = vadd.xlane.f32.xlu0 %v2215
        %v2217 = vpop.xlane.xlu0 %2216
        %v2218 = vsel %vm923, %v2208, 0.0
        %2219 = vadd.xlane.f32.xlu0 %v2218
        %v2220 = vpop.xlane.xlu0 %2219
        %v2221 = vmul.f32 %v2211, %v936
        %v2222 = vmul.f32 %v2214, %v936
        %v2223 = vmul.f32 %v2217, %v936
        %v2224 = vmul.f32 %v2220, %v936
        %v2225 = vadd.f32 %v2221, 1e-05
        %v2226 = vadd.f32 %v2222, 1e-05
        %v2227 = vadd.f32 %v2223, 1e-05
        %v2228 = vadd.f32 %v2224, 1e-05
        %v2229 = vrsqrt.pop %v2225
        %v2230 = vrsqrt.pop %v2226
        %v2231 = vrsqrt.pop %v2227
        %v2232 = vrsqrt.pop %v2228
        %v2233 = vmul.f32 %v2201, %v2229
        %v2234 = vmul.f32 %v2202, %v2230
        %v2235 = vmul.f32 %v2203, %v2231
        %v2236 = vmul.f32 %v2204, %v2232
        %v2237 = vlaneseq
        %v2238 = vshrl.u32 %v2237, 7
        %v2239 = vsub.s32 2, %v2238
        %v2240 = vrot.slane %v922, %v2239
        %v2241 = vmul.f32 %v2233, %v2240
        %v2242 = vmul.f32 %v2234, %v2240
        %v2243 = vmul.f32 %v2235, %v2240
        %v2244 = vmul.f32 %v2236, %v2240
        %v2245 = vlaneseq
        %v2246 = vshrl.u32 %v2245, 7
        %v2247 = vsub.s32 3, %v2246
        %v2248 = vrot.slane %v922, %v2247
        %v2249 = vadd.f32 %v2241, %v2248
        %v2250 = vadd.f32 %v2242, %v2248
        %v2251 = vadd.f32 %v2243, %v2248
        %v2252 = vadd.f32 %v2244, %v2248
        %v2253 = vpack.c.bf16 %v2250, %v2249
        %v2254 = vpack.c.bf16 %v2252, %v2251
        %v2255 = vld [vmem:[%s703] sm:$0xf]
        %v2256 = vld [vmem:[%s703 + $0x4] sm:$0xf]
        %v2257 = vld [vmem:[%s703 + $0x8] sm:$0xf]
        %v2258 = vld [vmem:[%s703 + $0xc] sm:$0xf]
        %v2259 = vld [vmem:[%s711] sm:$0x1]
        %v2261 = vlaneseq
        %v2262 = vshrl.u32 %v2261, 7
        %v2263 = vsub.s32 0, %v2262
        %v2264 = vrot.slane %v2259, %v2263
        %v2270 = vunpack.c.l.b16 %v2255
        %v2271 = vunpack.c.l.b16 %v2256
        %v2272 = vunpack.c.l.b16 %v2257
        %v2273 = vunpack.c.l.b16 %v2258
        %v2274 = vpack.c.b16 %v2271, %v2270
        %v2275 = vpack.c.b16 %v2273, %v2272
        %v2279 = vsel %vm923, %v2253, 0
        %v2282 = vsel %vm923, %v2254, 0
        %2284 = vmatprep.subr.bf16.mxu0 0
        %2285 = vmatpush1.bf16.msra.mxu0 %v2274
        %2286 = vmatprep.subr.bf16.mxu0 0
        %2287 = vmatpush1.bf16.msra.mxu0 %v2275
        %2288 = vmatprep.subr.bf16.mxu0 0
        %2289 = vmatpush1.bf16.msra.mxu0 0
        %2290 = vmatprep.subr.bf16.mxu0 0
        %2291 = vmatpush1.bf16.msra.mxu0 0
        %2292 = vmatprep.subr.bf16.mxu0 0
        %2293 = vmatpush1.bf16.msra.mxu0 0
        %2294 = vmatprep.subr.bf16.mxu0 0
        %2295 = vmatpush1.bf16.msra.mxu0 0
        %2296 = vmatprep.subr.bf16.mxu0 0
        %2297 = vmatpush1.bf16.msra.mxu0 0
        %2298 = vmatprep.subr.bf16.mxu0 0
        %2299 = vmatpush1.bf16.msra.mxu0 0
        %2300 = vmatprep.subr.bf16.mxu0 0
        %2301 = vmatpush1.bf16.msra.mxu0 0
        %2302 = vmatprep.subr.bf16.mxu0 0
        %2303 = vmatpush1.bf16.msra.mxu0 0
        %2304 = vmatprep.subr.bf16.mxu0 0
        %2305 = vmatpush1.bf16.msra.mxu0 0
        %2306 = vmatprep.subr.bf16.mxu0 0
        %2307 = vmatpush1.bf16.msra.mxu0 0
        %2308 = vmatprep.subr.bf16.mxu0 0
        %2309 = vmatpush1.bf16.msra.mxu0 0
        %2310 = vmatprep.subr.bf16.mxu0 0
        %2311 = vmatpush1.bf16.msra.mxu0 0
        %2312 = vmatprep.subr.bf16.mxu0 0
        %2313 = vmatpush1.bf16.msra.mxu0 0
        %2314 = vmatprep.subr.bf16.mxu0 0
        %2315 = vmatpush1.bf16.msra.mxu0 0
        %2316 = vmatprep.mubr.bf16.mxu0 0
        %2317 = vmatmul.mubr.bf16.gmra.mrb[0].mxu0 %v2279
        %v2318 = vpop.f32.mrb[0].mxu0
        %v2319 = vadd.f32 %v2264, %v2318
        %v2320 = vpop.f32.mrb[0].mxu0
        %v2321 = vpop.f32.mrb[0].mxu0
        %v2322 = vadd.f32 %v2264, %v2321
        %v2323 = vpop.f32.mrb[0].mxu0
        %2324 = vmatprep.mubr.bf16.mxu0 0
        %2325 = vmatmul.mubr.bf16.gmra.mrb[0].mxu0 %v2282
        %v2326 = vpop.f32.mrb[0].mxu0
        %v2327 = vadd.f32 %v2264, %v2326
        %v2328 = vpop.f32.mrb[0].mxu0
        %v2329 = vpop.f32.mrb[0].mxu0
        %v2330 = vadd.f32 %v2264, %v2329
        %v2331 = vpop.f32.mrb[0].mxu0
        %2332 = vdwg.mxu0
        %v2333 = vmul.f32 %v2319, 0.5
        %v2334 = vmul.f32 %v2322, 0.5
        %v2335 = vmul.f32 %v2327, 0.5
        %v2336 = vmul.f32 %v2330, 0.5
        %v2337 = vmul.f32 %v2319, 0.70710677
        %v2338 = vmul.f32 %v2322, 0.70710677
        %v2339 = vmul.f32 %v2327, 0.70710677
        %v2340 = vmul.f32 %v2330, 0.70710677
        %v2341 = verf.f32.pop %v2337
        %v2342 = verf.f32.pop %v2338
        %v2343 = verf.f32.pop %v2339
        %v2344 = verf.f32.pop %v2340
        %v2345 = vadd.f32 %v2341, 1.0
        %v2346 = vadd.f32 %v2342, 1.0
        %v2347 = vadd.f32 %v2343, 1.0
        %v2348 = vadd.f32 %v2344, 1.0
        %v2349 = vmul.f32 %v2333, %v2345
        %v2350 = vmul.f32 %v2334, %v2346
        %v2351 = vmul.f32 %v2335, %v2347
        %v2352 = vmul.f32 %v2336, %v2348
        %v2353 = vpack.c.bf16 %v2350, %v2349
        %v2354 = vpack.c.bf16 %v2352, %v2351
        %v2355 = vld [vmem:[%s720] sm:$0xf]
        %v2356 = vld [vmem:[%s720 + $0x4] sm:$0xf]
        %v2357 = vld [vmem:[%s720 + $0x8] sm:$0xf]
        %v2358 = vld [vmem:[%s720 + $0xc] sm:$0xf]
        %v2359 = vld [vmem:[%s720 + $0x10] sm:$0xf]
        %v2360 = vld [vmem:[%s720 + $0x14] sm:$0xf]
        %v2361 = vld [vmem:[%s720 + $0x18] sm:$0xf]
        %v2362 = vld [vmem:[%s720 + $0x1c] sm:$0xf]
        %v2363 = vld [vmem:[%s720 + $0x20] sm:$0xf]
        %v2364 = vld [vmem:[%s720 + $0x24] sm:$0xf]
        %v2365 = vld [vmem:[%s720 + $0x28] sm:$0xf]
        %v2366 = vld [vmem:[%s720 + $0x2c] sm:$0xf]
        %v2367 = vld [vmem:[%s720 + $0x30] sm:$0xf]
        %v2368 = vld [vmem:[%s720 + $0x34] sm:$0xf]
        %v2369 = vld [vmem:[%s720 + $0x38] sm:$0xf]
        %v2370 = vld [vmem:[%s720 + $0x3c] sm:$0xf]
        %v2371 = vlaneseq
        %v2372 = vshrl.u32 %v2371, 7
        %v2373 = vsub.s32 5, %v2372
        %v2374 = vrot.slane %v922, %v2373
        %v2391 = vunpack.c.l.b16 %v2355
        %v2392 = vunpack.c.l.b16 %v2356
        %v2393 = vunpack.c.l.b16 %v2357
        %v2394 = vunpack.c.l.b16 %v2358
        %v2395 = vunpack.c.l.b16 %v2359
        %v2396 = vunpack.c.l.b16 %v2360
        %v2397 = vunpack.c.l.b16 %v2361
        %v2398 = vunpack.c.l.b16 %v2362
        %v2399 = vunpack.c.l.b16 %v2363
        %v2400 = vunpack.c.l.b16 %v2364
        %v2401 = vunpack.c.l.b16 %v2365
        %v2402 = vunpack.c.l.b16 %v2366
        %v2403 = vunpack.c.l.b16 %v2367
        %v2404 = vunpack.c.l.b16 %v2368
        %v2405 = vunpack.c.l.b16 %v2369
        %v2406 = vunpack.c.l.b16 %v2370
        %v2407 = vpack.c.b16 %v2392, %v2391
        %v2408 = vpack.c.b16 %v2394, %v2393
        %v2409 = vpack.c.b16 %v2396, %v2395
        %v2410 = vpack.c.b16 %v2398, %v2397
        %v2411 = vpack.c.b16 %v2400, %v2399
        %v2412 = vpack.c.b16 %v2402, %v2401
        %v2413 = vpack.c.b16 %v2404, %v2403
        %v2414 = vpack.c.b16 %v2406, %v2405
        %2423 = vmatprep.subr.bf16.mxu0 0
        %2424 = vmatpush1.bf16.msra.mxu0 %v2407
        %2425 = vmatprep.subr.bf16.mxu0 0
        %2426 = vmatpush1.bf16.msra.mxu0 %v2408
        %2427 = vmatprep.subr.bf16.mxu0 0
        %2428 = vmatpush1.bf16.msra.mxu0 %v2409
        %2429 = vmatprep.subr.bf16.mxu0 0
        %2430 = vmatpush1.bf16.msra.mxu0 %v2410
        %2431 = vmatprep.subr.bf16.mxu0 0
        %2432 = vmatpush1.bf16.msra.mxu0 %v2411
        %2433 = vmatprep.subr.bf16.mxu0 0
        %2434 = vmatpush1.bf16.msra.mxu0 %v2412
        %2435 = vmatprep.subr.bf16.mxu0 0
        %2436 = vmatpush1.bf16.msra.mxu0 %v2413
        %2437 = vmatprep.subr.bf16.mxu0 0
        %2438 = vmatpush1.bf16.msra.mxu0 %v2414
        %2439 = vmatprep.subr.bf16.mxu0 0
        %2440 = vmatpush1.bf16.msra.mxu0 0
        %2441 = vmatprep.subr.bf16.mxu0 0
        %2442 = vmatpush1.bf16.msra.mxu0 0
        %2443 = vmatprep.subr.bf16.mxu0 0
        %2444 = vmatpush1.bf16.msra.mxu0 0
        %2445 = vmatprep.subr.bf16.mxu0 0
        %2446 = vmatpush1.bf16.msra.mxu0 0
        %2447 = vmatprep.subr.bf16.mxu0 0
        %2448 = vmatpush1.bf16.msra.mxu0 0
        %2449 = vmatprep.subr.bf16.mxu0 0
        %2450 = vmatpush1.bf16.msra.mxu0 0
        %2451 = vmatprep.subr.bf16.mxu0 0
        %2452 = vmatpush1.bf16.msra.mxu0 0
        %2453 = vmatprep.subr.bf16.mxu0 0
        %2454 = vmatpush1.bf16.msra.mxu0 0
        %2455 = vmatprep.mubr.bf16.mxu0 0
        %2456 = vmatmul.mubr.bf16.gmra.mrb[0].mxu0 %v2353
        %v2457 = vpop.f32.mrb[0].mxu0
        %v2458 = vadd.f32 %v2374, %v2457
        %v2459 = vpop.f32.mrb[0].mxu0
        %v2460 = vpop.f32.mrb[0].mxu0
        %v2461 = vadd.f32 %v2374, %v2460
        %v2462 = vpop.f32.mrb[0].mxu0
        %2463 = vmatprep.mubr.bf16.mxu0 0
        %2464 = vmatmul.mubr.bf16.gmra.mrb[0].mxu0 %v2354
        %v2465 = vpop.f32.mrb[0].mxu0
        %v2466 = vadd.f32 %v2374, %v2465
        %v2467 = vpop.f32.mrb[0].mxu0
        %v2468 = vpop.f32.mrb[0].mxu0
        %v2469 = vadd.f32 %v2374, %v2468
        %v2470 = vpop.f32.mrb[0].mxu0
        %2471 = vdwg.mxu0
        %v2472 = vadd.f32 %v918, %v2458
        %v2473 = vadd.f32 %v919, %v2461
        %v2474 = vadd.f32 %v920, %v2466
        %v2475 = vadd.f32 %v921, %v2469
        %2476 = vst.msk [vmem:[#allocation2] sm:$0xff] %vm923, %v2181
        %2477 = vst.msk [vmem:[#allocation2 + $0x8] sm:$0xff] %vm923, %v2182
        %2478 = vst.msk [vmem:[#allocation2 + $0x10] sm:$0xff] %vm923, %v2183
        %2479 = vst.msk [vmem:[#allocation2 + $0x18] sm:$0xff] %vm923, %v2184
        %2480 = vst.msk [vmem:[#allocation3] sm:$0xff] %vm923, %v2472
        %2481 = vst.msk [vmem:[#allocation3 + $0x8] sm:$0xff] %vm923, %v2473
        %2482 = vst.msk [vmem:[#allocation3 + $0x10] sm:$0xff] %vm923, %v2474
        %2483 = vst.msk [vmem:[#allocation3 + $0x18] sm:$0xff] %vm923, %v2475
        %p2484 = scmp.eq.s32.totalorder %s35, 1
        // Predicated region
        $region137: #{tpu_custom_call.1} parent=75 // pred_check
          %p2485 = pneg %p2484
        $region138: #{tpu_custom_call.1} parent=75 // pred_check_branch
          %2487 = sbr.rel (%p2485) target = $region140
        $region139: #{tpu_custom_call.1} parent=75 // pred_region
          %v2488 = vadd.f32 %v2185, %v2188
          %v2489 = vrot.slane %v2488, 4
          %v2490 = vadd.f32 %v2488, %v2489
          %v2491 = vrot.slane %v2490, 2
          %v2492 = vadd.f32 %v2490, %v2491
          %v2493 = vrot.slane %v2492, 1
          %v2494 = vadd.f32 %v2492, %v2493
          %v2495 = vadd.f32 %v2191, %v2194
          %v2496 = vrot.slane %v2495, 4
          %v2497 = vadd.f32 %v2495, %v2496
          %v2498 = vrot.slane %v2497, 2
          %v2499 = vadd.f32 %v2497, %v2498
          %v2500 = vrot.slane %v2499, 1
          %v2501 = vadd.f32 %v2499, %v2500
          %v2502 = vrcp.pop 16.0
          %v2503 = vmul.f32 %v2494, %v2502
          %v2504 = vmul.f32 %v2501, %v2502
          %v2505 = vsel %vm923, %v2472, 0.0
          %v2506 = vsel %vm923, %v2473, 0.0
          %v2507 = vadd.f32 %v2505, %v2506
          %v2508 = vrot.slane %v2507, 4
          %v2509 = vadd.f32 %v2507, %v2508
          %v2510 = vrot.slane %v2509, 2
          %v2511 = vadd.f32 %v2509, %v2510
          %v2512 = vrot.slane %v2511, 1
          %v2513 = vadd.f32 %v2511, %v2512
          %v2514 = vsel %vm923, %v2474, 0.0
          %v2515 = vsel %vm923, %v2475, 0.0
          %v2516 = vadd.f32 %v2514, %v2515
          %v2517 = vrot.slane %v2516, 4
          %v2518 = vadd.f32 %v2516, %v2517
          %v2519 = vrot.slane %v2518, 2
          %v2520 = vadd.f32 %v2518, %v2519
          %v2521 = vrot.slane %v2520, 1
          %v2522 = vadd.f32 %v2520, %v2521
          %v2523 = vmul.f32 %v2513, %v2502
          %v2524 = vmul.f32 %v2522, %v2502
          %vm2527 = vcmask 1041409
          %v2528 = vsel %vm2527, %v2504, %v2503
          %v2532 = vsel %vm2527, %v2524, %v2523
          %2533 = vrot.lane.b32.xlu0 %v2532, 32
          %v2534 = vpop.permute.xlu0 %2533
          %v2536 = vsel %vm923, %v2528, %v2534
          %v2537 = vld [vmem:[#allocation19] sm:$0x1]
          %v2538 = vld [vmem:[#allocation19 + $0x1] sm:$0x1]
          %vm2539 = vcmask 517120
          %v2540 = vsel %vm2539, %v2536, 0.0
          %2541 = vadd.xlane.f32.xlu0 %v2540
          %v2542 = vpop.xlane.xlu0 %2541
          %v2543 = vrcp.pop 64.0
          %v2544 = vmul.f32 %v2542, %v2543
          %v2545 = vsub.f32 %v2536, %v2544
          %v2546 = vmul.f32 %v2545, %v2545
          %v2547 = vsel %vm2539, %v2546, 0.0
          %2548 = vadd.xlane.f32.xlu0 %v2547
          %v2549 = vpop.xlane.xlu0 %2548
          %v2550 = vmul.f32 %v2549, %v2543
          %v2551 = vadd.f32 %v2550, 1e-05
          %v2552 = vrsqrt.pop %v2551
          %v2553 = vmul.f32 %v2545, %v2552
          %v2554 = vlaneseq
          %v2555 = vshrl.u32 %v2554, 7
          %v2556 = vsub.s32 0, %v2555
          %v2557 = vrot.slane %v2537, %v2556
          %v2558 = vmul.f32 %v2553, %v2557
          %v2559 = vlaneseq
          %v2560 = vshrl.u32 %v2559, 7
          %v2561 = vsub.s32 0, %v2560
          %v2562 = vrot.slane %v2538, %v2561
          %v2563 = vadd.f32 %v2558, %v2562
          %v2564 = vpack.c.bf16 %v2563, %v2563
          %v2565 = vld [vmem:[#allocation20] sm:$0xf]
          %v2566 = vld [vmem:[#allocation20 + $0x4] sm:$0xf]
          %v2567 = vld [vmem:[#allocation20 + $0x8] sm:$0xf]
          %v2568 = vld [vmem:[#allocation20 + $0xc] sm:$0xf]
          %v2569 = vld [vmem:[#allocation20 + $0x10] sm:$0xf]
          %v2570 = vld [vmem:[#allocation20 + $0x14] sm:$0xf]
          %v2571 = vld [vmem:[#allocation20 + $0x18] sm:$0xf]
          %v2572 = vld [vmem:[#allocation20 + $0x1c] sm:$0xf]
          %v2573 = vld [vmem:[#allocation21] sm:$0x1]
          %v2575 = vlaneseq
          %v2576 = vshrl.u32 %v2575, 7
          %v2577 = vsub.s32 0, %v2576
          %v2578 = vrot.slane %v2573, %v2577
          %v2588 = vunpack.c.l.b16 %v2565
          %v2589 = vunpack.c.l.b16 %v2566
          %v2590 = vunpack.c.l.b16 %v2567
          %v2591 = vunpack.c.l.b16 %v2568
          %v2592 = vunpack.c.l.b16 %v2569
          %v2593 = vunpack.c.l.b16 %v2570
          %v2594 = vunpack.c.l.b16 %v2571
          %v2595 = vunpack.c.l.b16 %v2572
          %v2596 = vpack.c.b16 %v2589, %v2588
          %v2597 = vpack.c.b16 %v2591, %v2590
          %v2598 = vpack.c.b16 %v2593, %v2592
          %v2599 = vpack.c.b16 %v2595, %v2594
          %vm2604 = vcmask 523264
          %v2606 = vsel %vm2604, %v2564, 0
          %2608 = vmatprep.subr.bf16.mxu0 0
          %2609 = vmatpush1.bf16.msra.mxu0 %v2596
          %2610 = vmatprep.subr.bf16.mxu0 0
          %2611 = vmatpush1.bf16.msra.mxu0 %v2597
          %2612 = vmatprep.subr.bf16.mxu0 0
          %2613 = vmatpush1.bf16.msra.mxu0 %v2598
          %2614 = vmatprep.subr.bf16.mxu0 0
          %2615 = vmatpush1.bf16.msra.mxu0 %v2599
          %2616 = vmatprep.subr.bf16.mxu0 0
          %2617 = vmatpush1.bf16.msra.mxu0 0
          %2618 = vmatprep.subr.bf16.mxu0 0
          %2619 = vmatpush1.bf16.msra.mxu0 0
          %2620 = vmatprep.subr.bf16.mxu0 0
          %2621 = vmatpush1.bf16.msra.mxu0 0
          %2622 = vmatprep.subr.bf16.mxu0 0
          %2623 = vmatpush1.bf16.msra.mxu0 0
          %2624 = vmatprep.subr.bf16.mxu0 0
          %2625 = vmatpush1.bf16.msra.mxu0 0
          %2626 = vmatprep.subr.bf16.mxu0 0
          %2627 = vmatpush1.bf16.msra.mxu0 0
          %2628 = vmatprep.subr.bf16.mxu0 0
          %2629 = vmatpush1.bf16.msra.mxu0 0
          %2630 = vmatprep.subr.bf16.mxu0 0
          %2631 = vmatpush1.bf16.msra.mxu0 0
          %2632 = vmatprep.subr.bf16.mxu0 0
          %2633 = vmatpush1.bf16.msra.mxu0 0
          %2634 = vmatprep.subr.bf16.mxu0 0
          %2635 = vmatpush1.bf16.msra.mxu0 0
          %2636 = vmatprep.subr.bf16.mxu0 0
          %2637 = vmatpush1.bf16.msra.mxu0 0
          %2638 = vmatprep.subr.bf16.mxu0 0
          %2639 = vmatpush1.bf16.msra.mxu0 0
          %2640 = vmatprep.mubr.bf16.mxu0 0
          %2641 = vmatmul.mubr.bf16.gmra.mrb[0].mxu0 %v2606
          %v2642 = vpop.f32.mrb[0].mxu0
          %v2643 = vadd.f32 %v2578, %v2642
          %v2644 = vpop.f32.mrb[0].mxu0
          %v2645 = vpop.f32.mrb[0].mxu0
          %v2646 = vpop.f32.mrb[0].mxu0
          %2647 = vdwg.mxu0
          %v2650 = vunpack.c.l.s4 1966171168
          %v2651 = vunpack.c.0.s8 %v2650
          %v2652 = vlaneseq
          %v2653 = vshrl.u32 %v2652, 7
          %v2654 = vsub.s32 %v2651, %v2653
          %v2655 = vrot.slane %v2643, %v2654
          %v2656 = vcombine.high %v2655, %v2655
          %v2658 = vunpack.c.l.s4 1966171168
          %v2659 = vunpack.c.0.s8 %v2658
          %v2660 = vlaneseq
          %v2661 = vshrl.u32 %v2660, 7
          %v2662 = vsub.s32 %v2659, %v2661
          %v2663 = vrot.slane %v2655, %v2662
          %v2665 = vunpack.c.l.s4 1966171168
          %v2666 = vunpack.c.0.s8 %v2665
          %v2667 = vlaneseq
          %v2668 = vshrl.u32 %v2667, 7
          %v2669 = vsub.s32 %v2666, %v2668
          %v2670 = vrot.slane %v2656, %v2669
          %vm2673 = vcmask 73728
          %2674 = vst.msk [vmem:[#allocation23] sm:$0x1] %vm2673, %v2663
          %2675 = vst.msk [vmem:[#allocation23 + $0x1] sm:$0x1] %vm2673, %v2670
        $region140: #{tpu_custom_call.1} parent=75 // pred_fallthru
          _
        // Predicated region
        $region141: #{tpu_custom_call.1} parent=75 // pred_check
          %p2676 = pneg %p394
        $region142: #{tpu_custom_call.1} parent=75 // pred_check_branch
          %2678 = sbr.rel (%p2676) target = $region144
        $region143: #{tpu_custom_call.1} parent=75 // pred_region
          %s2679 = smul.u32 2, %s34
          %s2681 = ssub.s32 32, 32
          %2682 = vsyncadd [#allocation6], %s2681
          %s2683 = smul.addr %s2679, 16
          %s2684 = scalar_lea.hbm %s14, %s2683
          %s2685 = sshll.u32 [#allocation23], 4
          %s2686 = int_to_ptr.vmem [resolvable:$true] %s2685
          %2691 = dma.vmem_to_hbm [thread:$0]  %s2686, 32, %s2684, [#allocation6], 16, 16, 1
        $region144: #{tpu_custom_call.1} parent=75 // pred_fallthru
          _
        // Predicated region
        $region145: #{tpu_custom_call.1} parent=75 // pred_check
          %p2692 = pneg %p394
        $region146: #{tpu_custom_call.1} parent=75 // pred_check_branch
          %2694 = sbr.rel (%p2692) target = $region148
        $region147: #{tpu_custom_call.1} parent=75 // pred_region
          %2695 = dma.done [#allocation6], 32
        $region148: #{tpu_custom_call.1} parent=75 // pred_fallthru
          _
      $region76: #{tpu_custom_call.1} parent=5 // pred_fallthru
        _
      %p2696 = scmp.le.s32.totalorder 2, %s25
      // Predicated region
      $region149: #{tpu_custom_call.1} parent=5 // pred_check
        %p2697 = pneg %p2696
      $region150: #{tpu_custom_call.1} parent=5 // pred_check_branch
        %2699 = sbr.rel (%p2697) target = $region152
      $region151: #{tpu_custom_call.1} parent=5 // pred_region
        %s2700 = ssub.s32 %s25, 2
      $region152: #{tpu_custom_call.1} parent=5 // pred_fallthru
        _
    $region6: #{tpu_custom_call.1} parent=1 // loop_footer
      %s29 = sadd.s32 1, %s25
    $region7: #{tpu_custom_call.1} parent=1 // loop_footer_branch
      %24 = sbr.rel target = $region3
    $region8: #{tpu_custom_call.1} parent=1 // loop_exit
      _
    %2701 = vsyncpa [#allocation5], 1
    %s2702 = scalar_lea.sflag [#allocation5], 1
    %2703 = vsyncpa %s2702, 1
    %2704 = vsyncpa [#allocation8], 1
    %2705 = vsyncpa [#allocation11], 1
    %2706 = vsyncpa [#allocation22], 1
    %2707 = vsyncpa [#allocation6], 1
    %s2708 = scalar_lea.sflag [#allocation6], 1
    %2709 = vsyncpa %s2708, 1

</llo_original>
